<compile_context>
chip_gen: v7x
topology: tpu7x:2x2x1
jax: 0.10.0
libtpu: 0.0.40
codegen_flags: <defaults>
</compile_context>

<pallas_src>
import jax
import jax.numpy as jnp
import numpy as np
from jax.experimental import pallas as pl
from jax.experimental.pallas import tpu as pltpu


def _scatter_kernel(tile_b_ref, tile_t_ref, colbase_ref, slab0_ref, needsb_ref,  # SMEM tables
                    pfT_a_ref, gidx_a_ref, pfT_b_ref, gidx_b_ref,                # pillar slabs
                    bg_feat_ref, bg_mask_ref,                                    # aliased bg (unused)
                    out_ref, mask_ref,                                           # output tiles
                    acc_ref):                                                    # VMEM scratch
    """One non-empty (batch, spatial-tile) list entry.

    pfT_*_ref  : (C_in+1, P_TILE) sorted pillar features (transposed), last row == 1.0
    gidx_*_ref : (P_TILE, 1) sorted global flat indices
    out_ref    : (1, C_in, TILE_S) dense BEV feature tile
    mask_ref   : (1, 1, TILE_S) occupancy tile (int32 0/1)
    """
    del tile_b_ref, tile_t_ref, slab0_ref, bg_feat_ref, bg_mask_ref
    i = pl.program_id(0)
    c_in = out_ref.shape[1]
    tile_s = out_ref.shape[-1]

    # Global flat spatial indices covered by this tile: (1, TILE_S).
    cols = jax.lax.broadcasted_iota(jnp.int32, (1, tile_s), 1) + colbase_ref[i]
    mxu_dt = pfT_a_ref.dtype

    # Slab A: always needed.  (C+1, K) x (K, TILE_S) on the MXU, f32 accumulate.
    hit_a = (gidx_a_ref[...] == cols).astype(mxu_dt)          # (P_TILE, TILE_S) one-hot
    acc_ref[...] = jnp.dot(pfT_a_ref[...], hit_a, preferred_element_type=jnp.float32)

    # Slab B: only when this tile's pillar run spills past slab A.
    @pl.when(needsb_ref[i] != 0)
    def _():
        hit_b = (gidx_b_ref[...] == cols).astype(mxu_dt)
        acc_ref[...] = acc_ref[...] + jnp.dot(
            pfT_b_ref[...], hit_b, preferred_element_type=jnp.float32)

    acc = acc_ref[...]
    out_ref[...] = acc[:c_in][None].astype(out_ref.dtype)
    # Last accumulator row is the per-column hit count (ones-row trick).
    mask_ref[...] = (acc[c_in:c_in + 1][None] > 0.0).astype(mask_ref.dtype)


def pointpillar_scatter3d(pillar_features, coords, input_shape, num_bev_features,
                          batch_size=None, tile_s=512, mxu_dtype=jnp.bfloat16):
    """JAX/Pallas equivalent of PointPillarScatter3d.forward.

    mxu_dtype=jnp.bfloat16 (default) scatters bf16-rounded features (fast MXU path on
    v5e/v6e/v7x); pass jnp.float32 for exact f32 scatter.
    """
    nx, ny, nz = input_shape
    c_in = num_bev_features // nz
    P, C = pillar_features.shape
    assert C == c_in, "pillar feature dim must equal num_bev_features // nz"
    S = nz * ny * nx

    # Pick a lane-dense tile that divides S (fall back to full S if nothing divides).
    t = (min(tile_s, S) // 128) * 128
    while t >= 128 and S % t != 0:
        t -= 128
    tile_s = t if t >= 128 else S
    n_st = S // tile_s                      # spatial tiles per batch

    if batch_size is None:
        # Matches torch's coords[:,0].max().item()+1 (forces a device sync; prefer static).
        batch_size = int(jax.device_get(jnp.max(coords[:, 0]))) + 1
    batch_size = int(batch_size)
    n_tiles = batch_size * n_st

    # Pillar slab: >= tile_s rows so one tile's run always fits in two consecutive slabs;
    # multiple of 128 for the lane constraint of the transposed pf blocks.
    p_tile = 128 * pl.cdiv(tile_s, 128)
    n_blk = pl.cdiv(max(P, 1), p_tile) + 1  # +1 all-padding slab so slab0+1 is always valid
    p_pad = n_blk * p_tile
    pad = p_pad - P

    out_dtype = pillar_features.dtype

    coords = coords.astype(jnp.int32)
    gidx = (coords[:, 0] * S + coords[:, 1] * (ny * nx)
            + coords[:, 2] * nx + coords[:, 3])
    order = jnp.argsort(gidx)
    gidx_sorted = gidx[order]

    sentinel = batch_size * S               # never equals any valid column index
    gidx_pad = jnp.pad(gidx_sorted, (0, pad),
                       constant_values=sentinel).reshape(p_pad, 1)

    pf_sorted = jnp.take(pillar_features, order, axis=0).astype(mxu_dtype)
    # Pre-transposed (C_in+1, p_pad): standard (M,K)x(K,N) MXU orientation; last row = ones.
    pfT_aug = jnp.pad(
        jnp.concatenate([pf_sorted.T, jnp.ones((1, P), mxu_dtype)], axis=0),
        ((0, 0), (0, pad)))

    # Per-tile pillar runs [start, end) in the sorted order.
    edges = jnp.arange(n_tiles + 1, dtype=jnp.int32) * tile_s
    bounds = jnp.searchsorted(gidx_sorted, edges, side='left').astype(jnp.int32)
    starts_all = bounds[:-1]
    ends_all = bounds[1:]
    counts_all = ends_all - starts_all

    # Static-size list of non-empty tiles, padded by repeating the last valid id.
    max_ne = max(1, min(n_tiles, P))
    (ne_idx,) = jnp.where(counts_all > 0, size=max_ne, fill_value=0)
    num_ne = jnp.sum((counts_all > 0).astype(jnp.int32))
    last_valid = ne_idx[jnp.maximum(num_ne - 1, 0)]
    gtile = jnp.where(jnp.arange(max_ne) < num_ne, ne_idx, last_valid).astype(jnp.int32)

    starts = starts_all[gtile]
    ends = ends_all[gtile]
    slab0_tbl = jnp.minimum(starts // p_tile, n_blk - 2).astype(jnp.int32)
    needsb_tbl = (ends > (slab0_tbl + 1) * p_tile).astype(jnp.int32)
    tile_b_tbl = (gtile // n_st).astype(jnp.int32)
    tile_t_tbl = (gtile % n_st).astype(jnp.int32)
    colbase_tbl = (gtile * tile_s).astype(jnp.int32)

    # Zero background produced outside the kernel; it becomes the output buffer via
    # input_output_aliases, so tiles never visited by the grid stay exactly zero.
    bg_feat = jnp.zeros((batch_size, c_in, S), out_dtype)
    bg_mask = jnp.zeros((batch_size, 1, S), jnp.int32)

    def _pf_lo(i, tb, tt, cb, s0, nb): return (0, s0[i])
    def _pf_hi(i, tb, tt, cb, s0, nb): return (0, s0[i] + 1)
    def _gx_lo(i, tb, tt, cb, s0, nb): return (s0[i], 0)
    def _gx_hi(i, tb, tt, cb, s0, nb): return (s0[i] + 1, 0)
    def _out_map(i, tb, tt, cb, s0, nb): return (tb[i], 0, tt[i])

    feats, mask_i32 = pl.pallas_call(
        _scatter_kernel,
        out_shape=(
            jax.ShapeDtypeStruct((batch_size, c_in, S), out_dtype),
            jax.ShapeDtypeStruct((batch_size, 1, S), jnp.int32),
        ),
        grid_spec=pltpu.PrefetchScalarGridSpec(
            num_scalar_prefetch=5,
            grid=(max_ne,),
            in_specs=[
                pl.BlockSpec((c_in + 1, p_tile), _pf_lo),    # pillar slab 0 (transposed)
                pl.BlockSpec((p_tile, 1), _gx_lo),           # gidx slab 0
                pl.BlockSpec((c_in + 1, p_tile), _pf_hi),    # pillar slab 1
                pl.BlockSpec((p_tile, 1), _gx_hi),           # gidx slab 1
                pl.BlockSpec((1, c_in, tile_s), _out_map),   # aliased zero background (feat)
                pl.BlockSpec((1, 1, tile_s), _out_map),      # aliased zero background (mask)
            ],
            out_specs=[
                pl.BlockSpec((1, c_in, tile_s), _out_map),
                pl.BlockSpec((1, 1, tile_s), _out_map),
            ],
            scratch_shapes=[pltpu.VMEM((c_in + 1, tile_s), jnp.float32)],
        ),
        compiler_params=pltpu.CompilerParams(
            dimension_semantics=("parallel",)),
        # Operand indices include the 5 scalar-prefetch tables: bg_feat=9, bg_mask=10.
        input_output_aliases={9: 0, 10: 1},
    )(tile_b_tbl, tile_t_tbl, colbase_tbl, slab0_tbl, needsb_tbl,
      pfT_aug, gidx_pad, pfT_aug, gidx_pad, bg_feat, bg_mask)

    # Same contiguous reinterpretation as torch .view():
    # (B, C_in, nz*ny*nx) -> (B, C_in*nz, ny, nx)
    batch_spatial_features = feats.reshape(batch_size, c_in * nz, ny, nx)
    batch_spatial_masks = mask_i32.reshape(batch_size, S) > 0
    return batch_spatial_features, batch_spatial_masks


if __name__ == "__main__":
    key = jax.random.PRNGKey(0)
    nx, ny, nz = 16, 16, 2          # input_shape
    num_bev_features = 8            # -> C_in = 4
    c_in = num_bev_features // nz
    B, P = 2, 24
    S = nz * ny * nx

    k1, k2 = jax.random.split(key)
    pillar_features = jax.random.normal(k1, (P, c_in), dtype=jnp.float32)

    # Unique (batch, z, y, x) voxel coords.
    flat = jax.random.choice(k2, B * S, shape=(P,), replace=False)
    b_idx = flat // S
    rem = flat % S
    z_idx = rem // (ny * nx)
    rem2 = rem % (ny * nx)
    y_idx = rem2 // nx
    x_idx = rem2 % nx
    coords = jnp.stack([b_idx, z_idx, y_idx, x_idx], axis=1).astype(jnp.int32)

    feats, masks = pointpillar_scatter3d(
        pillar_features, coords, (nx, ny, nz), num_bev_features, batch_size=B)
    jax.block_until_ready(feats)
    jax.block_until_ready(masks)

    # Pure-numpy reference of the PyTorch forward.  Features are bf16-rounded because the
    # kernel uses bf16 MXU operands (mxu_dtype default); the scatter itself is exact.
    pf = np.asarray(jnp.asarray(pillar_features, jnp.bfloat16).astype(jnp.float32))
    co = np.asarray(coords)
    ref_feats = np.zeros((B, c_in, S), np.float32)
    ref_mask = np.zeros((B, S), bool)
    for p in range(P):
        bb, zz, yy, xx = co[p]
        f = zz * ny * nx + yy * nx + xx
        ref_feats[bb, :, f] = pf[p]
        ref_mask[bb, f] = True
    ref_feats = ref_feats.reshape(B, c_in * nz, ny, nx)

    assert feats.shape == (B, num_bev_features, ny, nx)
    assert masks.shape == (B, S) and masks.dtype == jnp.bool_
    assert np.allclose(np.asarray(feats), ref_feats, atol=1e-6), "feature mismatch"
    assert np.array_equal(np.asarray(masks), ref_mask), "mask mismatch"
    print("KERNEL_OK")
</pallas_src>

<mosaic_0001>
module attributes {stable_mosaic.version = 11 : i64} {
  func.func @_scatter_kernel(%arg0: i32, %arg1: memref<2xi32, #tpu.memory_space<smem>>, %arg2: memref<2xi32, #tpu.memory_space<smem>>, %arg3: memref<2xi32, #tpu.memory_space<smem>>, %arg4: memref<2xi32, #tpu.memory_space<smem>>, %arg5: memref<2xi32, #tpu.memory_space<smem>>, %arg6: memref<5x512xbf16, #tpu.memory_space<vmem>>, %arg7: memref<512x1xi32, #tpu.memory_space<vmem>>, %arg8: memref<5x512xbf16, #tpu.memory_space<vmem>>, %arg9: memref<512x1xi32, #tpu.memory_space<vmem>>, %arg10: memref<1x4x512xf32, #tpu.memory_space<vmem>>, %arg11: memref<1x1x512xi32, #tpu.memory_space<vmem>>, %arg12: memref<1x4x512xf32, #tpu.memory_space<vmem>>, %arg13: memref<1x1x512xi32, #tpu.memory_space<vmem>>, %arg14: memref<5x512xf32, #tpu.memory_space<vmem>>) attributes {dimension_semantics = [#tpu.dimension_semantics<parallel>], iteration_bounds = array<i64: 2>, scalar_prefetch = 5 : i64, scratch_operands = 1 : i64, tpu.core_type = #tpu.core_type<tc>, window_params = [{transform_indices = @transform_0, window_bounds = array<i64: 5, 512>}, {transform_indices = @transform_1, window_bounds = array<i64: 512, 1>}, {transform_indices = @transform_2, window_bounds = array<i64: 5, 512>}, {transform_indices = @transform_3, window_bounds = array<i64: 512, 1>}, {transform_indices = @transform_4, window_bounds = array<i64: 1, 4, 512>}, {transform_indices = @transform_5, window_bounds = array<i64: 1, 1, 512>}, {transform_indices = @transform_6, window_bounds = array<i64: 1, 4, 512>}, {transform_indices = @transform_7, window_bounds = array<i64: 1, 1, 512>}]} {
    %0 = tpu.iota {dimensions = array<i32: 1>} : vector<1x512xi32>
    %1 = arith.index_cast %arg0 : i32 to index
    %2 = memref.load %arg3[%1] : memref<2xi32, #tpu.memory_space<smem>>
    %3 = vector.broadcast %2 : i32 to vector<1x512xi32>
    %4 = arith.addi %0, %3 : vector<1x512xi32>
    %c0 = arith.constant 0 : index
    %c0_0 = arith.constant 0 : index
    %5 = vector.load %arg7[%c0, %c0_0] : memref<512x1xi32, #tpu.memory_space<vmem>>, vector<512x1xi32>
    %6 = vector.broadcast %5 : vector<512x1xi32> to vector<512x512xi32>
    %7 = vector.broadcast %4 : vector<1x512xi32> to vector<512x512xi32>
    %8 = arith.cmpi eq, %6, %7 : vector<512x512xi32>
    %9 = arith.extui %8 : vector<512x512xi1> to vector<512x512xi32>
    %10 = arith.sitofp %9 : vector<512x512xi32> to vector<512x512xf32>
    %11 = arith.truncf %10 : vector<512x512xf32> to vector<512x512xbf16>
    %c0_1 = arith.constant 0 : index
    %c0_2 = arith.constant 0 : index
    %12 = vector.load %arg6[%c0_1, %c0_2] : memref<5x512xbf16, #tpu.memory_space<vmem>>, vector<5x512xbf16>
    %cst = arith.constant dense<0.000000e+00> : vector<5x512xf32>
    %13 = tpu.matmul %12, %11, %cst {dimension_numbers = #tpu.dot_dimension_numbers<[1], [0], [0], [1], [0, 0, 1, 1], [], []>} : vector<5x512xbf16>, vector<512x512xbf16>, vector<5x512xf32> -> vector<5x512xf32>
    %c0_3 = arith.constant 0 : index
    %c0_4 = arith.constant 0 : index
    %14 = vector.load %arg14[%c0_3, %c0_4] : memref<5x512xf32, #tpu.memory_space<vmem>>, vector<5x512xf32>
    tpu.vector_store %arg14[%c0_3, %c0_4], %13 {strides = array<i32>} : memref<5x512xf32, #tpu.memory_space<vmem>>, vector<5x512xf32>,
    %15 = arith.index_cast %arg0 : i32 to index
    %16 = memref.load %arg5[%15] : memref<2xi32, #tpu.memory_space<smem>>
    %c0_i32 = arith.constant 0 : i32
    %17 = arith.cmpi ne, %16, %c0_i32 : i32
    %18 = arith.extui %17 : i1 to i32
    %c0_i32_5 = arith.constant 0 : i32
    %19 = arith.cmpi ne, %18, %c0_i32_5 : i32
    scf.if %19 {
      %c0_15 = arith.constant 0 : index
      %c0_16 = arith.constant 0 : index
      %30 = vector.load %arg9[%c0_15, %c0_16] : memref<512x1xi32, #tpu.memory_space<vmem>>, vector<512x1xi32>
      %31 = vector.broadcast %30 : vector<512x1xi32> to vector<512x512xi32>
      %32 = vector.broadcast %4 : vector<1x512xi32> to vector<512x512xi32>
      %33 = arith.cmpi eq, %31, %32 : vector<512x512xi32>
      %34 = arith.extui %33 : vector<512x512xi1> to vector<512x512xi32>
      %35 = arith.sitofp %34 : vector<512x512xi32> to vector<512x512xf32>
      %36 = arith.truncf %35 : vector<512x512xf32> to vector<512x512xbf16>
      %c0_17 = arith.constant 0 : index
      %c0_18 = arith.constant 0 : index
      %37 = vector.load %arg14[%c0_17, %c0_18] : memref<5x512xf32, #tpu.memory_space<vmem>>, vector<5x512xf32>
      %c0_19 = arith.constant 0 : index
      %c0_20 = arith.constant 0 : index
      %38 = vector.load %arg8[%c0_19, %c0_20] : memref<5x512xbf16, #tpu.memory_space<vmem>>, vector<5x512xbf16>
      %cst_21 = arith.constant dense<0.000000e+00> : vector<5x512xf32>
      %39 = tpu.matmul %38, %36, %cst_21 {dimension_numbers = #tpu.dot_dimension_numbers<[1], [0], [0], [1], [0, 0, 1, 1], [], []>} : vector<5x512xbf16>, vector<512x512xbf16>, vector<5x512xf32> -> vector<5x512xf32>
      %40 = arith.addf %37, %39 : vector<5x512xf32>
      %c0_22 = arith.constant 0 : index
      %c0_23 = arith.constant 0 : index
      %41 = vector.load %arg14[%c0_22, %c0_23] : memref<5x512xf32, #tpu.memory_space<vmem>>, vector<5x512xf32>
      tpu.vector_store %arg14[%c0_22, %c0_23], %40 {strides = array<i32>} : memref<5x512xf32, #tpu.memory_space<vmem>>, vector<5x512xf32>,
    } else {
    }
    %c0_6 = arith.constant 0 : index
    %c0_7 = arith.constant 0 : index
    %20 = vector.load %arg14[%c0_6, %c0_7] : memref<5x512xf32, #tpu.memory_space<vmem>>, vector<5x512xf32>
    %21 = vector.extract_strided_slice %20 {offsets = [0, 0], sizes = [4, 512], strides = [1, 1]} : vector<5x512xf32> to vector<4x512xf32>
    %22 = vector.shape_cast %21 : vector<4x512xf32> to vector<1x4x512xf32>
    %c0_8 = arith.constant 0 : index
    %c0_9 = arith.constant 0 : index
    %c0_10 = arith.constant 0 : index
    %23 = vector.load %arg12[%c0_8, %c0_9, %c0_10] : memref<1x4x512xf32, #tpu.memory_space<vmem>>, vector<1x4x512xf32>
    tpu.vector_store %arg12[%c0_8, %c0_9, %c0_10], %22 {strides = array<i32>} : memref<1x4x512xf32, #tpu.memory_space<vmem>>, vector<1x4x512xf32>,
    %24 = vector.extract_strided_slice %20 {offsets = [4, 0], sizes = [1, 512], strides = [1, 1]} : vector<5x512xf32> to vector<1x512xf32>
    %25 = vector.shape_cast %24 : vector<1x512xf32> to vector<1x1x512xf32>
    %cst_11 = arith.constant 0.000000e+00 : f32
    %26 = vector.broadcast %cst_11 : f32 to vector<1x1x512xf32>
    %27 = arith.cmpf ogt, %25, %26 : vector<1x1x512xf32>
    %28 = arith.extui %27 : vector<1x1x512xi1> to vector<1x1x512xi32>
    %c0_12 = arith.constant 0 : index
    %c0_13 = arith.constant 0 : index
    %c0_14 = arith.constant 0 : index
    %29 = vector.load %arg13[%c0_12, %c0_13, %c0_14] : memref<1x1x512xi32, #tpu.memory_space<vmem>>, vector<1x1x512xi32>
    tpu.vector_store %arg13[%c0_12, %c0_13, %c0_14], %28 {strides = array<i32>} : memref<1x1x512xi32, #tpu.memory_space<vmem>>, vector<1x1x512xi32>,
    return
  }
  func.func @transform_0(%arg0: i32, %arg1: memref<2xi32, #tpu.memory_space<smem>>, %arg2: memref<2xi32, #tpu.memory_space<smem>>, %arg3: memref<2xi32, #tpu.memory_space<smem>>, %arg4: memref<2xi32, #tpu.memory_space<smem>>, %arg5: memref<2xi32, #tpu.memory_space<smem>>) -> (i32, i32) {
    %0 = arith.index_cast %arg0 : i32 to index
    %1 = memref.load %arg4[%0] : memref<2xi32, #tpu.memory_space<smem>>
    %c0_i32 = arith.constant 0 : i32
    %c0_i32_0 = arith.constant 0 : i32
    return %c0_i32, %1 : i32, i32
  }
  func.func @transform_1(%arg0: i32, %arg1: memref<2xi32, #tpu.memory_space<smem>>, %arg2: memref<2xi32, #tpu.memory_space<smem>>, %arg3: memref<2xi32, #tpu.memory_space<smem>>, %arg4: memref<2xi32, #tpu.memory_space<smem>>, %arg5: memref<2xi32, #tpu.memory_space<smem>>) -> (i32, i32) {
    %0 = arith.index_cast %arg0 : i32 to index
    %1 = memref.load %arg4[%0] : memref<2xi32, #tpu.memory_space<smem>>
    %c0_i32 = arith.constant 0 : i32
    %c0_i32_0 = arith.constant 0 : i32
    return %1, %c0_i32 : i32, i32
  }
  func.func @transform_2(%arg0: i32, %arg1: memref<2xi32, #tpu.memory_space<smem>>, %arg2: memref<2xi32, #tpu.memory_space<smem>>, %arg3: memref<2xi32, #tpu.memory_space<smem>>, %arg4: memref<2xi32, #tpu.memory_space<smem>>, %arg5: memref<2xi32, #tpu.memory_space<smem>>) -> (i32, i32) {
    %0 = arith.index_cast %arg0 : i32 to index
    %1 = memref.load %arg4[%0] : memref<2xi32, #tpu.memory_space<smem>>
    %c1_i32 = arith.constant 1 : i32
    %2 = arith.addi %1, %c1_i32 : i32
    %c0_i32 = arith.constant 0 : i32
    %c0_i32_0 = arith.constant 0 : i32
    return %c0_i32, %2 : i32, i32
  }
  func.func @transform_3(%arg0: i32, %arg1: memref<2xi32, #tpu.memory_space<smem>>, %arg2: memref<2xi32, #tpu.memory_space<smem>>, %arg3: memref<2xi32, #tpu.memory_space<smem>>, %arg4: memref<2xi32, #tpu.memory_space<smem>>, %arg5: memref<2xi32, #tpu.memory_space<smem>>) -> (i32, i32) {
    %0 = arith.index_cast %arg0 : i32 to index
    %1 = memref.load %arg4[%0] : memref<2xi32, #tpu.memory_space<smem>>
    %c1_i32 = arith.constant 1 : i32
    %2 = arith.addi %1, %c1_i32 : i32
    %c0_i32 = arith.constant 0 : i32
    %c0_i32_0 = arith.constant 0 : i32
    return %2, %c0_i32 : i32, i32
  }
  func.func @transform_4(%arg0: i32, %arg1: memref<2xi32, #tpu.memory_space<smem>>, %arg2: memref<2xi32, #tpu.memory_space<smem>>, %arg3: memref<2xi32, #tpu.memory_space<smem>>, %arg4: memref<2xi32, #tpu.memory_space<smem>>, %arg5: memref<2xi32, #tpu.memory_space<smem>>) -> (i32, i32, i32) {
    %0 = arith.index_cast %arg0 : i32 to index
    %1 = memref.load %arg1[%0] : memref<2xi32, #tpu.memory_space<smem>>
    %2 = arith.index_cast %arg0 : i32 to index
    %3 = memref.load %arg2[%2] : memref<2xi32, #tpu.memory_space<smem>>
    %c0_i32 = arith.constant 0 : i32
    %c0_i32_0 = arith.constant 0 : i32
    return %1, %c0_i32, %3 : i32, i32, i32
  }
  func.func @transform_5(%arg0: i32, %arg1: memref<2xi32, #tpu.memory_space<smem>>, %arg2: memref<2xi32, #tpu.memory_space<smem>>, %arg3: memref<2xi32, #tpu.memory_space<smem>>, %arg4: memref<2xi32, #tpu.memory_space<smem>>, %arg5: memref<2xi32, #tpu.memory_space<smem>>) -> (i32, i32, i32) {
    %0 = arith.index_cast %arg0 : i32 to index
    %1 = memref.load %arg1[%0] : memref<2xi32, #tpu.memory_space<smem>>
    %2 = arith.index_cast %arg0 : i32 to index
    %3 = memref.load %arg2[%2] : memref<2xi32, #tpu.memory_space<smem>>
    %c0_i32 = arith.constant 0 : i32
    %c0_i32_0 = arith.constant 0 : i32
    return %1, %c0_i32, %3 : i32, i32, i32
  }
  func.func @transform_6(%arg0: i32, %arg1: memref<2xi32, #tpu.memory_space<smem>>, %arg2: memref<2xi32, #tpu.memory_space<smem>>, %arg3: memref<2xi32, #tpu.memory_space<smem>>, %arg4: memref<2xi32, #tpu.memory_space<smem>>, %arg5: memref<2xi32, #tpu.memory_space<smem>>) -> (i32, i32, i32) {
    %0 = arith.index_cast %arg0 : i32 to index
    %1 = memref.load %arg1[%0] : memref<2xi32, #tpu.memory_space<smem>>
    %2 = arith.index_cast %arg0 : i32 to index
    %3 = memref.load %arg2[%2] : memref<2xi32, #tpu.memory_space<smem>>
    %c0_i32 = arith.constant 0 : i32
    %c0_i32_0 = arith.constant 0 : i32
    return %1, %c0_i32, %3 : i32, i32, i32
  }
  func.func @transform_7(%arg0: i32, %arg1: memref<2xi32, #tpu.memory_space<smem>>, %arg2: memref<2xi32, #tpu.memory_space<smem>>, %arg3: memref<2xi32, #tpu.memory_space<smem>>, %arg4: memref<2xi32, #tpu.memory_space<smem>>, %arg5: memref<2xi32, #tpu.memory_space<smem>>) -> (i32, i32, i32) {
    %0 = arith.index_cast %arg0 : i32 to index
    %1 = memref.load %arg1[%0] : memref<2xi32, #tpu.memory_space<smem>>
    %2 = arith.index_cast %arg0 : i32 to index
    %3 = memref.load %arg2[%2] : memref<2xi32, #tpu.memory_space<smem>>
    %c0_i32 = arith.constant 0 : i32
    %c0_i32_0 = arith.constant 0 : i32
    return %1, %c0_i32, %3 : i32, i32, i32
  }
}

</mosaic_0001>

<llo_original>
// kernel: tpu_custom_call.1
$region0: #{tpu_custom_call.1}
  #allocation0 [shape = 'u32[]', space=smem, size = 0x4, offset = 0x4, fixed_abs, tag = 'smem constant byte address 0x4 - core index']
  #allocation1 [shape = 'u32[144,128]{1,0:T(1,128)}', space=vmem, size = 0x12000, scoped, tag = 'internal scratch']
  #allocation2 [shape = 'f32[5,512]{1,0:T(8,128)}', space=vmem, size = 0x4000, scoped, tag = 'scratch operand']
  #allocation3 [shape = 's32[1]{0}', space=sflag, size = 0x4, scoped, tag = 'scoped memory for tpu_custom_call.1']
  #allocation4 [shape = 'u8[512]{0}', space=smem, size = 0x200, scoped, tag = 'prefetched SMEM operand 0']
  #allocation5 [shape = 'u8[512]{0}', space=smem, size = 0x200, scoped, tag = 'prefetched SMEM operand 1']
  #allocation6 [shape = 'u8[512]{0}', space=smem, size = 0x200, scoped, tag = 'prefetched SMEM operand 2']
  #allocation7 [shape = 'u8[512]{0}', space=smem, size = 0x200, scoped, tag = 'prefetched SMEM operand 3']
  #allocation8 [shape = 'u8[512]{0}', space=smem, size = 0x200, scoped, tag = 'prefetched SMEM operand 4']
  %s0 = inlined_call_operand.vmem [shape: s32[2], index: 0, kind: input, shape index: {}]
  %s1 = inlined_call_operand.vmem [shape: s32[2], index: 1, kind: input, shape index: {}]
  %s2 = inlined_call_operand.vmem [shape: s32[2], index: 2, kind: input, shape index: {}]
  %s3 = inlined_call_operand.vmem [shape: s32[2], index: 3, kind: input, shape index: {}]
  %s4 = inlined_call_operand.vmem [shape: s32[2], index: 4, kind: input, shape index: {}]
  %s5 = inlined_call_operand.vmem [shape: bf16[5,1024], index: 5, kind: input, shape index: {}]
  %s6 = inlined_call_operand.vmem [shape: s32[1024,1], index: 6, kind: input, shape index: {}]
  %s7 = inlined_call_operand.vmem [shape: bf16[5,1024], index: 7, kind: input, shape index: {}]
  %s8 = inlined_call_operand.vmem [shape: s32[1024,1], index: 8, kind: input, shape index: {}]
  %s9 = inlined_call_operand.hbm [shape: f32[2,4,512], index: 9, kind: input, shape index: {}, may-alias: {9,11}]
  %s10 = inlined_call_operand.hbm [shape: s32[2,1,512], index: 10, kind: input, shape index: {}, may-alias: {10,12}]
  %s11 = inlined_call_operand.hbm [shape: f32[2,4,512], index: 11, kind: output, shape index: {0}, may-alias: {9,11}]
  %s12 = inlined_call_operand.hbm [shape: s32[2,1,512], index: 12, kind: output, shape index: {1}, may-alias: {10,12}]
  %13 = xla_tuple %s11, %s12
  %s14 = sld [smem:[#allocation0]]
  $region77: #{tpu_custom_call.1} parent=0
    _
  %s16 = ssub.s32 1, %s14
  %s17 = scalar_select 0, %s16, %s14
  %s18 = sshll.u32 %s0, 4
  %s19 = int_to_ptr.vmem [resolvable:$true] %s18
  %21 = dma.vmem_to_smem %s19, 16, [#allocation4], [#allocation3]
  %s22 = sshll.u32 %s1, 4
  %s23 = int_to_ptr.vmem [resolvable:$true] %s22
  %25 = dma.vmem_to_smem %s23, 16, [#allocation5], [#allocation3]
  %s26 = sshll.u32 %s2, 4
  %s27 = int_to_ptr.vmem [resolvable:$true] %s26
  %29 = dma.vmem_to_smem %s27, 16, [#allocation6], [#allocation3]
  %s30 = sshll.u32 %s3, 4
  %s31 = int_to_ptr.vmem [resolvable:$true] %s30
  %33 = dma.vmem_to_smem %s31, 16, [#allocation7], [#allocation3]
  %s34 = sshll.u32 %s4, 4
  %s35 = int_to_ptr.vmem [resolvable:$true] %s34
  %37 = dma.vmem_to_smem %s35, 16, [#allocation8], [#allocation3]
  %38 = dma.done [#allocation3], 80
  %39 = sfence
  $region1: #{tpu_custom_call.1} parent=0
    #allocation9 [shape = 'u8[16384]{0}', space=vmem, size = 0x4000, scoped, tag = 'input window, operand 9']
    #allocation10 [shape = 's32[2]{0}', space=sflag, size = 0x8, scoped, tag = 'scoped memory for tpu_custom_call.1']
    #allocation11 [shape = 's32[2]{0}', space=sflag, size = 0x8, scoped, tag = 'scoped memory for tpu_custom_call.1']
    #allocation12 [shape = 'u8[4096]{0}', space=vmem, size = 0x1000, scoped, tag = 'input window, operand 10']
    #allocation13 [shape = 's32[2]{0}', space=sflag, size = 0x8, scoped, tag = 'scoped memory for tpu_custom_call.1']
    #allocation14 [shape = 'u8[16384]{0}', space=vmem, size = 0x4000, scoped, tag = 'output window, operand 0']
    #allocation15 [shape = 'u8[4096]{0}', space=vmem, size = 0x1000, scoped, tag = 'output window, operand 1']
    #allocation16 [shape = 's32[2]{0}', space=sflag, size = 0x8, scoped, tag = 'scoped memory for tpu_custom_call.1']
    %40 = vsyncpa [#allocation10], 0
    %s41 = scalar_lea.sflag [#allocation10], 1
    %42 = vsyncpa %s41, 0
    %43 = vsyncpa [#allocation13], 0
    %s44 = scalar_lea.sflag [#allocation13], 1
    %45 = vsyncpa %s44, 0
    %46 = vsyncpa [#allocation11], 0
    %s47 = scalar_lea.sflag [#allocation11], 1
    %48 = vsyncpa %s47, 0
    %49 = vsyncpa [#allocation16], 0
    %s50 = scalar_lea.sflag [#allocation16], 1
    %51 = vsyncpa %s50, 0
    loop: start=0, step=1, limit=4
    $region2: #{tpu_custom_call.1} parent=1 // loop_pre_header
      _
    $region3: #{tpu_custom_call.1} parent=1 // loop_header
      %s53 = sphi 0, %s57
      %p54 = scmp.ge.s32.totalorder %s53, 4
      %s65 = sphi 0, %s67
      %s68 = sphi 0, %s65
      %s69 = sphi 0, %s68
      %s85 = sphi 0, %s69
      %s93 = sphi 0, %s95
      %s96 = sphi 0, %s93
      %s97 = sphi 0, %s96
      %s113 = sphi 0, %s97
      %s123 = sphi 0, %s125
      %s126 = sphi 0, %s123
      %s127 = sphi 0, %s126
      %s143 = sphi 0, %s127
      %s153 = sphi 0, %s155
      %s156 = sphi 0, %s153
      %s157 = sphi 0, %s156
      %s173 = sphi 0, %s157
      %s185 = sphi 0, %s187
      %s188 = sphi 0, %s185
      %s189 = sphi 0, %s188
      %s205 = sphi 0, %s189
      %s217 = sphi 0, %s219
      %s220 = sphi 0, %s217
      %s221 = sphi 0, %s220
      %s237 = sphi 0, %s221
      %s249 = sphi 0, %s251
      %s252 = sphi 0, %s249
      %s253 = sphi 0, %s252
      %s269 = sphi 0, %s253
      %s281 = sphi 0, %s283
      %s284 = sphi 0, %s281
      %s285 = sphi 0, %s284
      %s301 = sphi 0, %s285
    $region4: #{tpu_custom_call.1} parent=1 // loop_header_branch
      %56 = sbr.rel (%p54) target = $region8
    $region5: #{tpu_custom_call.1} parent=1 // loop_body
      %s58 = ssub.s32 %s53, 1
      %s59 = ssub.s32 %s53, 2
      %s60 = sadd.s32 %s53, 1
      %s61 = sld [smem:[#allocation7 + %s53]]
      %s62 = sld [smem:[#allocation7 + %s60]]
      %s63 = ssub.s32 %s61, %s62
      %p64 = scmp.eq.s32.totalorder %s63, 0
      %s66 = sadd.s32 %s65, 1
      %s67 = scalar_select %p64, %s65, %s66
      %p70 = pneg %p64
      %p71 = scmp.eq.s32.totalorder %s53, 1
      %p72 = por %p70, %p71
      %p73 = scmp.ne.s32.totalorder %s65, %s68
      %p74 = scmp.eq.s32.totalorder %s53, 0
      %p75 = por %p73, %p74
      %p76 = scmp.ne.s32.totalorder %s65, %s68
      %p77 = scmp.eq.s32.totalorder %s58, 1
      %p78 = por %p76, %p77
      %p79 = scmp.ne.s32.totalorder %s68, %s69
      %p80 = scmp.eq.s32.totalorder %s58, 0
      %p81 = por %p79, %p80
      %p82 = scmp.ne.s32.totalorder %s68, %s69
      %p83 = scmp.eq.s32.totalorder %s59, 1
      %p84 = por %p82, %p83
      %p86 = scmp.ne.s32.totalorder %s69, %s85
      %p87 = scmp.eq.s32.totalorder %s59, 0
      %p88 = por %p86, %p87
      %s89 = sld [smem:[#allocation7 + %s53]]
      %s90 = sld [smem:[#allocation7 + %s60]]
      %s91 = ssub.s32 %s89, %s90
      %p92 = scmp.eq.s32.totalorder %s91, 0
      %s94 = sadd.s32 %s93, 1
      %s95 = scalar_select %p92, %s93, %s94
      %p98 = pneg %p92
      %p99 = scmp.eq.s32.totalorder %s53, 1
      %p100 = por %p98, %p99
      %p101 = scmp.ne.s32.totalorder %s93, %s96
      %p102 = scmp.eq.s32.totalorder %s53, 0
      %p103 = por %p101, %p102
      %p104 = scmp.ne.s32.totalorder %s93, %s96
      %p105 = scmp.eq.s32.totalorder %s58, 1
      %p106 = por %p104, %p105
      %p107 = scmp.ne.s32.totalorder %s96, %s97
      %p108 = scmp.eq.s32.totalorder %s58, 0
      %p109 = por %p107, %p108
      %p110 = scmp.ne.s32.totalorder %s96, %s97
      %p111 = scmp.eq.s32.totalorder %s59, 1
      %p112 = por %p110, %p111
      %p114 = scmp.ne.s32.totalorder %s97, %s113
      %p115 = scmp.eq.s32.totalorder %s59, 0
      %p116 = por %p114, %p115
      %s117 = sld [smem:[#allocation7 + %s53]]
      %s118 = sadd.s32 %s117, 1
      %s119 = sld [smem:[#allocation7 + %s60]]
      %s120 = sadd.s32 %s119, 1
      %s121 = ssub.s32 %s118, %s120
      %p122 = scmp.eq.s32.totalorder %s121, 0
      %s124 = sadd.s32 %s123, 1
      %s125 = scalar_select %p122, %s123, %s124
      %p128 = pneg %p122
      %p129 = scmp.eq.s32.totalorder %s53, 1
      %p130 = por %p128, %p129
      %p131 = scmp.ne.s32.totalorder %s123, %s126
      %p132 = scmp.eq.s32.totalorder %s53, 0
      %p133 = por %p131, %p132
      %p134 = scmp.ne.s32.totalorder %s123, %s126
      %p135 = scmp.eq.s32.totalorder %s58, 1
      %p136 = por %p134, %p135
      %p137 = scmp.ne.s32.totalorder %s126, %s127
      %p138 = scmp.eq.s32.totalorder %s58, 0
      %p139 = por %p137, %p138
      %p140 = scmp.ne.s32.totalorder %s126, %s127
      %p141 = scmp.eq.s32.totalorder %s59, 1
      %p142 = por %p140, %p141
      %p144 = scmp.ne.s32.totalorder %s127, %s143
      %p145 = scmp.eq.s32.totalorder %s59, 0
      %p146 = por %p144, %p145
      %s147 = sld [smem:[#allocation7 + %s53]]
      %s148 = sadd.s32 %s147, 1
      %s149 = sld [smem:[#allocation7 + %s60]]
      %s150 = sadd.s32 %s149, 1
      %s151 = ssub.s32 %s148, %s150
      %p152 = scmp.eq.s32.totalorder %s151, 0
      %s154 = sadd.s32 %s153, 1
      %s155 = scalar_select %p152, %s153, %s154
      %p158 = pneg %p152
      %p159 = scmp.eq.s32.totalorder %s53, 1
      %p160 = por %p158, %p159
      %p161 = scmp.ne.s32.totalorder %s153, %s156
      %p162 = scmp.eq.s32.totalorder %s53, 0
      %p163 = por %p161, %p162
      %p164 = scmp.ne.s32.totalorder %s153, %s156
      %p165 = scmp.eq.s32.totalorder %s58, 1
      %p166 = por %p164, %p165
      %p167 = scmp.ne.s32.totalorder %s156, %s157
      %p168 = scmp.eq.s32.totalorder %s58, 0
      %p169 = por %p167, %p168
      %p170 = scmp.ne.s32.totalorder %s156, %s157
      %p171 = scmp.eq.s32.totalorder %s59, 1
      %p172 = por %p170, %p171
      %p174 = scmp.ne.s32.totalorder %s157, %s173
      %p175 = scmp.eq.s32.totalorder %s59, 0
      %p176 = por %p174, %p175
      %s177 = sld [smem:[#allocation4 + %s53]]
      %s178 = sld [smem:[#allocation5 + %s53]]
      %s179 = sld [smem:[#allocation4 + %s60]]
      %s180 = sld [smem:[#allocation5 + %s60]]
      %s181 = ssub.s32 %s177, %s179
      %s182 = ssub.s32 %s178, %s180
      %s183 = sor.u32 %s181, %s182
      %p184 = scmp.eq.s32.totalorder %s183, 0
      %s186 = sadd.s32 %s185, 1
      %s187 = scalar_select %p184, %s185, %s186
      %p190 = pneg %p184
      %p191 = scmp.eq.s32.totalorder %s53, 1
      %p192 = por %p190, %p191
      %p193 = scmp.ne.s32.totalorder %s185, %s188
      %p194 = scmp.eq.s32.totalorder %s53, 0
      %p195 = por %p193, %p194
      %p196 = scmp.ne.s32.totalorder %s185, %s188
      %p197 = scmp.eq.s32.totalorder %s58, 1
      %p198 = por %p196, %p197
      %p199 = scmp.ne.s32.totalorder %s188, %s189
      %p200 = scmp.eq.s32.totalorder %s58, 0
      %p201 = por %p199, %p200
      %p202 = scmp.ne.s32.totalorder %s188, %s189
      %p203 = scmp.eq.s32.totalorder %s59, 1
      %p204 = por %p202, %p203
      %p206 = scmp.ne.s32.totalorder %s189, %s205
      %p207 = scmp.eq.s32.totalorder %s59, 0
      %p208 = por %p206, %p207
      %s209 = sld [smem:[#allocation4 + %s53]]
      %s210 = sld [smem:[#allocation5 + %s53]]
      %s211 = sld [smem:[#allocation4 + %s60]]
      %s212 = sld [smem:[#allocation5 + %s60]]
      %s213 = ssub.s32 %s209, %s211
      %s214 = ssub.s32 %s210, %s212
      %s215 = sor.u32 %s213, %s214
      %p216 = scmp.eq.s32.totalorder %s215, 0
      %s218 = sadd.s32 %s217, 1
      %s219 = scalar_select %p216, %s217, %s218
      %p222 = pneg %p216
      %p223 = scmp.eq.s32.totalorder %s53, 1
      %p224 = por %p222, %p223
      %p225 = scmp.ne.s32.totalorder %s217, %s220
      %p226 = scmp.eq.s32.totalorder %s53, 0
      %p227 = por %p225, %p226
      %p228 = scmp.ne.s32.totalorder %s217, %s220
      %p229 = scmp.eq.s32.totalorder %s58, 1
      %p230 = por %p228, %p229
      %p231 = scmp.ne.s32.totalorder %s220, %s221
      %p232 = scmp.eq.s32.totalorder %s58, 0
      %p233 = por %p231, %p232
      %p234 = scmp.ne.s32.totalorder %s220, %s221
      %p235 = scmp.eq.s32.totalorder %s59, 1
      %p236 = por %p234, %p235
      %p238 = scmp.ne.s32.totalorder %s221, %s237
      %p239 = scmp.eq.s32.totalorder %s59, 0
      %p240 = por %p238, %p239
      %s241 = sld [smem:[#allocation4 + %s53]]
      %s242 = sld [smem:[#allocation5 + %s53]]
      %s243 = sld [smem:[#allocation4 + %s60]]
      %s244 = sld [smem:[#allocation5 + %s60]]
      %s245 = ssub.s32 %s241, %s243
      %s246 = ssub.s32 %s242, %s244
      %s247 = sor.u32 %s245, %s246
      %p248 = scmp.eq.s32.totalorder %s247, 0
      %s250 = sadd.s32 %s249, 1
      %s251 = scalar_select %p248, %s249, %s250
      %p254 = pneg %p248
      %p255 = scmp.eq.s32.totalorder %s53, 1
      %p256 = por %p254, %p255
      %p257 = scmp.ne.s32.totalorder %s249, %s252
      %p258 = scmp.eq.s32.totalorder %s53, 0
      %p259 = por %p257, %p258
      %p260 = scmp.ne.s32.totalorder %s249, %s252
      %p261 = scmp.eq.s32.totalorder %s58, 1
      %p262 = por %p260, %p261
      %p263 = scmp.ne.s32.totalorder %s252, %s253
      %p264 = scmp.eq.s32.totalorder %s58, 0
      %p265 = por %p263, %p264
      %p266 = scmp.ne.s32.totalorder %s252, %s253
      %p267 = scmp.eq.s32.totalorder %s59, 1
      %p268 = por %p266, %p267
      %p270 = scmp.ne.s32.totalorder %s253, %s269
      %p271 = scmp.eq.s32.totalorder %s59, 0
      %p272 = por %p270, %p271
      %s273 = sld [smem:[#allocation4 + %s53]]
      %s274 = sld [smem:[#allocation5 + %s53]]
      %s275 = sld [smem:[#allocation4 + %s60]]
      %s276 = sld [smem:[#allocation5 + %s60]]
      %s277 = ssub.s32 %s273, %s275
      %s278 = ssub.s32 %s274, %s276
      %s279 = sor.u32 %s277, %s278
      %p280 = scmp.eq.s32.totalorder %s279, 0
      %s282 = sadd.s32 %s281, 1
      %s283 = scalar_select %p280, %s281, %s282
      %p286 = pneg %p280
      %p287 = scmp.eq.s32.totalorder %s53, 1
      %p288 = por %p286, %p287
      %p289 = scmp.ne.s32.totalorder %s281, %s284
      %p290 = scmp.eq.s32.totalorder %s53, 0
      %p291 = por %p289, %p290
      %p292 = scmp.ne.s32.totalorder %s281, %s284
      %p293 = scmp.eq.s32.totalorder %s58, 1
      %p294 = por %p292, %p293
      %p295 = scmp.ne.s32.totalorder %s284, %s285
      %p296 = scmp.eq.s32.totalorder %s58, 0
      %p297 = por %p295, %p296
      %p298 = scmp.ne.s32.totalorder %s284, %s285
      %p299 = scmp.eq.s32.totalorder %s59, 1
      %p300 = por %p298, %p299
      %p302 = scmp.ne.s32.totalorder %s285, %s301
      %p303 = scmp.eq.s32.totalorder %s59, 0
      %p304 = por %p302, %p303
      %p305 = scmp.le.s32.totalorder 1, %s53
      %p306 = scmp.lt.s32.totalorder %s53, 3
      %p307 = pnand %p305, %p306
      %p308 = pneg %p307
      // Predicated region
      $region9: #{tpu_custom_call.1} parent=5 // pred_check
        _
      $region10: #{tpu_custom_call.1} parent=5 // pred_check_branch
        %310 = sbr.rel (%p307) target = $region12
      $region11: #{tpu_custom_call.1} parent=5 // pred_region
        %s311 = ssub.s32 %s53, 1
      $region12: #{tpu_custom_call.1} parent=5 // pred_fallthru
        _
      %p312 = scmp.lt.s32.totalorder %s53, 2
      // Predicated region
      $region13: #{tpu_custom_call.1} parent=5 // pred_check
        %p313 = pneg %p312
      $region14: #{tpu_custom_call.1} parent=5 // pred_check_branch
        %315 = sbr.rel (%p313) target = $region16
      $region15: #{tpu_custom_call.1} parent=5 // pred_region
        // Predicated region
        $region17: #{tpu_custom_call.1} parent=15 // pred_check
          %p316 = pneg %p75
        $region18: #{tpu_custom_call.1} parent=15 // pred_check_branch
          %318 = sbr.rel (%p316) target = $region20
        $region19: #{tpu_custom_call.1} parent=15 // pred_region
          %s319 = sld [smem:[#allocation7 + %s53]]
          %s320 = smul.u32 4, %s319
          %p321 = scmp.lt.s32.totalorder %s320, 7
          %s322 = scalar_select %p321, %s320, 7
          %s323 = smul.addr %s322, 4
          %s324 = scalar_lea.vmem %s5, %s323
          %s325 = sld [smem:[#allocation7 + %s53]]
          %s326 = smul.u32 4, %s325
        $region20: #{tpu_custom_call.1} parent=15 // pred_fallthru
          _
        // Predicated region
        $region21: #{tpu_custom_call.1} parent=15 // pred_check
          %p327 = pneg %p103
        $region22: #{tpu_custom_call.1} parent=15 // pred_check_branch
          %329 = sbr.rel (%p327) target = $region24
        $region23: #{tpu_custom_call.1} parent=15 // pred_region
          %s330 = sld [smem:[#allocation7 + %s53]]
          %s331 = smul.u32 64, %s330
          %p332 = scmp.lt.s32.totalorder %s331, 127
          %s333 = scalar_select %p332, %s331, 127
          %s334 = smul.addr %s333, 8
          %s335 = scalar_lea.vmem %s6, %s334
          %s336 = sld [smem:[#allocation7 + %s53]]
          %s337 = smul.u32 64, %s336
        $region24: #{tpu_custom_call.1} parent=15 // pred_fallthru
          _
        // Predicated region
        $region25: #{tpu_custom_call.1} parent=15 // pred_check
          %p338 = pneg %p133
        $region26: #{tpu_custom_call.1} parent=15 // pred_check_branch
          %340 = sbr.rel (%p338) target = $region28
        $region27: #{tpu_custom_call.1} parent=15 // pred_region
          %s341 = sld [smem:[#allocation7 + %s53]]
          %s342 = sadd.s32 %s341, 1
          %s343 = smul.u32 4, %s342
          %p344 = scmp.lt.s32.totalorder %s343, 7
          %s345 = scalar_select %p344, %s343, 7
          %s346 = smul.addr %s345, 4
          %s347 = scalar_lea.vmem %s7, %s346
          %s348 = sld [smem:[#allocation7 + %s53]]
          %s349 = sadd.s32 %s348, 1
          %s350 = smul.u32 4, %s349
        $region28: #{tpu_custom_call.1} parent=15 // pred_fallthru
          _
        // Predicated region
        $region29: #{tpu_custom_call.1} parent=15 // pred_check
          %p351 = pneg %p163
        $region30: #{tpu_custom_call.1} parent=15 // pred_check_branch
          %353 = sbr.rel (%p351) target = $region32
        $region31: #{tpu_custom_call.1} parent=15 // pred_region
          %s354 = sld [smem:[#allocation7 + %s53]]
          %s355 = sadd.s32 %s354, 1
          %s356 = smul.u32 64, %s355
          %p357 = scmp.lt.s32.totalorder %s356, 127
          %s358 = scalar_select %p357, %s356, 127
          %s359 = smul.addr %s358, 8
          %s360 = scalar_lea.vmem %s8, %s359
          %s361 = sld [smem:[#allocation7 + %s53]]
          %s362 = sadd.s32 %s361, 1
          %s363 = smul.u32 64, %s362
        $region32: #{tpu_custom_call.1} parent=15 // pred_fallthru
          _
        // Predicated region
        $region33: #{tpu_custom_call.1} parent=15 // pred_check
          %p364 = pneg %p195
        $region34: #{tpu_custom_call.1} parent=15 // pred_check_branch
          %366 = sbr.rel (%p364) target = $region36
        $region35: #{tpu_custom_call.1} parent=15 // pred_region
          %s367 = sand.u32 %s185, 1
          %s368 = scalar_lea.sflag [#allocation10], %s367
          %s369 = sand.u32 %s185, 1
          %s370 = smul.addr %s369, 16
          %s371 = scalar_lea.vmem [#allocation9], %s370
          %s372 = sld [smem:[#allocation4 + %s53]]
          %s373 = sld [smem:[#allocation5 + %s53]]
          %s374 = smul.u32 4, %s373
          %s376 = ssub.s32 256, 256
          %377 = vsyncadd %s368, %s376
          %s378 = smul.addr %s372, 4
          %s379 = sadd.s32 %s374, %s378
          %s380 = smul.addr %s379, 64
          %s381 = scalar_lea.hbm %s9, %s380
          %s383 = sshll.u32 %s371, 4
          %s384 = int_to_ptr.vmem [resolvable:$true] %s383
          %386 = dma.hbm_to_vmem [thread:$0]  %s381, 256, %s384, %s368
        $region36: #{tpu_custom_call.1} parent=15 // pred_fallthru
          _
        // Predicated region
        $region37: #{tpu_custom_call.1} parent=15 // pred_check
          %p387 = pneg %p227
        $region38: #{tpu_custom_call.1} parent=15 // pred_check_branch
          %389 = sbr.rel (%p387) target = $region40
        $region39: #{tpu_custom_call.1} parent=15 // pred_region
          %s390 = sand.u32 %s217, 1
          %s391 = scalar_lea.sflag [#allocation13], %s390
          %s392 = sand.u32 %s217, 1
          %s393 = smul.addr %s392, 4
          %s394 = scalar_lea.vmem [#allocation12], %s393
          %s395 = sld [smem:[#allocation4 + %s53]]
          %s396 = sld [smem:[#allocation5 + %s53]]
          %s397 = smul.u32 4, %s396
          %s399 = ssub.s32 64, 64
          %400 = vsyncadd %s391, %s399
          %s401 = smul.addr %s395, 4
          %s402 = sadd.s32 %s397, %s401
          %s403 = smul.addr %s402, 16
          %s404 = scalar_lea.hbm %s10, %s403
          %s406 = sshll.u32 %s394, 4
          %s407 = int_to_ptr.vmem [resolvable:$true] %s406
          %409 = dma.hbm_to_vmem [thread:$0]  %s404, 64, %s407, %s391
        $region40: #{tpu_custom_call.1} parent=15 // pred_fallthru
          _
      $region16: #{tpu_custom_call.1} parent=5 // pred_fallthru
        _
      %p410 = scmp.le.s32.totalorder 1, %s53
      %p411 = scmp.lt.s32.totalorder %s53, 3
      %p412 = pnand %p410, %p411
      %p413 = pneg %p412
      // Predicated region
      $region41: #{tpu_custom_call.1} parent=5 // pred_check
        _
      $region42: #{tpu_custom_call.1} parent=5 // pred_check_branch
        %415 = sbr.rel (%p412) target = $region44
      $region43: #{tpu_custom_call.1} parent=5 // pred_region
        %s416 = ssub.s32 %s53, 1
        %s417 = sand.u32 %s188, 1
        %s418 = scalar_lea.sflag [#allocation10], %s417
        %s419 = sand.u32 %s188, 1
        %s420 = smul.addr %s419, 16
        %s421 = scalar_lea.vmem [#allocation9], %s420
        // Predicated region
        $region45: #{tpu_custom_call.1} parent=43 // pred_check
          %p422 = pneg %p201
        $region46: #{tpu_custom_call.1} parent=43 // pred_check_branch
          %424 = sbr.rel (%p422) target = $region48
        $region47: #{tpu_custom_call.1} parent=43 // pred_region
          %425 = dma.done %s418, 256
        $region48: #{tpu_custom_call.1} parent=43 // pred_fallthru
          _
        %s426 = sand.u32 %s220, 1
        %s427 = scalar_lea.sflag [#allocation13], %s426
        %s428 = sand.u32 %s220, 1
        %s429 = smul.addr %s428, 4
        %s430 = scalar_lea.vmem [#allocation12], %s429
        // Predicated region
        $region49: #{tpu_custom_call.1} parent=43 // pred_check
          %p431 = pneg %p233
        $region50: #{tpu_custom_call.1} parent=43 // pred_check_branch
          %433 = sbr.rel (%p431) target = $region52
        $region51: #{tpu_custom_call.1} parent=43 // pred_region
          %434 = dma.done %s427, 64
        $region52: #{tpu_custom_call.1} parent=43 // pred_fallthru
          _
        %s435 = sld [smem:[#allocation7 + %s58]]
        %s436 = smul.u32 4, %s435
        %p437 = scmp.lt.s32.totalorder %s436, 7
        %s438 = scalar_select %p437, %s436, 7
        %s439 = smul.addr %s438, 4
        %s440 = scalar_lea.vmem %s5, %s439
        %p441 = pneg %p81
        %p442 = pneg %p78
        %s443 = sld [smem:[#allocation7 + %s58]]
        %s444 = smul.u32 64, %s443
        %p445 = scmp.lt.s32.totalorder %s444, 127
        %s446 = scalar_select %p445, %s444, 127
        %s447 = smul.addr %s446, 8
        %s448 = scalar_lea.vmem %s6, %s447
        %p449 = pneg %p109
        %p450 = pneg %p106
        %s451 = sld [smem:[#allocation7 + %s58]]
        %s452 = sadd.s32 %s451, 1
        %s453 = smul.u32 4, %s452
        %p454 = scmp.lt.s32.totalorder %s453, 7
        %s455 = scalar_select %p454, %s453, 7
        %s456 = smul.addr %s455, 4
        %s457 = scalar_lea.vmem %s7, %s456
        %p458 = pneg %p139
        %p459 = pneg %p136
        %s460 = sld [smem:[#allocation7 + %s58]]
        %s461 = sadd.s32 %s460, 1
        %s462 = smul.u32 64, %s461
        %p463 = scmp.lt.s32.totalorder %s462, 127
        %s464 = scalar_select %p463, %s462, 127
        %s465 = smul.addr %s464, 8
        %s466 = scalar_lea.vmem %s8, %s465
        %p467 = pneg %p169
        %p468 = pneg %p166
        %s469 = sand.u32 %s188, 1
        %s470 = scalar_lea.sflag [#allocation10], %s469
        %s471 = sand.u32 %s188, 1
        %s472 = smul.addr %s471, 16
        %s473 = scalar_lea.vmem [#allocation9], %s472
        %p474 = pneg %p201
        %p475 = pneg %p198
        %s476 = sand.u32 %s220, 1
        %s477 = scalar_lea.sflag [#allocation13], %s476
        %s478 = sand.u32 %s220, 1
        %s479 = smul.addr %s478, 4
        %s480 = scalar_lea.vmem [#allocation12], %s479
        %p481 = pneg %p233
        %p482 = pneg %p230
        %p483 = pneg %p265
        %p484 = pneg %p262
        %s485 = sand.u32 %s252, 1
        %s486 = scalar_lea.sflag [#allocation11], %s485
        %s487 = sand.u32 %s252, 1
        %s488 = smul.addr %s487, 16
        %s489 = scalar_lea.vmem [#allocation14], %s488
        %p490 = pneg %p297
        %p491 = pneg %p294
        %s492 = sand.u32 %s284, 1
        %s493 = scalar_lea.sflag [#allocation16], %s492
        %s494 = sand.u32 %s284, 1
        %s495 = smul.addr %s494, 4
        %s496 = scalar_lea.vmem [#allocation15], %s495
        %s497 = sld [smem:[#allocation7 + %s58]]
        %s498 = smul.u32 4, %s497
        %p499 = scmp.lt.s32.totalorder %s498, 7
        %s500 = scalar_select %p499, %s498, 7
        %s501 = smul.addr %s500, 4
        %s502 = scalar_lea.vmem %s5, %s501
        %s503 = sld [smem:[#allocation7 + %s58]]
        %s504 = smul.u32 4, %s503
        %s505 = sld [smem:[#allocation7 + %s58]]
        %s506 = smul.u32 64, %s505
        %p507 = scmp.lt.s32.totalorder %s506, 127
        %s508 = scalar_select %p507, %s506, 127
        %s509 = smul.addr %s508, 8
        %s510 = scalar_lea.vmem %s6, %s509
        %s511 = sld [smem:[#allocation7 + %s58]]
        %s512 = smul.u32 64, %s511
        %s513 = sld [smem:[#allocation7 + %s58]]
        %s514 = sadd.s32 %s513, 1
        %s515 = smul.u32 4, %s514
        %p516 = scmp.lt.s32.totalorder %s515, 7
        %s517 = scalar_select %p516, %s515, 7
        %s518 = smul.addr %s517, 4
        %s519 = scalar_lea.vmem %s7, %s518
        %s520 = sld [smem:[#allocation7 + %s58]]
        %s521 = sadd.s32 %s520, 1
        %s522 = smul.u32 4, %s521
        %s523 = sld [smem:[#allocation7 + %s58]]
        %s524 = sadd.s32 %s523, 1
        %s525 = smul.u32 64, %s524
        %p526 = scmp.lt.s32.totalorder %s525, 127
        %s527 = scalar_select %p526, %s525, 127
        %s528 = smul.addr %s527, 8
        %s529 = scalar_lea.vmem %s8, %s528
        %s530 = sld [smem:[#allocation7 + %s58]]
        %s531 = sadd.s32 %s530, 1
        %s532 = smul.u32 64, %s531
        %s533 = sld [smem:[#allocation4 + %s58]]
        %s534 = sld [smem:[#allocation5 + %s58]]
        %s535 = smul.u32 4, %s534
        %s536 = sld [smem:[#allocation4 + %s58]]
        %s537 = sld [smem:[#allocation5 + %s58]]
        %s538 = smul.u32 4, %s537
        %s539 = sld [smem:[#allocation4 + %s58]]
        %s540 = sld [smem:[#allocation5 + %s58]]
        %s541 = smul.u32 4, %s540
        %s542 = sld [smem:[#allocation4 + %s58]]
        %s543 = sld [smem:[#allocation5 + %s58]]
        %s544 = smul.u32 4, %s543
        %v545 = vlaneseq
        %v546 = vand.u32 %v545, 127
        %v547 = vadd.s32 %v546, 128
        %v548 = vadd.s32 %v546, 256
        %v549 = vadd.s32 %v546, 384
        %s550 = sld [smem:[#allocation6 + %s58]]
        %v551 = vstv %s550
        %v552 = vadd.s32 %v546, %v551
        %v553 = vadd.s32 %v547, %v551
        %v554 = vadd.s32 %v548, %v551
        %v555 = vadd.s32 %v549, %v551
        %v556 = vld [vmem:[%s510] sm:$0xff]
        %v557 = vld [vmem:[%s510 + $0x8] sm:$0xff]
        %v558 = vld [vmem:[%s510 + $0x10] sm:$0xff]
        %v559 = vld [vmem:[%s510 + $0x18] sm:$0xff]
        %v560 = vld [vmem:[%s510 + $0x20] sm:$0xff]
        %v561 = vld [vmem:[%s510 + $0x28] sm:$0xff]
        %v562 = vld [vmem:[%s510 + $0x30] sm:$0xff]
        %v563 = vld [vmem:[%s510 + $0x38] sm:$0xff]
        %v564 = vld [vmem:[%s510 + $0x40] sm:$0xff]
        %v565 = vld [vmem:[%s510 + $0x48] sm:$0xff]
        %v566 = vld [vmem:[%s510 + $0x50] sm:$0xff]
        %v567 = vld [vmem:[%s510 + $0x58] sm:$0xff]
        %v568 = vld [vmem:[%s510 + $0x60] sm:$0xff]
        %v569 = vld [vmem:[%s510 + $0x68] sm:$0xff]
        %v570 = vld [vmem:[%s510 + $0x70] sm:$0xff]
        %v571 = vld [vmem:[%s510 + $0x78] sm:$0xff]
        %v572 = vld [vmem:[%s510 + $0x80] sm:$0xff]
        %v573 = vld [vmem:[%s510 + $0x88] sm:$0xff]
        %v574 = vld [vmem:[%s510 + $0x90] sm:$0xff]
        %v575 = vld [vmem:[%s510 + $0x98] sm:$0xff]
        %v576 = vld [vmem:[%s510 + $0xa0] sm:$0xff]
        %v577 = vld [vmem:[%s510 + $0xa8] sm:$0xff]
        %v578 = vld [vmem:[%s510 + $0xb0] sm:$0xff]
        %v579 = vld [vmem:[%s510 + $0xb8] sm:$0xff]
        %v580 = vld [vmem:[%s510 + $0xc0] sm:$0xff]
        %v581 = vld [vmem:[%s510 + $0xc8] sm:$0xff]
        %v582 = vld [vmem:[%s510 + $0xd0] sm:$0xff]
        %v583 = vld [vmem:[%s510 + $0xd8] sm:$0xff]
        %v584 = vld [vmem:[%s510 + $0xe0] sm:$0xff]
        %v585 = vld [vmem:[%s510 + $0xe8] sm:$0xff]
        %v586 = vld [vmem:[%s510 + $0xf0] sm:$0xff]
        %v587 = vld [vmem:[%s510 + $0xf8] sm:$0xff]
        %v588 = vld [vmem:[%s510 + $0x100] sm:$0xff]
        %v589 = vld [vmem:[%s510 + $0x108] sm:$0xff]
        %v590 = vld [vmem:[%s510 + $0x110] sm:$0xff]
        %v591 = vld [vmem:[%s510 + $0x118] sm:$0xff]
        %v592 = vld [vmem:[%s510 + $0x120] sm:$0xff]
        %v593 = vld [vmem:[%s510 + $0x128] sm:$0xff]
        %v594 = vld [vmem:[%s510 + $0x130] sm:$0xff]
        %v595 = vld [vmem:[%s510 + $0x138] sm:$0xff]
        %v596 = vld [vmem:[%s510 + $0x140] sm:$0xff]
        %v597 = vld [vmem:[%s510 + $0x148] sm:$0xff]
        %v598 = vld [vmem:[%s510 + $0x150] sm:$0xff]
        %v599 = vld [vmem:[%s510 + $0x158] sm:$0xff]
        %v600 = vld [vmem:[%s510 + $0x160] sm:$0xff]
        %v601 = vld [vmem:[%s510 + $0x168] sm:$0xff]
        %v602 = vld [vmem:[%s510 + $0x170] sm:$0xff]
        %v603 = vld [vmem:[%s510 + $0x178] sm:$0xff]
        %v604 = vld [vmem:[%s510 + $0x180] sm:$0xff]
        %v605 = vld [vmem:[%s510 + $0x188] sm:$0xff]
        %v606 = vld [vmem:[%s510 + $0x190] sm:$0xff]
        %v607 = vld [vmem:[%s510 + $0x198] sm:$0xff]
        %v608 = vld [vmem:[%s510 + $0x1a0] sm:$0xff]
        %v609 = vld [vmem:[%s510 + $0x1a8] sm:$0xff]
        %v610 = vld [vmem:[%s510 + $0x1b0] sm:$0xff]
        %v611 = vld [vmem:[%s510 + $0x1b8] sm:$0xff]
        %v612 = vld [vmem:[%s510 + $0x1c0] sm:$0xff]
        %v613 = vld [vmem:[%s510 + $0x1c8] sm:$0xff]
        %v614 = vld [vmem:[%s510 + $0x1d0] sm:$0xff]
        %v615 = vld [vmem:[%s510 + $0x1d8] sm:$0xff]
        %v616 = vld [vmem:[%s510 + $0x1e0] sm:$0xff]
        %v617 = vld [vmem:[%s510 + $0x1e8] sm:$0xff]
        %v618 = vld [vmem:[%s510 + $0x1f0] sm:$0xff]
        %v619 = vld [vmem:[%s510 + $0x1f8] sm:$0xff]
        %620 = vset.pattern.permute.xlu0 0
        %621 = vperm.xlu0 %620, %v556
        %v622 = vpop.permute.xlu0 %621
        %623 = vset.pattern.permute.xlu0 0
        %624 = vperm.xlu0 %623, %v557
        %v625 = vpop.permute.xlu0 %624
        %626 = vset.pattern.permute.xlu0 0
        %627 = vperm.xlu0 %626, %v558
        %v628 = vpop.permute.xlu0 %627
        %629 = vset.pattern.permute.xlu0 0
        %630 = vperm.xlu0 %629, %v559
        %v631 = vpop.permute.xlu0 %630
        %632 = vset.pattern.permute.xlu0 0
        %633 = vperm.xlu0 %632, %v560
        %v634 = vpop.permute.xlu0 %633
        %635 = vset.pattern.permute.xlu0 0
        %636 = vperm.xlu0 %635, %v561
        %v637 = vpop.permute.xlu0 %636
        %638 = vset.pattern.permute.xlu0 0
        %639 = vperm.xlu0 %638, %v562
        %v640 = vpop.permute.xlu0 %639
        %641 = vset.pattern.permute.xlu0 0
        %642 = vperm.xlu0 %641, %v563
        %v643 = vpop.permute.xlu0 %642
        %644 = vset.pattern.permute.xlu0 0
        %645 = vperm.xlu0 %644, %v564
        %v646 = vpop.permute.xlu0 %645
        %647 = vset.pattern.permute.xlu0 0
        %648 = vperm.xlu0 %647, %v565
        %v649 = vpop.permute.xlu0 %648
        %650 = vset.pattern.permute.xlu0 0
        %651 = vperm.xlu0 %650, %v566
        %v652 = vpop.permute.xlu0 %651
        %653 = vset.pattern.permute.xlu0 0
        %654 = vperm.xlu0 %653, %v567
        %v655 = vpop.permute.xlu0 %654
        %656 = vset.pattern.permute.xlu0 0
        %657 = vperm.xlu0 %656, %v568
        %v658 = vpop.permute.xlu0 %657
        %659 = vset.pattern.permute.xlu0 0
        %660 = vperm.xlu0 %659, %v569
        %v661 = vpop.permute.xlu0 %660
        %662 = vset.pattern.permute.xlu0 0
        %663 = vperm.xlu0 %662, %v570
        %v664 = vpop.permute.xlu0 %663
        %665 = vset.pattern.permute.xlu0 0
        %666 = vperm.xlu0 %665, %v571
        %v667 = vpop.permute.xlu0 %666
        %668 = vset.pattern.permute.xlu0 0
        %669 = vperm.xlu0 %668, %v572
        %v670 = vpop.permute.xlu0 %669
        %671 = vset.pattern.permute.xlu0 0
        %672 = vperm.xlu0 %671, %v573
        %v673 = vpop.permute.xlu0 %672
        %674 = vset.pattern.permute.xlu0 0
        %675 = vperm.xlu0 %674, %v574
        %v676 = vpop.permute.xlu0 %675
        %677 = vset.pattern.permute.xlu0 0
        %678 = vperm.xlu0 %677, %v575
        %v679 = vpop.permute.xlu0 %678
        %680 = vset.pattern.permute.xlu0 0
        %681 = vperm.xlu0 %680, %v576
        %v682 = vpop.permute.xlu0 %681
        %683 = vset.pattern.permute.xlu0 0
        %684 = vperm.xlu0 %683, %v577
        %v685 = vpop.permute.xlu0 %684
        %686 = vset.pattern.permute.xlu0 0
        %687 = vperm.xlu0 %686, %v578
        %v688 = vpop.permute.xlu0 %687
        %689 = vset.pattern.permute.xlu0 0
        %690 = vperm.xlu0 %689, %v579
        %v691 = vpop.permute.xlu0 %690
        %692 = vset.pattern.permute.xlu0 0
        %693 = vperm.xlu0 %692, %v580
        %v694 = vpop.permute.xlu0 %693
        %695 = vset.pattern.permute.xlu0 0
        %696 = vperm.xlu0 %695, %v581
        %v697 = vpop.permute.xlu0 %696
        %698 = vset.pattern.permute.xlu0 0
        %699 = vperm.xlu0 %698, %v582
        %v700 = vpop.permute.xlu0 %699
        %701 = vset.pattern.permute.xlu0 0
        %702 = vperm.xlu0 %701, %v583
        %v703 = vpop.permute.xlu0 %702
        %704 = vset.pattern.permute.xlu0 0
        %705 = vperm.xlu0 %704, %v584
        %v706 = vpop.permute.xlu0 %705
        %707 = vset.pattern.permute.xlu0 0
        %708 = vperm.xlu0 %707, %v585
        %v709 = vpop.permute.xlu0 %708
        %710 = vset.pattern.permute.xlu0 0
        %711 = vperm.xlu0 %710, %v586
        %v712 = vpop.permute.xlu0 %711
        %713 = vset.pattern.permute.xlu0 0
        %714 = vperm.xlu0 %713, %v587
        %v715 = vpop.permute.xlu0 %714
        %716 = vset.pattern.permute.xlu0 0
        %717 = vperm.xlu0 %716, %v588
        %v718 = vpop.permute.xlu0 %717
        %719 = vset.pattern.permute.xlu0 0
        %720 = vperm.xlu0 %719, %v589
        %v721 = vpop.permute.xlu0 %720
        %722 = vset.pattern.permute.xlu0 0
        %723 = vperm.xlu0 %722, %v590
        %v724 = vpop.permute.xlu0 %723
        %725 = vset.pattern.permute.xlu0 0
        %726 = vperm.xlu0 %725, %v591
        %v727 = vpop.permute.xlu0 %726
        %728 = vset.pattern.permute.xlu0 0
        %729 = vperm.xlu0 %728, %v592
        %v730 = vpop.permute.xlu0 %729
        %731 = vset.pattern.permute.xlu0 0
        %732 = vperm.xlu0 %731, %v593
        %v733 = vpop.permute.xlu0 %732
        %734 = vset.pattern.permute.xlu0 0
        %735 = vperm.xlu0 %734, %v594
        %v736 = vpop.permute.xlu0 %735
        %737 = vset.pattern.permute.xlu0 0
        %738 = vperm.xlu0 %737, %v595
        %v739 = vpop.permute.xlu0 %738
        %740 = vset.pattern.permute.xlu0 0
        %741 = vperm.xlu0 %740, %v596
        %v742 = vpop.permute.xlu0 %741
        %743 = vset.pattern.permute.xlu0 0
        %744 = vperm.xlu0 %743, %v597
        %v745 = vpop.permute.xlu0 %744
        %746 = vset.pattern.permute.xlu0 0
        %747 = vperm.xlu0 %746, %v598
        %v748 = vpop.permute.xlu0 %747
        %749 = vset.pattern.permute.xlu0 0
        %750 = vperm.xlu0 %749, %v599
        %v751 = vpop.permute.xlu0 %750
        %752 = vset.pattern.permute.xlu0 0
        %753 = vperm.xlu0 %752, %v600
        %v754 = vpop.permute.xlu0 %753
        %755 = vset.pattern.permute.xlu0 0
        %756 = vperm.xlu0 %755, %v601
        %v757 = vpop.permute.xlu0 %756
        %758 = vset.pattern.permute.xlu0 0
        %759 = vperm.xlu0 %758, %v602
        %v760 = vpop.permute.xlu0 %759
        %761 = vset.pattern.permute.xlu0 0
        %762 = vperm.xlu0 %761, %v603
        %v763 = vpop.permute.xlu0 %762
        %764 = vset.pattern.permute.xlu0 0
        %765 = vperm.xlu0 %764, %v604
        %v766 = vpop.permute.xlu0 %765
        %767 = vset.pattern.permute.xlu0 0
        %768 = vperm.xlu0 %767, %v605
        %v769 = vpop.permute.xlu0 %768
        %770 = vset.pattern.permute.xlu0 0
        %771 = vperm.xlu0 %770, %v606
        %v772 = vpop.permute.xlu0 %771
        %773 = vset.pattern.permute.xlu0 0
        %774 = vperm.xlu0 %773, %v607
        %v775 = vpop.permute.xlu0 %774
        %776 = vset.pattern.permute.xlu0 0
        %777 = vperm.xlu0 %776, %v608
        %v778 = vpop.permute.xlu0 %777
        %779 = vset.pattern.permute.xlu0 0
        %780 = vperm.xlu0 %779, %v609
        %v781 = vpop.permute.xlu0 %780
        %782 = vset.pattern.permute.xlu0 0
        %783 = vperm.xlu0 %782, %v610
        %v784 = vpop.permute.xlu0 %783
        %785 = vset.pattern.permute.xlu0 0
        %786 = vperm.xlu0 %785, %v611
        %v787 = vpop.permute.xlu0 %786
        %788 = vset.pattern.permute.xlu0 0
        %789 = vperm.xlu0 %788, %v612
        %v790 = vpop.permute.xlu0 %789
        %791 = vset.pattern.permute.xlu0 0
        %792 = vperm.xlu0 %791, %v613
        %v793 = vpop.permute.xlu0 %792
        %794 = vset.pattern.permute.xlu0 0
        %795 = vperm.xlu0 %794, %v614
        %v796 = vpop.permute.xlu0 %795
        %797 = vset.pattern.permute.xlu0 0
        %798 = vperm.xlu0 %797, %v615
        %v799 = vpop.permute.xlu0 %798
        %800 = vset.pattern.permute.xlu0 0
        %801 = vperm.xlu0 %800, %v616
        %v802 = vpop.permute.xlu0 %801
        %803 = vset.pattern.permute.xlu0 0
        %804 = vperm.xlu0 %803, %v617
        %v805 = vpop.permute.xlu0 %804
        %806 = vset.pattern.permute.xlu0 0
        %807 = vperm.xlu0 %806, %v618
        %v808 = vpop.permute.xlu0 %807
        %809 = vset.pattern.permute.xlu0 0
        %810 = vperm.xlu0 %809, %v619
        %v811 = vpop.permute.xlu0 %810
        %vm812 = vcmp.eq.s32.totalorder %v622, %v552
        %vm813 = vcmp.eq.s32.totalorder %v622, %v553
        %vm814 = vcmp.eq.s32.totalorder %v622, %v554
        %vm815 = vcmp.eq.s32.totalorder %v622, %v555
        %vm816 = vcmp.eq.s32.totalorder %v625, %v552
        %vm817 = vcmp.eq.s32.totalorder %v625, %v553
        %vm818 = vcmp.eq.s32.totalorder %v625, %v554
        %vm819 = vcmp.eq.s32.totalorder %v625, %v555
        %vm820 = vcmp.eq.s32.totalorder %v628, %v552
        %vm821 = vcmp.eq.s32.totalorder %v628, %v553
        %vm822 = vcmp.eq.s32.totalorder %v628, %v554
        %vm823 = vcmp.eq.s32.totalorder %v628, %v555
        %vm824 = vcmp.eq.s32.totalorder %v631, %v552
        %vm825 = vcmp.eq.s32.totalorder %v631, %v553
        %vm826 = vcmp.eq.s32.totalorder %v631, %v554
        %vm827 = vcmp.eq.s32.totalorder %v631, %v555
        %vm828 = vcmp.eq.s32.totalorder %v634, %v552
        %vm829 = vcmp.eq.s32.totalorder %v634, %v553
        %vm830 = vcmp.eq.s32.totalorder %v634, %v554
        %vm831 = vcmp.eq.s32.totalorder %v634, %v555
        %vm832 = vcmp.eq.s32.totalorder %v637, %v552
        %vm833 = vcmp.eq.s32.totalorder %v637, %v553
        %vm834 = vcmp.eq.s32.totalorder %v637, %v554
        %vm835 = vcmp.eq.s32.totalorder %v637, %v555
        %vm836 = vcmp.eq.s32.totalorder %v640, %v552
        %vm837 = vcmp.eq.s32.totalorder %v640, %v553
        %vm838 = vcmp.eq.s32.totalorder %v640, %v554
        %vm839 = vcmp.eq.s32.totalorder %v640, %v555
        %vm840 = vcmp.eq.s32.totalorder %v643, %v552
        %vm841 = vcmp.eq.s32.totalorder %v643, %v553
        %vm842 = vcmp.eq.s32.totalorder %v643, %v554
        %vm843 = vcmp.eq.s32.totalorder %v643, %v555
        %vm844 = vcmp.eq.s32.totalorder %v646, %v552
        %vm845 = vcmp.eq.s32.totalorder %v646, %v553
        %vm846 = vcmp.eq.s32.totalorder %v646, %v554
        %vm847 = vcmp.eq.s32.totalorder %v646, %v555
        %vm848 = vcmp.eq.s32.totalorder %v649, %v552
        %vm849 = vcmp.eq.s32.totalorder %v649, %v553
        %vm850 = vcmp.eq.s32.totalorder %v649, %v554
        %vm851 = vcmp.eq.s32.totalorder %v649, %v555
        %vm852 = vcmp.eq.s32.totalorder %v652, %v552
        %vm853 = vcmp.eq.s32.totalorder %v652, %v553
        %vm854 = vcmp.eq.s32.totalorder %v652, %v554
        %vm855 = vcmp.eq.s32.totalorder %v652, %v555
        %vm856 = vcmp.eq.s32.totalorder %v655, %v552
        %vm857 = vcmp.eq.s32.totalorder %v655, %v553
        %vm858 = vcmp.eq.s32.totalorder %v655, %v554
        %vm859 = vcmp.eq.s32.totalorder %v655, %v555
        %vm860 = vcmp.eq.s32.totalorder %v658, %v552
        %vm861 = vcmp.eq.s32.totalorder %v658, %v553
        %vm862 = vcmp.eq.s32.totalorder %v658, %v554
        %vm863 = vcmp.eq.s32.totalorder %v658, %v555
        %vm864 = vcmp.eq.s32.totalorder %v661, %v552
        %vm865 = vcmp.eq.s32.totalorder %v661, %v553
        %vm866 = vcmp.eq.s32.totalorder %v661, %v554
        %vm867 = vcmp.eq.s32.totalorder %v661, %v555
        %vm868 = vcmp.eq.s32.totalorder %v664, %v552
        %vm869 = vcmp.eq.s32.totalorder %v664, %v553
        %vm870 = vcmp.eq.s32.totalorder %v664, %v554
        %vm871 = vcmp.eq.s32.totalorder %v664, %v555
        %vm872 = vcmp.eq.s32.totalorder %v667, %v552
        %vm873 = vcmp.eq.s32.totalorder %v667, %v553
        %vm874 = vcmp.eq.s32.totalorder %v667, %v554
        %vm875 = vcmp.eq.s32.totalorder %v667, %v555
        %vm876 = vcmp.eq.s32.totalorder %v670, %v552
        %vm877 = vcmp.eq.s32.totalorder %v670, %v553
        %vm878 = vcmp.eq.s32.totalorder %v670, %v554
        %vm879 = vcmp.eq.s32.totalorder %v670, %v555
        %vm880 = vcmp.eq.s32.totalorder %v673, %v552
        %vm881 = vcmp.eq.s32.totalorder %v673, %v553
        %vm882 = vcmp.eq.s32.totalorder %v673, %v554
        %vm883 = vcmp.eq.s32.totalorder %v673, %v555
        %vm884 = vcmp.eq.s32.totalorder %v676, %v552
        %vm885 = vcmp.eq.s32.totalorder %v676, %v553
        %vm886 = vcmp.eq.s32.totalorder %v676, %v554
        %vm887 = vcmp.eq.s32.totalorder %v676, %v555
        %vm888 = vcmp.eq.s32.totalorder %v679, %v552
        %vm889 = vcmp.eq.s32.totalorder %v679, %v553
        %vm890 = vcmp.eq.s32.totalorder %v679, %v554
        %vm891 = vcmp.eq.s32.totalorder %v679, %v555
        %vm892 = vcmp.eq.s32.totalorder %v682, %v552
        %vm893 = vcmp.eq.s32.totalorder %v682, %v553
        %vm894 = vcmp.eq.s32.totalorder %v682, %v554
        %vm895 = vcmp.eq.s32.totalorder %v682, %v555
        %vm896 = vcmp.eq.s32.totalorder %v685, %v552
        %vm897 = vcmp.eq.s32.totalorder %v685, %v553
        %vm898 = vcmp.eq.s32.totalorder %v685, %v554
        %vm899 = vcmp.eq.s32.totalorder %v685, %v555
        %vm900 = vcmp.eq.s32.totalorder %v688, %v552
        %vm901 = vcmp.eq.s32.totalorder %v688, %v553
        %vm902 = vcmp.eq.s32.totalorder %v688, %v554
        %vm903 = vcmp.eq.s32.totalorder %v688, %v555
        %vm904 = vcmp.eq.s32.totalorder %v691, %v552
        %vm905 = vcmp.eq.s32.totalorder %v691, %v553
        %vm906 = vcmp.eq.s32.totalorder %v691, %v554
        %vm907 = vcmp.eq.s32.totalorder %v691, %v555
        %vm908 = vcmp.eq.s32.totalorder %v694, %v552
        %vm909 = vcmp.eq.s32.totalorder %v694, %v553
        %vm910 = vcmp.eq.s32.totalorder %v694, %v554
        %vm911 = vcmp.eq.s32.totalorder %v694, %v555
        %vm912 = vcmp.eq.s32.totalorder %v697, %v552
        %vm913 = vcmp.eq.s32.totalorder %v697, %v553
        %vm914 = vcmp.eq.s32.totalorder %v697, %v554
        %vm915 = vcmp.eq.s32.totalorder %v697, %v555
        %vm916 = vcmp.eq.s32.totalorder %v700, %v552
        %vm917 = vcmp.eq.s32.totalorder %v700, %v553
        %vm918 = vcmp.eq.s32.totalorder %v700, %v554
        %vm919 = vcmp.eq.s32.totalorder %v700, %v555
        %vm920 = vcmp.eq.s32.totalorder %v703, %v552
        %vm921 = vcmp.eq.s32.totalorder %v703, %v553
        %vm922 = vcmp.eq.s32.totalorder %v703, %v554
        %vm923 = vcmp.eq.s32.totalorder %v703, %v555
        %vm924 = vcmp.eq.s32.totalorder %v706, %v552
        %vm925 = vcmp.eq.s32.totalorder %v706, %v553
        %vm926 = vcmp.eq.s32.totalorder %v706, %v554
        %vm927 = vcmp.eq.s32.totalorder %v706, %v555
        %vm928 = vcmp.eq.s32.totalorder %v709, %v552
        %vm929 = vcmp.eq.s32.totalorder %v709, %v553
        %vm930 = vcmp.eq.s32.totalorder %v709, %v554
        %vm931 = vcmp.eq.s32.totalorder %v709, %v555
        %vm932 = vcmp.eq.s32.totalorder %v712, %v552
        %vm933 = vcmp.eq.s32.totalorder %v712, %v553
        %vm934 = vcmp.eq.s32.totalorder %v712, %v554
        %vm935 = vcmp.eq.s32.totalorder %v712, %v555
        %vm936 = vcmp.eq.s32.totalorder %v715, %v552
        %vm937 = vcmp.eq.s32.totalorder %v715, %v553
        %vm938 = vcmp.eq.s32.totalorder %v715, %v554
        %vm939 = vcmp.eq.s32.totalorder %v715, %v555
        %vm940 = vcmp.eq.s32.totalorder %v718, %v552
        %vm941 = vcmp.eq.s32.totalorder %v718, %v553
        %vm942 = vcmp.eq.s32.totalorder %v718, %v554
        %vm943 = vcmp.eq.s32.totalorder %v718, %v555
        %vm944 = vcmp.eq.s32.totalorder %v721, %v552
        %vm945 = vcmp.eq.s32.totalorder %v721, %v553
        %vm946 = vcmp.eq.s32.totalorder %v721, %v554
        %vm947 = vcmp.eq.s32.totalorder %v721, %v555
        %vm948 = vcmp.eq.s32.totalorder %v724, %v552
        %vm949 = vcmp.eq.s32.totalorder %v724, %v553
        %vm950 = vcmp.eq.s32.totalorder %v724, %v554
        %vm951 = vcmp.eq.s32.totalorder %v724, %v555
        %vm952 = vcmp.eq.s32.totalorder %v727, %v552
        %vm953 = vcmp.eq.s32.totalorder %v727, %v553
        %vm954 = vcmp.eq.s32.totalorder %v727, %v554
        %vm955 = vcmp.eq.s32.totalorder %v727, %v555
        %vm956 = vcmp.eq.s32.totalorder %v730, %v552
        %vm957 = vcmp.eq.s32.totalorder %v730, %v553
        %vm958 = vcmp.eq.s32.totalorder %v730, %v554
        %vm959 = vcmp.eq.s32.totalorder %v730, %v555
        %vm960 = vcmp.eq.s32.totalorder %v733, %v552
        %vm961 = vcmp.eq.s32.totalorder %v733, %v553
        %vm962 = vcmp.eq.s32.totalorder %v733, %v554
        %vm963 = vcmp.eq.s32.totalorder %v733, %v555
        %vm964 = vcmp.eq.s32.totalorder %v736, %v552
        %vm965 = vcmp.eq.s32.totalorder %v736, %v553
        %vm966 = vcmp.eq.s32.totalorder %v736, %v554
        %vm967 = vcmp.eq.s32.totalorder %v736, %v555
        %vm968 = vcmp.eq.s32.totalorder %v739, %v552
        %vm969 = vcmp.eq.s32.totalorder %v739, %v553
        %vm970 = vcmp.eq.s32.totalorder %v739, %v554
        %vm971 = vcmp.eq.s32.totalorder %v739, %v555
        %vm972 = vcmp.eq.s32.totalorder %v742, %v552
        %vm973 = vcmp.eq.s32.totalorder %v742, %v553
        %vm974 = vcmp.eq.s32.totalorder %v742, %v554
        %vm975 = vcmp.eq.s32.totalorder %v742, %v555
        %vm976 = vcmp.eq.s32.totalorder %v745, %v552
        %vm977 = vcmp.eq.s32.totalorder %v745, %v553
        %vm978 = vcmp.eq.s32.totalorder %v745, %v554
        %vm979 = vcmp.eq.s32.totalorder %v745, %v555
        %vm980 = vcmp.eq.s32.totalorder %v748, %v552
        %vm981 = vcmp.eq.s32.totalorder %v748, %v553
        %vm982 = vcmp.eq.s32.totalorder %v748, %v554
        %vm983 = vcmp.eq.s32.totalorder %v748, %v555
        %vm984 = vcmp.eq.s32.totalorder %v751, %v552
        %vm985 = vcmp.eq.s32.totalorder %v751, %v553
        %vm986 = vcmp.eq.s32.totalorder %v751, %v554
        %vm987 = vcmp.eq.s32.totalorder %v751, %v555
        %vm988 = vcmp.eq.s32.totalorder %v754, %v552
        %vm989 = vcmp.eq.s32.totalorder %v754, %v553
        %vm990 = vcmp.eq.s32.totalorder %v754, %v554
        %vm991 = vcmp.eq.s32.totalorder %v754, %v555
        %vm992 = vcmp.eq.s32.totalorder %v757, %v552
        %vm993 = vcmp.eq.s32.totalorder %v757, %v553
        %vm994 = vcmp.eq.s32.totalorder %v757, %v554
        %vm995 = vcmp.eq.s32.totalorder %v757, %v555
        %vm996 = vcmp.eq.s32.totalorder %v760, %v552
        %vm997 = vcmp.eq.s32.totalorder %v760, %v553
        %vm998 = vcmp.eq.s32.totalorder %v760, %v554
        %vm999 = vcmp.eq.s32.totalorder %v760, %v555
        %vm1000 = vcmp.eq.s32.totalorder %v763, %v552
        %vm1001 = vcmp.eq.s32.totalorder %v763, %v553
        %vm1002 = vcmp.eq.s32.totalorder %v763, %v554
        %vm1003 = vcmp.eq.s32.totalorder %v763, %v555
        %vm1004 = vcmp.eq.s32.totalorder %v766, %v552
        %vm1005 = vcmp.eq.s32.totalorder %v766, %v553
        %vm1006 = vcmp.eq.s32.totalorder %v766, %v554
        %vm1007 = vcmp.eq.s32.totalorder %v766, %v555
        %vm1008 = vcmp.eq.s32.totalorder %v769, %v552
        %vm1009 = vcmp.eq.s32.totalorder %v769, %v553
        %vm1010 = vcmp.eq.s32.totalorder %v769, %v554
        %vm1011 = vcmp.eq.s32.totalorder %v769, %v555
        %vm1012 = vcmp.eq.s32.totalorder %v772, %v552
        %vm1013 = vcmp.eq.s32.totalorder %v772, %v553
        %vm1014 = vcmp.eq.s32.totalorder %v772, %v554
        %vm1015 = vcmp.eq.s32.totalorder %v772, %v555
        %vm1016 = vcmp.eq.s32.totalorder %v775, %v552
        %vm1017 = vcmp.eq.s32.totalorder %v775, %v553
        %vm1018 = vcmp.eq.s32.totalorder %v775, %v554
        %vm1019 = vcmp.eq.s32.totalorder %v775, %v555
        %vm1020 = vcmp.eq.s32.totalorder %v778, %v552
        %vm1021 = vcmp.eq.s32.totalorder %v778, %v553
        %vm1022 = vcmp.eq.s32.totalorder %v778, %v554
        %vm1023 = vcmp.eq.s32.totalorder %v778, %v555
        %vm1024 = vcmp.eq.s32.totalorder %v781, %v552
        %vm1025 = vcmp.eq.s32.totalorder %v781, %v553
        %vm1026 = vcmp.eq.s32.totalorder %v781, %v554
        %vm1027 = vcmp.eq.s32.totalorder %v781, %v555
        %vm1028 = vcmp.eq.s32.totalorder %v784, %v552
        %vm1029 = vcmp.eq.s32.totalorder %v784, %v553
        %vm1030 = vcmp.eq.s32.totalorder %v784, %v554
        %vm1031 = vcmp.eq.s32.totalorder %v784, %v555
        %vm1032 = vcmp.eq.s32.totalorder %v787, %v552
        %vm1033 = vcmp.eq.s32.totalorder %v787, %v553
        %vm1034 = vcmp.eq.s32.totalorder %v787, %v554
        %vm1035 = vcmp.eq.s32.totalorder %v787, %v555
        %vm1036 = vcmp.eq.s32.totalorder %v790, %v552
        %vm1037 = vcmp.eq.s32.totalorder %v790, %v553
        %vm1038 = vcmp.eq.s32.totalorder %v790, %v554
        %vm1039 = vcmp.eq.s32.totalorder %v790, %v555
        %vm1040 = vcmp.eq.s32.totalorder %v793, %v552
        %vm1041 = vcmp.eq.s32.totalorder %v793, %v553
        %vm1042 = vcmp.eq.s32.totalorder %v793, %v554
        %vm1043 = vcmp.eq.s32.totalorder %v793, %v555
        %vm1044 = vcmp.eq.s32.totalorder %v796, %v552
        %vm1045 = vcmp.eq.s32.totalorder %v796, %v553
        %vm1046 = vcmp.eq.s32.totalorder %v796, %v554
        %vm1047 = vcmp.eq.s32.totalorder %v796, %v555
        %vm1048 = vcmp.eq.s32.totalorder %v799, %v552
        %vm1049 = vcmp.eq.s32.totalorder %v799, %v553
        %vm1050 = vcmp.eq.s32.totalorder %v799, %v554
        %vm1051 = vcmp.eq.s32.totalorder %v799, %v555
        %vm1052 = vcmp.eq.s32.totalorder %v802, %v552
        %vm1053 = vcmp.eq.s32.totalorder %v802, %v553
        %vm1054 = vcmp.eq.s32.totalorder %v802, %v554
        %vm1055 = vcmp.eq.s32.totalorder %v802, %v555
        %vm1056 = vcmp.eq.s32.totalorder %v805, %v552
        %vm1057 = vcmp.eq.s32.totalorder %v805, %v553
        %vm1058 = vcmp.eq.s32.totalorder %v805, %v554
        %vm1059 = vcmp.eq.s32.totalorder %v805, %v555
        %vm1060 = vcmp.eq.s32.totalorder %v808, %v552
        %vm1061 = vcmp.eq.s32.totalorder %v808, %v553
        %vm1062 = vcmp.eq.s32.totalorder %v808, %v554
        %vm1063 = vcmp.eq.s32.totalorder %v808, %v555
        %vm1064 = vcmp.eq.s32.totalorder %v811, %v552
        %vm1065 = vcmp.eq.s32.totalorder %v811, %v553
        %vm1066 = vcmp.eq.s32.totalorder %v811, %v554
        %vm1067 = vcmp.eq.s32.totalorder %v811, %v555
        %v1068 = vsel %vm812, 1, 0
        %v1069 = vsel %vm813, 1, 0
        %v1070 = vsel %vm814, 1, 0
        %v1071 = vsel %vm815, 1, 0
        %v1072 = vsel %vm816, 1, 0
        %v1073 = vsel %vm817, 1, 0
        %v1074 = vsel %vm818, 1, 0
        %v1075 = vsel %vm819, 1, 0
        %v1076 = vsel %vm820, 1, 0
        %v1077 = vsel %vm821, 1, 0
        %v1078 = vsel %vm822, 1, 0
        %v1079 = vsel %vm823, 1, 0
        %v1080 = vsel %vm824, 1, 0
        %v1081 = vsel %vm825, 1, 0
        %v1082 = vsel %vm826, 1, 0
        %v1083 = vsel %vm827, 1, 0
        %v1084 = vsel %vm828, 1, 0
        %v1085 = vsel %vm829, 1, 0
        %v1086 = vsel %vm830, 1, 0
        %v1087 = vsel %vm831, 1, 0
        %v1088 = vsel %vm832, 1, 0
        %v1089 = vsel %vm833, 1, 0
        %v1090 = vsel %vm834, 1, 0
        %v1091 = vsel %vm835, 1, 0
        %v1092 = vsel %vm836, 1, 0
        %v1093 = vsel %vm837, 1, 0
        %v1094 = vsel %vm838, 1, 0
        %v1095 = vsel %vm839, 1, 0
        %v1096 = vsel %vm840, 1, 0
        %v1097 = vsel %vm841, 1, 0
        %v1098 = vsel %vm842, 1, 0
        %v1099 = vsel %vm843, 1, 0
        %v1100 = vsel %vm844, 1, 0
        %v1101 = vsel %vm845, 1, 0
        %v1102 = vsel %vm846, 1, 0
        %v1103 = vsel %vm847, 1, 0
        %v1104 = vsel %vm848, 1, 0
        %v1105 = vsel %vm849, 1, 0
        %v1106 = vsel %vm850, 1, 0
        %v1107 = vsel %vm851, 1, 0
        %v1108 = vsel %vm852, 1, 0
        %v1109 = vsel %vm853, 1, 0
        %v1110 = vsel %vm854, 1, 0
        %v1111 = vsel %vm855, 1, 0
        %v1112 = vsel %vm856, 1, 0
        %v1113 = vsel %vm857, 1, 0
        %v1114 = vsel %vm858, 1, 0
        %v1115 = vsel %vm859, 1, 0
        %v1116 = vsel %vm860, 1, 0
        %v1117 = vsel %vm861, 1, 0
        %v1118 = vsel %vm862, 1, 0
        %v1119 = vsel %vm863, 1, 0
        %v1120 = vsel %vm864, 1, 0
        %v1121 = vsel %vm865, 1, 0
        %v1122 = vsel %vm866, 1, 0
        %v1123 = vsel %vm867, 1, 0
        %v1124 = vsel %vm868, 1, 0
        %v1125 = vsel %vm869, 1, 0
        %v1126 = vsel %vm870, 1, 0
        %v1127 = vsel %vm871, 1, 0
        %v1128 = vsel %vm872, 1, 0
        %v1129 = vsel %vm873, 1, 0
        %v1130 = vsel %vm874, 1, 0
        %v1131 = vsel %vm875, 1, 0
        %v1132 = vsel %vm876, 1, 0
        %v1133 = vsel %vm877, 1, 0
        %v1134 = vsel %vm878, 1, 0
        %v1135 = vsel %vm879, 1, 0
        %v1136 = vsel %vm880, 1, 0
        %v1137 = vsel %vm881, 1, 0
        %v1138 = vsel %vm882, 1, 0
        %v1139 = vsel %vm883, 1, 0
        %v1140 = vsel %vm884, 1, 0
        %v1141 = vsel %vm885, 1, 0
        %v1142 = vsel %vm886, 1, 0
        %v1143 = vsel %vm887, 1, 0
        %v1144 = vsel %vm888, 1, 0
        %v1145 = vsel %vm889, 1, 0
        %v1146 = vsel %vm890, 1, 0
        %v1147 = vsel %vm891, 1, 0
        %v1148 = vsel %vm892, 1, 0
        %v1149 = vsel %vm893, 1, 0
        %v1150 = vsel %vm894, 1, 0
        %v1151 = vsel %vm895, 1, 0
        %v1152 = vsel %vm896, 1, 0
        %v1153 = vsel %vm897, 1, 0
        %v1154 = vsel %vm898, 1, 0
        %v1155 = vsel %vm899, 1, 0
        %v1156 = vsel %vm900, 1, 0
        %v1157 = vsel %vm901, 1, 0
        %v1158 = vsel %vm902, 1, 0
        %v1159 = vsel %vm903, 1, 0
        %v1160 = vsel %vm904, 1, 0
        %v1161 = vsel %vm905, 1, 0
        %v1162 = vsel %vm906, 1, 0
        %v1163 = vsel %vm907, 1, 0
        %v1164 = vsel %vm908, 1, 0
        %v1165 = vsel %vm909, 1, 0
        %v1166 = vsel %vm910, 1, 0
        %v1167 = vsel %vm911, 1, 0
        %v1168 = vsel %vm912, 1, 0
        %v1169 = vsel %vm913, 1, 0
        %v1170 = vsel %vm914, 1, 0
        %v1171 = vsel %vm915, 1, 0
        %v1172 = vsel %vm916, 1, 0
        %v1173 = vsel %vm917, 1, 0
        %v1174 = vsel %vm918, 1, 0
        %v1175 = vsel %vm919, 1, 0
        %v1176 = vsel %vm920, 1, 0
        %v1177 = vsel %vm921, 1, 0
        %v1178 = vsel %vm922, 1, 0
        %v1179 = vsel %vm923, 1, 0
        %v1180 = vsel %vm924, 1, 0
        %v1181 = vsel %vm925, 1, 0
        %v1182 = vsel %vm926, 1, 0
        %v1183 = vsel %vm927, 1, 0
        %v1184 = vsel %vm928, 1, 0
        %v1185 = vsel %vm929, 1, 0
        %v1186 = vsel %vm930, 1, 0
        %v1187 = vsel %vm931, 1, 0
        %v1188 = vsel %vm932, 1, 0
        %v1189 = vsel %vm933, 1, 0
        %v1190 = vsel %vm934, 1, 0
        %v1191 = vsel %vm935, 1, 0
        %v1192 = vsel %vm936, 1, 0
        %v1193 = vsel %vm937, 1, 0
        %v1194 = vsel %vm938, 1, 0
        %v1195 = vsel %vm939, 1, 0
        %v1196 = vsel %vm940, 1, 0
        %v1197 = vsel %vm941, 1, 0
        %v1198 = vsel %vm942, 1, 0
        %v1199 = vsel %vm943, 1, 0
        %v1200 = vsel %vm944, 1, 0
        %v1201 = vsel %vm945, 1, 0
        %v1202 = vsel %vm946, 1, 0
        %v1203 = vsel %vm947, 1, 0
        %v1204 = vsel %vm948, 1, 0
        %v1205 = vsel %vm949, 1, 0
        %v1206 = vsel %vm950, 1, 0
        %v1207 = vsel %vm951, 1, 0
        %v1208 = vsel %vm952, 1, 0
        %v1209 = vsel %vm953, 1, 0
        %v1210 = vsel %vm954, 1, 0
        %v1211 = vsel %vm955, 1, 0
        %v1212 = vsel %vm956, 1, 0
        %v1213 = vsel %vm957, 1, 0
        %v1214 = vsel %vm958, 1, 0
        %v1215 = vsel %vm959, 1, 0
        %v1216 = vsel %vm960, 1, 0
        %v1217 = vsel %vm961, 1, 0
        %v1218 = vsel %vm962, 1, 0
        %v1219 = vsel %vm963, 1, 0
        %v1220 = vsel %vm964, 1, 0
        %v1221 = vsel %vm965, 1, 0
        %v1222 = vsel %vm966, 1, 0
        %v1223 = vsel %vm967, 1, 0
        %v1224 = vsel %vm968, 1, 0
        %v1225 = vsel %vm969, 1, 0
        %v1226 = vsel %vm970, 1, 0
        %v1227 = vsel %vm971, 1, 0
        %v1228 = vsel %vm972, 1, 0
        %v1229 = vsel %vm973, 1, 0
        %v1230 = vsel %vm974, 1, 0
        %v1231 = vsel %vm975, 1, 0
        %v1232 = vsel %vm976, 1, 0
        %v1233 = vsel %vm977, 1, 0
        %v1234 = vsel %vm978, 1, 0
        %v1235 = vsel %vm979, 1, 0
        %v1236 = vsel %vm980, 1, 0
        %v1237 = vsel %vm981, 1, 0
        %v1238 = vsel %vm982, 1, 0
        %v1239 = vsel %vm983, 1, 0
        %v1240 = vsel %vm984, 1, 0
        %v1241 = vsel %vm985, 1, 0
        %v1242 = vsel %vm986, 1, 0
        %v1243 = vsel %vm987, 1, 0
        %v1244 = vsel %vm988, 1, 0
        %v1245 = vsel %vm989, 1, 0
        %v1246 = vsel %vm990, 1, 0
        %v1247 = vsel %vm991, 1, 0
        %v1248 = vsel %vm992, 1, 0
        %v1249 = vsel %vm993, 1, 0
        %v1250 = vsel %vm994, 1, 0
        %v1251 = vsel %vm995, 1, 0
        %v1252 = vsel %vm996, 1, 0
        %v1253 = vsel %vm997, 1, 0
        %v1254 = vsel %vm998, 1, 0
        %v1255 = vsel %vm999, 1, 0
        %v1256 = vsel %vm1000, 1, 0
        %v1257 = vsel %vm1001, 1, 0
        %v1258 = vsel %vm1002, 1, 0
        %v1259 = vsel %vm1003, 1, 0
        %v1260 = vsel %vm1004, 1, 0
        %v1261 = vsel %vm1005, 1, 0
        %v1262 = vsel %vm1006, 1, 0
        %v1263 = vsel %vm1007, 1, 0
        %v1264 = vsel %vm1008, 1, 0
        %v1265 = vsel %vm1009, 1, 0
        %v1266 = vsel %vm1010, 1, 0
        %v1267 = vsel %vm1011, 1, 0
        %v1268 = vsel %vm1012, 1, 0
        %v1269 = vsel %vm1013, 1, 0
        %v1270 = vsel %vm1014, 1, 0
        %v1271 = vsel %vm1015, 1, 0
        %v1272 = vsel %vm1016, 1, 0
        %v1273 = vsel %vm1017, 1, 0
        %v1274 = vsel %vm1018, 1, 0
        %v1275 = vsel %vm1019, 1, 0
        %v1276 = vsel %vm1020, 1, 0
        %v1277 = vsel %vm1021, 1, 0
        %v1278 = vsel %vm1022, 1, 0
        %v1279 = vsel %vm1023, 1, 0
        %v1280 = vsel %vm1024, 1, 0
        %v1281 = vsel %vm1025, 1, 0
        %v1282 = vsel %vm1026, 1, 0
        %v1283 = vsel %vm1027, 1, 0
        %v1284 = vsel %vm1028, 1, 0
        %v1285 = vsel %vm1029, 1, 0
        %v1286 = vsel %vm1030, 1, 0
        %v1287 = vsel %vm1031, 1, 0
        %v1288 = vsel %vm1032, 1, 0
        %v1289 = vsel %vm1033, 1, 0
        %v1290 = vsel %vm1034, 1, 0
        %v1291 = vsel %vm1035, 1, 0
        %v1292 = vsel %vm1036, 1, 0
        %v1293 = vsel %vm1037, 1, 0
        %v1294 = vsel %vm1038, 1, 0
        %v1295 = vsel %vm1039, 1, 0
        %v1296 = vsel %vm1040, 1, 0
        %v1297 = vsel %vm1041, 1, 0
        %v1298 = vsel %vm1042, 1, 0
        %v1299 = vsel %vm1043, 1, 0
        %v1300 = vsel %vm1044, 1, 0
        %v1301 = vsel %vm1045, 1, 0
        %v1302 = vsel %vm1046, 1, 0
        %v1303 = vsel %vm1047, 1, 0
        %v1304 = vsel %vm1048, 1, 0
        %v1305 = vsel %vm1049, 1, 0
        %v1306 = vsel %vm1050, 1, 0
        %v1307 = vsel %vm1051, 1, 0
        %v1308 = vsel %vm1052, 1, 0
        %v1309 = vsel %vm1053, 1, 0
        %v1310 = vsel %vm1054, 1, 0
        %v1311 = vsel %vm1055, 1, 0
        %v1312 = vsel %vm1056, 1, 0
        %v1313 = vsel %vm1057, 1, 0
        %v1314 = vsel %vm1058, 1, 0
        %v1315 = vsel %vm1059, 1, 0
        %v1316 = vsel %vm1060, 1, 0
        %v1317 = vsel %vm1061, 1, 0
        %v1318 = vsel %vm1062, 1, 0
        %v1319 = vsel %vm1063, 1, 0
        %v1320 = vsel %vm1064, 1, 0
        %v1321 = vsel %vm1065, 1, 0
        %v1322 = vsel %vm1066, 1, 0
        %v1323 = vsel %vm1067, 1, 0
        %v1324 = vcvt.s32.f32 %v1068
        %v1325 = vcvt.s32.f32 %v1069
        %v1326 = vcvt.s32.f32 %v1070
        %v1327 = vcvt.s32.f32 %v1071
        %v1328 = vcvt.s32.f32 %v1072
        %v1329 = vcvt.s32.f32 %v1073
        %v1330 = vcvt.s32.f32 %v1074
        %v1331 = vcvt.s32.f32 %v1075
        %v1332 = vcvt.s32.f32 %v1076
        %v1333 = vcvt.s32.f32 %v1077
        %v1334 = vcvt.s32.f32 %v1078
        %v1335 = vcvt.s32.f32 %v1079
        %v1336 = vcvt.s32.f32 %v1080
        %v1337 = vcvt.s32.f32 %v1081
        %v1338 = vcvt.s32.f32 %v1082
        %v1339 = vcvt.s32.f32 %v1083
        %v1340 = vcvt.s32.f32 %v1084
        %v1341 = vcvt.s32.f32 %v1085
        %v1342 = vcvt.s32.f32 %v1086
        %v1343 = vcvt.s32.f32 %v1087
        %v1344 = vcvt.s32.f32 %v1088
        %v1345 = vcvt.s32.f32 %v1089
        %v1346 = vcvt.s32.f32 %v1090
        %v1347 = vcvt.s32.f32 %v1091
        %v1348 = vcvt.s32.f32 %v1092
        %v1349 = vcvt.s32.f32 %v1093
        %v1350 = vcvt.s32.f32 %v1094
        %v1351 = vcvt.s32.f32 %v1095
        %v1352 = vcvt.s32.f32 %v1096
        %v1353 = vcvt.s32.f32 %v1097
        %v1354 = vcvt.s32.f32 %v1098
        %v1355 = vcvt.s32.f32 %v1099
        %v1356 = vcvt.s32.f32 %v1100
        %v1357 = vcvt.s32.f32 %v1101
        %v1358 = vcvt.s32.f32 %v1102
        %v1359 = vcvt.s32.f32 %v1103
        %v1360 = vcvt.s32.f32 %v1104
        %v1361 = vcvt.s32.f32 %v1105
        %v1362 = vcvt.s32.f32 %v1106
        %v1363 = vcvt.s32.f32 %v1107
        %v1364 = vcvt.s32.f32 %v1108
        %v1365 = vcvt.s32.f32 %v1109
        %v1366 = vcvt.s32.f32 %v1110
        %v1367 = vcvt.s32.f32 %v1111
        %v1368 = vcvt.s32.f32 %v1112
        %v1369 = vcvt.s32.f32 %v1113
        %v1370 = vcvt.s32.f32 %v1114
        %v1371 = vcvt.s32.f32 %v1115
        %v1372 = vcvt.s32.f32 %v1116
        %v1373 = vcvt.s32.f32 %v1117
        %v1374 = vcvt.s32.f32 %v1118
        %v1375 = vcvt.s32.f32 %v1119
        %v1376 = vcvt.s32.f32 %v1120
        %v1377 = vcvt.s32.f32 %v1121
        %v1378 = vcvt.s32.f32 %v1122
        %v1379 = vcvt.s32.f32 %v1123
        %v1380 = vcvt.s32.f32 %v1124
        %v1381 = vcvt.s32.f32 %v1125
        %v1382 = vcvt.s32.f32 %v1126
        %v1383 = vcvt.s32.f32 %v1127
        %v1384 = vcvt.s32.f32 %v1128
        %v1385 = vcvt.s32.f32 %v1129
        %v1386 = vcvt.s32.f32 %v1130
        %v1387 = vcvt.s32.f32 %v1131
        %v1388 = vcvt.s32.f32 %v1132
        %v1389 = vcvt.s32.f32 %v1133
        %v1390 = vcvt.s32.f32 %v1134
        %v1391 = vcvt.s32.f32 %v1135
        %v1392 = vcvt.s32.f32 %v1136
        %v1393 = vcvt.s32.f32 %v1137
        %v1394 = vcvt.s32.f32 %v1138
        %v1395 = vcvt.s32.f32 %v1139
        %v1396 = vcvt.s32.f32 %v1140
        %v1397 = vcvt.s32.f32 %v1141
        %v1398 = vcvt.s32.f32 %v1142
        %v1399 = vcvt.s32.f32 %v1143
        %v1400 = vcvt.s32.f32 %v1144
        %v1401 = vcvt.s32.f32 %v1145
        %v1402 = vcvt.s32.f32 %v1146
        %v1403 = vcvt.s32.f32 %v1147
        %v1404 = vcvt.s32.f32 %v1148
        %v1405 = vcvt.s32.f32 %v1149
        %v1406 = vcvt.s32.f32 %v1150
        %v1407 = vcvt.s32.f32 %v1151
        %v1408 = vcvt.s32.f32 %v1152
        %v1409 = vcvt.s32.f32 %v1153
        %v1410 = vcvt.s32.f32 %v1154
        %v1411 = vcvt.s32.f32 %v1155
        %v1412 = vcvt.s32.f32 %v1156
        %v1413 = vcvt.s32.f32 %v1157
        %v1414 = vcvt.s32.f32 %v1158
        %v1415 = vcvt.s32.f32 %v1159
        %v1416 = vcvt.s32.f32 %v1160
        %v1417 = vcvt.s32.f32 %v1161
        %v1418 = vcvt.s32.f32 %v1162
        %v1419 = vcvt.s32.f32 %v1163
        %v1420 = vcvt.s32.f32 %v1164
        %v1421 = vcvt.s32.f32 %v1165
        %v1422 = vcvt.s32.f32 %v1166
        %v1423 = vcvt.s32.f32 %v1167
        %v1424 = vcvt.s32.f32 %v1168
        %v1425 = vcvt.s32.f32 %v1169
        %v1426 = vcvt.s32.f32 %v1170
        %v1427 = vcvt.s32.f32 %v1171
        %v1428 = vcvt.s32.f32 %v1172
        %v1429 = vcvt.s32.f32 %v1173
        %v1430 = vcvt.s32.f32 %v1174
        %v1431 = vcvt.s32.f32 %v1175
        %v1432 = vcvt.s32.f32 %v1176
        %v1433 = vcvt.s32.f32 %v1177
        %v1434 = vcvt.s32.f32 %v1178
        %v1435 = vcvt.s32.f32 %v1179
        %v1436 = vcvt.s32.f32 %v1180
        %v1437 = vcvt.s32.f32 %v1181
        %v1438 = vcvt.s32.f32 %v1182
        %v1439 = vcvt.s32.f32 %v1183
        %v1440 = vcvt.s32.f32 %v1184
        %v1441 = vcvt.s32.f32 %v1185
        %v1442 = vcvt.s32.f32 %v1186
        %v1443 = vcvt.s32.f32 %v1187
        %v1444 = vcvt.s32.f32 %v1188
        %v1445 = vcvt.s32.f32 %v1189
        %v1446 = vcvt.s32.f32 %v1190
        %v1447 = vcvt.s32.f32 %v1191
        %v1448 = vcvt.s32.f32 %v1192
        %v1449 = vcvt.s32.f32 %v1193
        %v1450 = vcvt.s32.f32 %v1194
        %v1451 = vcvt.s32.f32 %v1195
        %v1452 = vcvt.s32.f32 %v1196
        %v1453 = vcvt.s32.f32 %v1197
        %v1454 = vcvt.s32.f32 %v1198
        %v1455 = vcvt.s32.f32 %v1199
        %v1456 = vcvt.s32.f32 %v1200
        %v1457 = vcvt.s32.f32 %v1201
        %v1458 = vcvt.s32.f32 %v1202
        %v1459 = vcvt.s32.f32 %v1203
        %v1460 = vcvt.s32.f32 %v1204
        %v1461 = vcvt.s32.f32 %v1205
        %v1462 = vcvt.s32.f32 %v1206
        %v1463 = vcvt.s32.f32 %v1207
        %v1464 = vcvt.s32.f32 %v1208
        %v1465 = vcvt.s32.f32 %v1209
        %v1466 = vcvt.s32.f32 %v1210
        %v1467 = vcvt.s32.f32 %v1211
        %v1468 = vcvt.s32.f32 %v1212
        %v1469 = vcvt.s32.f32 %v1213
        %v1470 = vcvt.s32.f32 %v1214
        %v1471 = vcvt.s32.f32 %v1215
        %v1472 = vcvt.s32.f32 %v1216
        %v1473 = vcvt.s32.f32 %v1217
        %v1474 = vcvt.s32.f32 %v1218
        %v1475 = vcvt.s32.f32 %v1219
        %v1476 = vcvt.s32.f32 %v1220
        %v1477 = vcvt.s32.f32 %v1221
        %v1478 = vcvt.s32.f32 %v1222
        %v1479 = vcvt.s32.f32 %v1223
        %v1480 = vcvt.s32.f32 %v1224
        %v1481 = vcvt.s32.f32 %v1225
        %v1482 = vcvt.s32.f32 %v1226
        %v1483 = vcvt.s32.f32 %v1227
        %v1484 = vcvt.s32.f32 %v1228
        %v1485 = vcvt.s32.f32 %v1229
        %v1486 = vcvt.s32.f32 %v1230
        %v1487 = vcvt.s32.f32 %v1231
        %v1488 = vcvt.s32.f32 %v1232
        %v1489 = vcvt.s32.f32 %v1233
        %v1490 = vcvt.s32.f32 %v1234
        %v1491 = vcvt.s32.f32 %v1235
        %v1492 = vcvt.s32.f32 %v1236
        %v1493 = vcvt.s32.f32 %v1237
        %v1494 = vcvt.s32.f32 %v1238
        %v1495 = vcvt.s32.f32 %v1239
        %v1496 = vcvt.s32.f32 %v1240
        %v1497 = vcvt.s32.f32 %v1241
        %v1498 = vcvt.s32.f32 %v1242
        %v1499 = vcvt.s32.f32 %v1243
        %v1500 = vcvt.s32.f32 %v1244
        %v1501 = vcvt.s32.f32 %v1245
        %v1502 = vcvt.s32.f32 %v1246
        %v1503 = vcvt.s32.f32 %v1247
        %v1504 = vcvt.s32.f32 %v1248
        %v1505 = vcvt.s32.f32 %v1249
        %v1506 = vcvt.s32.f32 %v1250
        %v1507 = vcvt.s32.f32 %v1251
        %v1508 = vcvt.s32.f32 %v1252
        %v1509 = vcvt.s32.f32 %v1253
        %v1510 = vcvt.s32.f32 %v1254
        %v1511 = vcvt.s32.f32 %v1255
        %v1512 = vcvt.s32.f32 %v1256
        %v1513 = vcvt.s32.f32 %v1257
        %v1514 = vcvt.s32.f32 %v1258
        %v1515 = vcvt.s32.f32 %v1259
        %v1516 = vcvt.s32.f32 %v1260
        %v1517 = vcvt.s32.f32 %v1261
        %v1518 = vcvt.s32.f32 %v1262
        %v1519 = vcvt.s32.f32 %v1263
        %v1520 = vcvt.s32.f32 %v1264
        %v1521 = vcvt.s32.f32 %v1265
        %v1522 = vcvt.s32.f32 %v1266
        %v1523 = vcvt.s32.f32 %v1267
        %v1524 = vcvt.s32.f32 %v1268
        %v1525 = vcvt.s32.f32 %v1269
        %v1526 = vcvt.s32.f32 %v1270
        %v1527 = vcvt.s32.f32 %v1271
        %v1528 = vcvt.s32.f32 %v1272
        %v1529 = vcvt.s32.f32 %v1273
        %v1530 = vcvt.s32.f32 %v1274
        %v1531 = vcvt.s32.f32 %v1275
        %v1532 = vcvt.s32.f32 %v1276
        %v1533 = vcvt.s32.f32 %v1277
        %v1534 = vcvt.s32.f32 %v1278
        %v1535 = vcvt.s32.f32 %v1279
        %v1536 = vcvt.s32.f32 %v1280
        %v1537 = vcvt.s32.f32 %v1281
        %v1538 = vcvt.s32.f32 %v1282
        %v1539 = vcvt.s32.f32 %v1283
        %v1540 = vcvt.s32.f32 %v1284
        %v1541 = vcvt.s32.f32 %v1285
        %v1542 = vcvt.s32.f32 %v1286
        %v1543 = vcvt.s32.f32 %v1287
        %v1544 = vcvt.s32.f32 %v1288
        %v1545 = vcvt.s32.f32 %v1289
        %v1546 = vcvt.s32.f32 %v1290
        %v1547 = vcvt.s32.f32 %v1291
        %v1548 = vcvt.s32.f32 %v1292
        %v1549 = vcvt.s32.f32 %v1293
        %v1550 = vcvt.s32.f32 %v1294
        %v1551 = vcvt.s32.f32 %v1295
        %v1552 = vcvt.s32.f32 %v1296
        %v1553 = vcvt.s32.f32 %v1297
        %v1554 = vcvt.s32.f32 %v1298
        %v1555 = vcvt.s32.f32 %v1299
        %v1556 = vcvt.s32.f32 %v1300
        %v1557 = vcvt.s32.f32 %v1301
        %v1558 = vcvt.s32.f32 %v1302
        %v1559 = vcvt.s32.f32 %v1303
        %v1560 = vcvt.s32.f32 %v1304
        %v1561 = vcvt.s32.f32 %v1305
        %v1562 = vcvt.s32.f32 %v1306
        %v1563 = vcvt.s32.f32 %v1307
        %v1564 = vcvt.s32.f32 %v1308
        %v1565 = vcvt.s32.f32 %v1309
        %v1566 = vcvt.s32.f32 %v1310
        %v1567 = vcvt.s32.f32 %v1311
        %v1568 = vcvt.s32.f32 %v1312
        %v1569 = vcvt.s32.f32 %v1313
        %v1570 = vcvt.s32.f32 %v1314
        %v1571 = vcvt.s32.f32 %v1315
        %v1572 = vcvt.s32.f32 %v1316
        %v1573 = vcvt.s32.f32 %v1317
        %v1574 = vcvt.s32.f32 %v1318
        %v1575 = vcvt.s32.f32 %v1319
        %v1576 = vcvt.s32.f32 %v1320
        %v1577 = vcvt.s32.f32 %v1321
        %v1578 = vcvt.s32.f32 %v1322
        %v1579 = vcvt.s32.f32 %v1323
        %v1580 = vpack.c.bf16 %v1328, %v1324
        %v1581 = vpack.c.bf16 %v1329, %v1325
        %v1582 = vpack.c.bf16 %v1330, %v1326
        %v1583 = vpack.c.bf16 %v1331, %v1327
        %v1584 = vpack.c.bf16 %v1336, %v1332
        %v1585 = vpack.c.bf16 %v1337, %v1333
        %v1586 = vpack.c.bf16 %v1338, %v1334
        %v1587 = vpack.c.bf16 %v1339, %v1335
        %v1588 = vpack.c.bf16 %v1344, %v1340
        %v1589 = vpack.c.bf16 %v1345, %v1341
        %v1590 = vpack.c.bf16 %v1346, %v1342
        %v1591 = vpack.c.bf16 %v1347, %v1343
        %v1592 = vpack.c.bf16 %v1352, %v1348
        %v1593 = vpack.c.bf16 %v1353, %v1349
        %v1594 = vpack.c.bf16 %v1354, %v1350
        %v1595 = vpack.c.bf16 %v1355, %v1351
        %v1596 = vpack.c.bf16 %v1360, %v1356
        %v1597 = vpack.c.bf16 %v1361, %v1357
        %v1598 = vpack.c.bf16 %v1362, %v1358
        %v1599 = vpack.c.bf16 %v1363, %v1359
        %v1600 = vpack.c.bf16 %v1368, %v1364
        %v1601 = vpack.c.bf16 %v1369, %v1365
        %v1602 = vpack.c.bf16 %v1370, %v1366
        %v1603 = vpack.c.bf16 %v1371, %v1367
        %v1604 = vpack.c.bf16 %v1376, %v1372
        %v1605 = vpack.c.bf16 %v1377, %v1373
        %v1606 = vpack.c.bf16 %v1378, %v1374
        %v1607 = vpack.c.bf16 %v1379, %v1375
        %v1608 = vpack.c.bf16 %v1384, %v1380
        %v1609 = vpack.c.bf16 %v1385, %v1381
        %v1610 = vpack.c.bf16 %v1386, %v1382
        %v1611 = vpack.c.bf16 %v1387, %v1383
        %v1612 = vpack.c.bf16 %v1392, %v1388
        %v1613 = vpack.c.bf16 %v1393, %v1389
        %v1614 = vpack.c.bf16 %v1394, %v1390
        %v1615 = vpack.c.bf16 %v1395, %v1391
        %v1616 = vpack.c.bf16 %v1400, %v1396
        %v1617 = vpack.c.bf16 %v1401, %v1397
        %v1618 = vpack.c.bf16 %v1402, %v1398
        %v1619 = vpack.c.bf16 %v1403, %v1399
        %v1620 = vpack.c.bf16 %v1408, %v1404
        %v1621 = vpack.c.bf16 %v1409, %v1405
        %v1622 = vpack.c.bf16 %v1410, %v1406
        %v1623 = vpack.c.bf16 %v1411, %v1407
        %v1624 = vpack.c.bf16 %v1416, %v1412
        %v1625 = vpack.c.bf16 %v1417, %v1413
        %v1626 = vpack.c.bf16 %v1418, %v1414
        %v1627 = vpack.c.bf16 %v1419, %v1415
        %v1628 = vpack.c.bf16 %v1424, %v1420
        %v1629 = vpack.c.bf16 %v1425, %v1421
        %v1630 = vpack.c.bf16 %v1426, %v1422
        %v1631 = vpack.c.bf16 %v1427, %v1423
        %v1632 = vpack.c.bf16 %v1432, %v1428
        %v1633 = vpack.c.bf16 %v1433, %v1429
        %v1634 = vpack.c.bf16 %v1434, %v1430
        %v1635 = vpack.c.bf16 %v1435, %v1431
        %v1636 = vpack.c.bf16 %v1440, %v1436
        %v1637 = vpack.c.bf16 %v1441, %v1437
        %v1638 = vpack.c.bf16 %v1442, %v1438
        %v1639 = vpack.c.bf16 %v1443, %v1439
        %v1640 = vpack.c.bf16 %v1448, %v1444
        %v1641 = vpack.c.bf16 %v1449, %v1445
        %v1642 = vpack.c.bf16 %v1450, %v1446
        %v1643 = vpack.c.bf16 %v1451, %v1447
        %v1644 = vpack.c.bf16 %v1456, %v1452
        %v1645 = vpack.c.bf16 %v1457, %v1453
        %v1646 = vpack.c.bf16 %v1458, %v1454
        %v1647 = vpack.c.bf16 %v1459, %v1455
        %v1648 = vpack.c.bf16 %v1464, %v1460
        %v1649 = vpack.c.bf16 %v1465, %v1461
        %v1650 = vpack.c.bf16 %v1466, %v1462
        %v1651 = vpack.c.bf16 %v1467, %v1463
        %v1652 = vpack.c.bf16 %v1472, %v1468
        %v1653 = vpack.c.bf16 %v1473, %v1469
        %v1654 = vpack.c.bf16 %v1474, %v1470
        %v1655 = vpack.c.bf16 %v1475, %v1471
        %v1656 = vpack.c.bf16 %v1480, %v1476
        %v1657 = vpack.c.bf16 %v1481, %v1477
        %v1658 = vpack.c.bf16 %v1482, %v1478
        %v1659 = vpack.c.bf16 %v1483, %v1479
        %v1660 = vpack.c.bf16 %v1488, %v1484
        %v1661 = vpack.c.bf16 %v1489, %v1485
        %v1662 = vpack.c.bf16 %v1490, %v1486
        %v1663 = vpack.c.bf16 %v1491, %v1487
        %v1664 = vpack.c.bf16 %v1496, %v1492
        %v1665 = vpack.c.bf16 %v1497, %v1493
        %v1666 = vpack.c.bf16 %v1498, %v1494
        %v1667 = vpack.c.bf16 %v1499, %v1495
        %v1668 = vpack.c.bf16 %v1504, %v1500
        %v1669 = vpack.c.bf16 %v1505, %v1501
        %v1670 = vpack.c.bf16 %v1506, %v1502
        %v1671 = vpack.c.bf16 %v1507, %v1503
        %v1672 = vpack.c.bf16 %v1512, %v1508
        %v1673 = vpack.c.bf16 %v1513, %v1509
        %v1674 = vpack.c.bf16 %v1514, %v1510
        %v1675 = vpack.c.bf16 %v1515, %v1511
        %v1676 = vpack.c.bf16 %v1520, %v1516
        %v1677 = vpack.c.bf16 %v1521, %v1517
        %v1678 = vpack.c.bf16 %v1522, %v1518
        %v1679 = vpack.c.bf16 %v1523, %v1519
        %v1680 = vpack.c.bf16 %v1528, %v1524
        %v1681 = vpack.c.bf16 %v1529, %v1525
        %v1682 = vpack.c.bf16 %v1530, %v1526
        %v1683 = vpack.c.bf16 %v1531, %v1527
        %v1684 = vpack.c.bf16 %v1536, %v1532
        %v1685 = vpack.c.bf16 %v1537, %v1533
        %v1686 = vpack.c.bf16 %v1538, %v1534
        %v1687 = vpack.c.bf16 %v1539, %v1535
        %v1688 = vpack.c.bf16 %v1544, %v1540
        %v1689 = vpack.c.bf16 %v1545, %v1541
        %v1690 = vpack.c.bf16 %v1546, %v1542
        %v1691 = vpack.c.bf16 %v1547, %v1543
        %v1692 = vpack.c.bf16 %v1552, %v1548
        %v1693 = vpack.c.bf16 %v1553, %v1549
        %v1694 = vpack.c.bf16 %v1554, %v1550
        %v1695 = vpack.c.bf16 %v1555, %v1551
        %v1696 = vpack.c.bf16 %v1560, %v1556
        %v1697 = vpack.c.bf16 %v1561, %v1557
        %v1698 = vpack.c.bf16 %v1562, %v1558
        %v1699 = vpack.c.bf16 %v1563, %v1559
        %v1700 = vpack.c.bf16 %v1568, %v1564
        %v1701 = vpack.c.bf16 %v1569, %v1565
        %v1702 = vpack.c.bf16 %v1570, %v1566
        %v1703 = vpack.c.bf16 %v1571, %v1567
        %v1704 = vpack.c.bf16 %v1576, %v1572
        %v1705 = vpack.c.bf16 %v1577, %v1573
        %v1706 = vpack.c.bf16 %v1578, %v1574
        %v1707 = vpack.c.bf16 %v1579, %v1575
        %v1708 = vld [vmem:[%s502] sm:$0x77]
        %v1709 = vld [vmem:[%s502 + $0x8] sm:$0x77]
        %v1712 = vunpack.c.l.b16 %v1708
        %v1713 = vunpack.c.h.b16 %v1708
        %v1714 = vunpack.c.l.b16 %v1709
        %v1715 = vunpack.c.h.b16 %v1709
        %v1716 = vpack.c.b16 %v1712, %v1712
        %v1717 = vpack.c.b16 %v1713, %v1713
        %v1718 = vpack.c.b16 %v1714, %v1714
        %v1719 = vpack.c.b16 %v1715, %v1715
        %1724 = vmatprep.subr.bf16.mxu0 %v1581
        %1725 = vmatpush1.bf16.msra.mxu0 %v1580
        %1726 = vmatprep.subr.bf16.mxu0 %v1585
        %1727 = vmatpush1.bf16.msra.mxu0 %v1584
        %1728 = vmatprep.subr.bf16.mxu0 %v1589
        %1729 = vmatpush1.bf16.msra.mxu0 %v1588
        %1730 = vmatprep.subr.bf16.mxu0 %v1593
        %1731 = vmatpush1.bf16.msra.mxu0 %v1592
        %1732 = vmatprep.subr.bf16.mxu0 %v1597
        %1733 = vmatpush1.bf16.msra.mxu0 %v1596
        %1734 = vmatprep.subr.bf16.mxu0 %v1601
        %1735 = vmatpush1.bf16.msra.mxu0 %v1600
        %1736 = vmatprep.subr.bf16.mxu0 %v1605
        %1737 = vmatpush1.bf16.msra.mxu0 %v1604
        %1738 = vmatprep.subr.bf16.mxu0 %v1609
        %1739 = vmatpush1.bf16.msra.mxu0 %v1608
        %1740 = vmatprep.subr.bf16.mxu0 %v1613
        %1741 = vmatpush1.bf16.msra.mxu0 %v1612
        %1742 = vmatprep.subr.bf16.mxu0 %v1617
        %1743 = vmatpush1.bf16.msra.mxu0 %v1616
        %1744 = vmatprep.subr.bf16.mxu0 %v1621
        %1745 = vmatpush1.bf16.msra.mxu0 %v1620
        %1746 = vmatprep.subr.bf16.mxu0 %v1625
        %1747 = vmatpush1.bf16.msra.mxu0 %v1624
        %1748 = vmatprep.subr.bf16.mxu0 %v1629
        %1749 = vmatpush1.bf16.msra.mxu0 %v1628
        %1750 = vmatprep.subr.bf16.mxu0 %v1633
        %1751 = vmatpush1.bf16.msra.mxu0 %v1632
        %1752 = vmatprep.subr.bf16.mxu0 %v1637
        %1753 = vmatpush1.bf16.msra.mxu0 %v1636
        %1754 = vmatprep.subr.bf16.mxu0 %v1641
        %1755 = vmatpush1.bf16.msra.mxu0 %v1640
        %1756 = vmatprep.mubr.bf16.mxu0 %v1717
        %1757 = vmatmul.mubr.bf16.gmra.mrb[0].mxu0 %v1716
        %v1758 = vpop.f32.mrb[0].mxu0
        %v1759 = vadd.f32 0.0, %v1758
        %v1760 = vpop.f32.mrb[0].mxu0
        %v1761 = vadd.f32 0.0, %v1760
        %v1762 = vpop.f32.mrb[0].mxu0
        %v1763 = vpop.f32.mrb[0].mxu0
        %1764 = vdwg.mxu0
        %1765 = vmatprep.subr.bf16.mxu0 %v1645
        %1766 = vmatpush1.bf16.msra.mxu0 %v1644
        %1767 = vmatprep.subr.bf16.mxu0 %v1649
        %1768 = vmatpush1.bf16.msra.mxu0 %v1648
        %1769 = vmatprep.subr.bf16.mxu0 %v1653
        %1770 = vmatpush1.bf16.msra.mxu0 %v1652
        %1771 = vmatprep.subr.bf16.mxu0 %v1657
        %1772 = vmatpush1.bf16.msra.mxu0 %v1656
        %1773 = vmatprep.subr.bf16.mxu0 %v1661
        %1774 = vmatpush1.bf16.msra.mxu0 %v1660
        %1775 = vmatprep.subr.bf16.mxu0 %v1665
        %1776 = vmatpush1.bf16.msra.mxu0 %v1664
        %1777 = vmatprep.subr.bf16.mxu0 %v1669
        %1778 = vmatpush1.bf16.msra.mxu0 %v1668
        %1779 = vmatprep.subr.bf16.mxu0 %v1673
        %1780 = vmatpush1.bf16.msra.mxu0 %v1672
        %1781 = vmatprep.subr.bf16.mxu0 %v1677
        %1782 = vmatpush1.bf16.msra.mxu0 %v1676
        %1783 = vmatprep.subr.bf16.mxu0 %v1681
        %1784 = vmatpush1.bf16.msra.mxu0 %v1680
        %1785 = vmatprep.subr.bf16.mxu0 %v1685
        %1786 = vmatpush1.bf16.msra.mxu0 %v1684
        %1787 = vmatprep.subr.bf16.mxu0 %v1689
        %1788 = vmatpush1.bf16.msra.mxu0 %v1688
        %1789 = vmatprep.subr.bf16.mxu0 %v1693
        %1790 = vmatpush1.bf16.msra.mxu0 %v1692
        %1791 = vmatprep.subr.bf16.mxu0 %v1697
        %1792 = vmatpush1.bf16.msra.mxu0 %v1696
        %1793 = vmatprep.subr.bf16.mxu0 %v1701
        %1794 = vmatpush1.bf16.msra.mxu0 %v1700
        %1795 = vmatprep.subr.bf16.mxu0 %v1705
        %1796 = vmatpush1.bf16.msra.mxu0 %v1704
        %1797 = vmatprep.mubr.bf16.mxu0 %v1719
        %1798 = vmatmul.mubr.bf16.gmra.mrb[0].mxu0 %v1718
        %v1799 = vpop.f32.mrb[0].mxu0
        %v1800 = vadd.f32 %v1759, %v1799
        %v1801 = vpop.f32.mrb[0].mxu0
        %v1802 = vadd.f32 %v1761, %v1801
        %v1803 = vpop.f32.mrb[0].mxu0
        %v1804 = vpop.f32.mrb[0].mxu0
        %1805 = vdwg.mxu0
        %1806 = vmatprep.subr.bf16.mxu0 %v1583
        %1807 = vmatpush1.bf16.msra.mxu0 %v1582
        %1808 = vmatprep.subr.bf16.mxu0 %v1587
        %1809 = vmatpush1.bf16.msra.mxu0 %v1586
        %1810 = vmatprep.subr.bf16.mxu0 %v1591
        %1811 = vmatpush1.bf16.msra.mxu0 %v1590
        %1812 = vmatprep.subr.bf16.mxu0 %v1595
        %1813 = vmatpush1.bf16.msra.mxu0 %v1594
        %1814 = vmatprep.subr.bf16.mxu0 %v1599
        %1815 = vmatpush1.bf16.msra.mxu0 %v1598
        %1816 = vmatprep.subr.bf16.mxu0 %v1603
        %1817 = vmatpush1.bf16.msra.mxu0 %v1602
        %1818 = vmatprep.subr.bf16.mxu0 %v1607
        %1819 = vmatpush1.bf16.msra.mxu0 %v1606
        %1820 = vmatprep.subr.bf16.mxu0 %v1611
        %1821 = vmatpush1.bf16.msra.mxu0 %v1610
        %1822 = vmatprep.subr.bf16.mxu0 %v1615
        %1823 = vmatpush1.bf16.msra.mxu0 %v1614
        %1824 = vmatprep.subr.bf16.mxu0 %v1619
        %1825 = vmatpush1.bf16.msra.mxu0 %v1618
        %1826 = vmatprep.subr.bf16.mxu0 %v1623
        %1827 = vmatpush1.bf16.msra.mxu0 %v1622
        %1828 = vmatprep.subr.bf16.mxu0 %v1627
        %1829 = vmatpush1.bf16.msra.mxu0 %v1626
        %1830 = vmatprep.subr.bf16.mxu0 %v1631
        %1831 = vmatpush1.bf16.msra.mxu0 %v1630
        %1832 = vmatprep.subr.bf16.mxu0 %v1635
        %1833 = vmatpush1.bf16.msra.mxu0 %v1634
        %1834 = vmatprep.subr.bf16.mxu0 %v1639
        %1835 = vmatpush1.bf16.msra.mxu0 %v1638
        %1836 = vmatprep.subr.bf16.mxu0 %v1643
        %1837 = vmatpush1.bf16.msra.mxu0 %v1642
        %1838 = vmatprep.mubr.bf16.mxu0 %v1717
        %1839 = vmatmul.mubr.bf16.gmra.mrb[0].mxu0 %v1716
        %v1840 = vpop.f32.mrb[0].mxu0
        %v1841 = vadd.f32 0.0, %v1840
        %v1842 = vpop.f32.mrb[0].mxu0
        %v1843 = vadd.f32 0.0, %v1842
        %v1844 = vpop.f32.mrb[0].mxu0
        %v1845 = vpop.f32.mrb[0].mxu0
        %1846 = vdwg.mxu0
        %1847 = vmatprep.subr.bf16.mxu0 %v1647
        %1848 = vmatpush1.bf16.msra.mxu0 %v1646
        %1849 = vmatprep.subr.bf16.mxu0 %v1651
        %1850 = vmatpush1.bf16.msra.mxu0 %v1650
        %1851 = vmatprep.subr.bf16.mxu0 %v1655
        %1852 = vmatpush1.bf16.msra.mxu0 %v1654
        %1853 = vmatprep.subr.bf16.mxu0 %v1659
        %1854 = vmatpush1.bf16.msra.mxu0 %v1658
        %1855 = vmatprep.subr.bf16.mxu0 %v1663
        %1856 = vmatpush1.bf16.msra.mxu0 %v1662
        %1857 = vmatprep.subr.bf16.mxu0 %v1667
        %1858 = vmatpush1.bf16.msra.mxu0 %v1666
        %1859 = vmatprep.subr.bf16.mxu0 %v1671
        %1860 = vmatpush1.bf16.msra.mxu0 %v1670
        %1861 = vmatprep.subr.bf16.mxu0 %v1675
        %1862 = vmatpush1.bf16.msra.mxu0 %v1674
        %1863 = vmatprep.subr.bf16.mxu0 %v1679
        %1864 = vmatpush1.bf16.msra.mxu0 %v1678
        %1865 = vmatprep.subr.bf16.mxu0 %v1683
        %1866 = vmatpush1.bf16.msra.mxu0 %v1682
        %1867 = vmatprep.subr.bf16.mxu0 %v1687
        %1868 = vmatpush1.bf16.msra.mxu0 %v1686
        %1869 = vmatprep.subr.bf16.mxu0 %v1691
        %1870 = vmatpush1.bf16.msra.mxu0 %v1690
        %1871 = vmatprep.subr.bf16.mxu0 %v1695
        %1872 = vmatpush1.bf16.msra.mxu0 %v1694
        %1873 = vmatprep.subr.bf16.mxu0 %v1699
        %1874 = vmatpush1.bf16.msra.mxu0 %v1698
        %1875 = vmatprep.subr.bf16.mxu0 %v1703
        %1876 = vmatpush1.bf16.msra.mxu0 %v1702
        %1877 = vmatprep.subr.bf16.mxu0 %v1707
        %1878 = vmatpush1.bf16.msra.mxu0 %v1706
        %1879 = vmatprep.mubr.bf16.mxu0 %v1719
        %1880 = vmatmul.mubr.bf16.gmra.mrb[0].mxu0 %v1718
        %v1881 = vpop.f32.mrb[0].mxu0
        %v1882 = vadd.f32 %v1841, %v1881
        %v1883 = vpop.f32.mrb[0].mxu0
        %v1884 = vadd.f32 %v1843, %v1883
        %v1885 = vpop.f32.mrb[0].mxu0
        %v1886 = vpop.f32.mrb[0].mxu0
        %1887 = vdwg.mxu0
        %1888 = vst [vmem:[#allocation2] sm:$0x1f] %v1800
        %1889 = vst [vmem:[#allocation2 + $0x8] sm:$0x1f] %v1802
        %1890 = vst [vmem:[#allocation2 + $0x10] sm:$0x1f] %v1882
        %1891 = vst [vmem:[#allocation2 + $0x18] sm:$0x1f] %v1884
        %s1892 = sld [smem:[#allocation8 + %s58]]
        %p1893 = scmp.ne.s32.totalorder %s1892, 0
        // Predicated region
        $region53: #{tpu_custom_call.1} parent=43 // pred_check
          %p1894 = pneg %p1893
        $region54: #{tpu_custom_call.1} parent=43 // pred_check_branch
          %1896 = sbr.rel (%p1894) target = $region56
        $region55: #{tpu_custom_call.1} parent=43 // pred_region
          %v1897 = vld [vmem:[%s529] sm:$0xff]
          %v1898 = vld [vmem:[%s529 + $0x8] sm:$0xff]
          %v1899 = vld [vmem:[%s529 + $0x10] sm:$0xff]
          %v1900 = vld [vmem:[%s529 + $0x18] sm:$0xff]
          %v1901 = vld [vmem:[%s529 + $0x20] sm:$0xff]
          %v1902 = vld [vmem:[%s529 + $0x28] sm:$0xff]
          %v1903 = vld [vmem:[%s529 + $0x30] sm:$0xff]
          %v1904 = vld [vmem:[%s529 + $0x38] sm:$0xff]
          %v1905 = vld [vmem:[%s529 + $0x40] sm:$0xff]
          %v1906 = vld [vmem:[%s529 + $0x48] sm:$0xff]
          %v1907 = vld [vmem:[%s529 + $0x50] sm:$0xff]
          %v1908 = vld [vmem:[%s529 + $0x58] sm:$0xff]
          %v1909 = vld [vmem:[%s529 + $0x60] sm:$0xff]
          %v1910 = vld [vmem:[%s529 + $0x68] sm:$0xff]
          %v1911 = vld [vmem:[%s529 + $0x70] sm:$0xff]
          %v1912 = vld [vmem:[%s529 + $0x78] sm:$0xff]
          %v1913 = vld [vmem:[%s529 + $0x80] sm:$0xff]
          %v1914 = vld [vmem:[%s529 + $0x88] sm:$0xff]
          %v1915 = vld [vmem:[%s529 + $0x90] sm:$0xff]
          %v1916 = vld [vmem:[%s529 + $0x98] sm:$0xff]
          %v1917 = vld [vmem:[%s529 + $0xa0] sm:$0xff]
          %v1918 = vld [vmem:[%s529 + $0xa8] sm:$0xff]
          %v1919 = vld [vmem:[%s529 + $0xb0] sm:$0xff]
          %v1920 = vld [vmem:[%s529 + $0xb8] sm:$0xff]
          %v1921 = vld [vmem:[%s529 + $0xc0] sm:$0xff]
          %v1922 = vld [vmem:[%s529 + $0xc8] sm:$0xff]
          %v1923 = vld [vmem:[%s529 + $0xd0] sm:$0xff]
          %v1924 = vld [vmem:[%s529 + $0xd8] sm:$0xff]
          %v1925 = vld [vmem:[%s529 + $0xe0] sm:$0xff]
          %v1926 = vld [vmem:[%s529 + $0xe8] sm:$0xff]
          %v1927 = vld [vmem:[%s529 + $0xf0] sm:$0xff]
          %v1928 = vld [vmem:[%s529 + $0xf8] sm:$0xff]
          %v1929 = vld [vmem:[%s529 + $0x100] sm:$0xff]
          %v1930 = vld [vmem:[%s529 + $0x108] sm:$0xff]
          %v1931 = vld [vmem:[%s529 + $0x110] sm:$0xff]
          %v1932 = vld [vmem:[%s529 + $0x118] sm:$0xff]
          %v1933 = vld [vmem:[%s529 + $0x120] sm:$0xff]
          %v1934 = vld [vmem:[%s529 + $0x128] sm:$0xff]
          %v1935 = vld [vmem:[%s529 + $0x130] sm:$0xff]
          %v1936 = vld [vmem:[%s529 + $0x138] sm:$0xff]
          %v1937 = vld [vmem:[%s529 + $0x140] sm:$0xff]
          %v1938 = vld [vmem:[%s529 + $0x148] sm:$0xff]
          %v1939 = vld [vmem:[%s529 + $0x150] sm:$0xff]
          %v1940 = vld [vmem:[%s529 + $0x158] sm:$0xff]
          %v1941 = vld [vmem:[%s529 + $0x160] sm:$0xff]
          %v1942 = vld [vmem:[%s529 + $0x168] sm:$0xff]
          %v1943 = vld [vmem:[%s529 + $0x170] sm:$0xff]
          %v1944 = vld [vmem:[%s529 + $0x178] sm:$0xff]
          %v1945 = vld [vmem:[%s529 + $0x180] sm:$0xff]
          %v1946 = vld [vmem:[%s529 + $0x188] sm:$0xff]
          %v1947 = vld [vmem:[%s529 + $0x190] sm:$0xff]
          %v1948 = vld [vmem:[%s529 + $0x198] sm:$0xff]
          %v1949 = vld [vmem:[%s529 + $0x1a0] sm:$0xff]
          %v1950 = vld [vmem:[%s529 + $0x1a8] sm:$0xff]
          %v1951 = vld [vmem:[%s529 + $0x1b0] sm:$0xff]
          %v1952 = vld [vmem:[%s529 + $0x1b8] sm:$0xff]
          %v1953 = vld [vmem:[%s529 + $0x1c0] sm:$0xff]
          %v1954 = vld [vmem:[%s529 + $0x1c8] sm:$0xff]
          %v1955 = vld [vmem:[%s529 + $0x1d0] sm:$0xff]
          %v1956 = vld [vmem:[%s529 + $0x1d8] sm:$0xff]
          %v1957 = vld [vmem:[%s529 + $0x1e0] sm:$0xff]
          %v1958 = vld [vmem:[%s529 + $0x1e8] sm:$0xff]
          %v1959 = vld [vmem:[%s529 + $0x1f0] sm:$0xff]
          %v1960 = vld [vmem:[%s529 + $0x1f8] sm:$0xff]
          %1961 = vset.pattern.permute.xlu0 0
          %1962 = vperm.xlu0 %1961, %v1897
          %v1963 = vpop.permute.xlu0 %1962
          %1964 = vset.pattern.permute.xlu0 0
          %1965 = vperm.xlu0 %1964, %v1898
          %v1966 = vpop.permute.xlu0 %1965
          %1967 = vset.pattern.permute.xlu0 0
          %1968 = vperm.xlu0 %1967, %v1899
          %v1969 = vpop.permute.xlu0 %1968
          %1970 = vset.pattern.permute.xlu0 0
          %1971 = vperm.xlu0 %1970, %v1900
          %v1972 = vpop.permute.xlu0 %1971
          %1973 = vset.pattern.permute.xlu0 0
          %1974 = vperm.xlu0 %1973, %v1901
          %v1975 = vpop.permute.xlu0 %1974
          %1976 = vset.pattern.permute.xlu0 0
          %1977 = vperm.xlu0 %1976, %v1902
          %v1978 = vpop.permute.xlu0 %1977
          %1979 = vset.pattern.permute.xlu0 0
          %1980 = vperm.xlu0 %1979, %v1903
          %v1981 = vpop.permute.xlu0 %1980
          %1982 = vset.pattern.permute.xlu0 0
          %1983 = vperm.xlu0 %1982, %v1904
          %v1984 = vpop.permute.xlu0 %1983
          %1985 = vset.pattern.permute.xlu0 0
          %1986 = vperm.xlu0 %1985, %v1905
          %v1987 = vpop.permute.xlu0 %1986
          %1988 = vset.pattern.permute.xlu0 0
          %1989 = vperm.xlu0 %1988, %v1906
          %v1990 = vpop.permute.xlu0 %1989
          %1991 = vset.pattern.permute.xlu0 0
          %1992 = vperm.xlu0 %1991, %v1907
          %v1993 = vpop.permute.xlu0 %1992
          %1994 = vset.pattern.permute.xlu0 0
          %1995 = vperm.xlu0 %1994, %v1908
          %v1996 = vpop.permute.xlu0 %1995
          %1997 = vset.pattern.permute.xlu0 0
          %1998 = vperm.xlu0 %1997, %v1909
          %v1999 = vpop.permute.xlu0 %1998
          %2000 = vset.pattern.permute.xlu0 0
          %2001 = vperm.xlu0 %2000, %v1910
          %v2002 = vpop.permute.xlu0 %2001
          %2003 = vset.pattern.permute.xlu0 0
          %2004 = vperm.xlu0 %2003, %v1911
          %v2005 = vpop.permute.xlu0 %2004
          %2006 = vset.pattern.permute.xlu0 0
          %2007 = vperm.xlu0 %2006, %v1912
          %v2008 = vpop.permute.xlu0 %2007
          %2009 = vset.pattern.permute.xlu0 0
          %2010 = vperm.xlu0 %2009, %v1913
          %v2011 = vpop.permute.xlu0 %2010
          %2012 = vset.pattern.permute.xlu0 0
          %2013 = vperm.xlu0 %2012, %v1914
          %v2014 = vpop.permute.xlu0 %2013
          %2015 = vset.pattern.permute.xlu0 0
          %2016 = vperm.xlu0 %2015, %v1915
          %v2017 = vpop.permute.xlu0 %2016
          %2018 = vset.pattern.permute.xlu0 0
          %2019 = vperm.xlu0 %2018, %v1916
          %v2020 = vpop.permute.xlu0 %2019
          %2021 = vset.pattern.permute.xlu0 0
          %2022 = vperm.xlu0 %2021, %v1917
          %v2023 = vpop.permute.xlu0 %2022
          %2024 = vset.pattern.permute.xlu0 0
          %2025 = vperm.xlu0 %2024, %v1918
          %v2026 = vpop.permute.xlu0 %2025
          %2027 = vset.pattern.permute.xlu0 0
          %2028 = vperm.xlu0 %2027, %v1919
          %v2029 = vpop.permute.xlu0 %2028
          %2030 = vset.pattern.permute.xlu0 0
          %2031 = vperm.xlu0 %2030, %v1920
          %v2032 = vpop.permute.xlu0 %2031
          %2033 = vset.pattern.permute.xlu0 0
          %2034 = vperm.xlu0 %2033, %v1921
          %v2035 = vpop.permute.xlu0 %2034
          %2036 = vset.pattern.permute.xlu0 0
          %2037 = vperm.xlu0 %2036, %v1922
          %v2038 = vpop.permute.xlu0 %2037
          %2039 = vset.pattern.permute.xlu0 0
          %2040 = vperm.xlu0 %2039, %v1923
          %v2041 = vpop.permute.xlu0 %2040
          %2042 = vset.pattern.permute.xlu0 0
          %2043 = vperm.xlu0 %2042, %v1924
          %v2044 = vpop.permute.xlu0 %2043
          %2045 = vset.pattern.permute.xlu0 0
          %2046 = vperm.xlu0 %2045, %v1925
          %v2047 = vpop.permute.xlu0 %2046
          %2048 = vset.pattern.permute.xlu0 0
          %2049 = vperm.xlu0 %2048, %v1926
          %v2050 = vpop.permute.xlu0 %2049
          %2051 = vset.pattern.permute.xlu0 0
          %2052 = vperm.xlu0 %2051, %v1927
          %v2053 = vpop.permute.xlu0 %2052
          %2054 = vset.pattern.permute.xlu0 0
          %2055 = vperm.xlu0 %2054, %v1928
          %v2056 = vpop.permute.xlu0 %2055
          %2057 = vset.pattern.permute.xlu0 0
          %2058 = vperm.xlu0 %2057, %v1929
          %v2059 = vpop.permute.xlu0 %2058
          %2060 = vset.pattern.permute.xlu0 0
          %2061 = vperm.xlu0 %2060, %v1930
          %v2062 = vpop.permute.xlu0 %2061
          %2063 = vset.pattern.permute.xlu0 0
          %2064 = vperm.xlu0 %2063, %v1931
          %v2065 = vpop.permute.xlu0 %2064
          %2066 = vset.pattern.permute.xlu0 0
          %2067 = vperm.xlu0 %2066, %v1932
          %v2068 = vpop.permute.xlu0 %2067
          %2069 = vset.pattern.permute.xlu0 0
          %2070 = vperm.xlu0 %2069, %v1933
          %v2071 = vpop.permute.xlu0 %2070
          %2072 = vset.pattern.permute.xlu0 0
          %2073 = vperm.xlu0 %2072, %v1934
          %v2074 = vpop.permute.xlu0 %2073
          %2075 = vset.pattern.permute.xlu0 0
          %2076 = vperm.xlu0 %2075, %v1935
          %v2077 = vpop.permute.xlu0 %2076
          %2078 = vset.pattern.permute.xlu0 0
          %2079 = vperm.xlu0 %2078, %v1936
          %v2080 = vpop.permute.xlu0 %2079
          %2081 = vset.pattern.permute.xlu0 0
          %2082 = vperm.xlu0 %2081, %v1937
          %v2083 = vpop.permute.xlu0 %2082
          %2084 = vset.pattern.permute.xlu0 0
          %2085 = vperm.xlu0 %2084, %v1938
          %v2086 = vpop.permute.xlu0 %2085
          %2087 = vset.pattern.permute.xlu0 0
          %2088 = vperm.xlu0 %2087, %v1939
          %v2089 = vpop.permute.xlu0 %2088
          %2090 = vset.pattern.permute.xlu0 0
          %2091 = vperm.xlu0 %2090, %v1940
          %v2092 = vpop.permute.xlu0 %2091
          %2093 = vset.pattern.permute.xlu0 0
          %2094 = vperm.xlu0 %2093, %v1941
          %v2095 = vpop.permute.xlu0 %2094
          %2096 = vset.pattern.permute.xlu0 0
          %2097 = vperm.xlu0 %2096, %v1942
          %v2098 = vpop.permute.xlu0 %2097
          %2099 = vset.pattern.permute.xlu0 0
          %2100 = vperm.xlu0 %2099, %v1943
          %v2101 = vpop.permute.xlu0 %2100
          %2102 = vset.pattern.permute.xlu0 0
          %2103 = vperm.xlu0 %2102, %v1944
          %v2104 = vpop.permute.xlu0 %2103
          %2105 = vset.pattern.permute.xlu0 0
          %2106 = vperm.xlu0 %2105, %v1945
          %v2107 = vpop.permute.xlu0 %2106
          %2108 = vset.pattern.permute.xlu0 0
          %2109 = vperm.xlu0 %2108, %v1946
          %v2110 = vpop.permute.xlu0 %2109
          %2111 = vset.pattern.permute.xlu0 0
          %2112 = vperm.xlu0 %2111, %v1947
          %v2113 = vpop.permute.xlu0 %2112
          %2114 = vset.pattern.permute.xlu0 0
          %2115 = vperm.xlu0 %2114, %v1948
          %v2116 = vpop.permute.xlu0 %2115
          %2117 = vset.pattern.permute.xlu0 0
          %2118 = vperm.xlu0 %2117, %v1949
          %v2119 = vpop.permute.xlu0 %2118
          %2120 = vset.pattern.permute.xlu0 0
          %2121 = vperm.xlu0 %2120, %v1950
          %v2122 = vpop.permute.xlu0 %2121
          %2123 = vset.pattern.permute.xlu0 0
          %2124 = vperm.xlu0 %2123, %v1951
          %v2125 = vpop.permute.xlu0 %2124
          %2126 = vset.pattern.permute.xlu0 0
          %2127 = vperm.xlu0 %2126, %v1952
          %v2128 = vpop.permute.xlu0 %2127
          %2129 = vset.pattern.permute.xlu0 0
          %2130 = vperm.xlu0 %2129, %v1953
          %v2131 = vpop.permute.xlu0 %2130
          %2132 = vset.pattern.permute.xlu0 0
          %2133 = vperm.xlu0 %2132, %v1954
          %v2134 = vpop.permute.xlu0 %2133
          %2135 = vset.pattern.permute.xlu0 0
          %2136 = vperm.xlu0 %2135, %v1955
          %v2137 = vpop.permute.xlu0 %2136
          %2138 = vset.pattern.permute.xlu0 0
          %2139 = vperm.xlu0 %2138, %v1956
          %v2140 = vpop.permute.xlu0 %2139
          %2141 = vset.pattern.permute.xlu0 0
          %2142 = vperm.xlu0 %2141, %v1957
          %v2143 = vpop.permute.xlu0 %2142
          %2144 = vset.pattern.permute.xlu0 0
          %2145 = vperm.xlu0 %2144, %v1958
          %v2146 = vpop.permute.xlu0 %2145
          %2147 = vset.pattern.permute.xlu0 0
          %2148 = vperm.xlu0 %2147, %v1959
          %v2149 = vpop.permute.xlu0 %2148
          %2150 = vset.pattern.permute.xlu0 0
          %2151 = vperm.xlu0 %2150, %v1960
          %v2152 = vpop.permute.xlu0 %2151
          %vm2153 = vcmp.eq.s32.totalorder %v1963, %v552
          %vm2154 = vcmp.eq.s32.totalorder %v1963, %v553
          %vm2155 = vcmp.eq.s32.totalorder %v1963, %v554
          %vm2156 = vcmp.eq.s32.totalorder %v1963, %v555
          %vm2157 = vcmp.eq.s32.totalorder %v1966, %v552
          %vm2158 = vcmp.eq.s32.totalorder %v1966, %v553
          %vm2159 = vcmp.eq.s32.totalorder %v1966, %v554
          %vm2160 = vcmp.eq.s32.totalorder %v1966, %v555
          %vm2161 = vcmp.eq.s32.totalorder %v1969, %v552
          %vm2162 = vcmp.eq.s32.totalorder %v1969, %v553
          %vm2163 = vcmp.eq.s32.totalorder %v1969, %v554
          %vm2164 = vcmp.eq.s32.totalorder %v1969, %v555
          %vm2165 = vcmp.eq.s32.totalorder %v1972, %v552
          %vm2166 = vcmp.eq.s32.totalorder %v1972, %v553
          %vm2167 = vcmp.eq.s32.totalorder %v1972, %v554
          %vm2168 = vcmp.eq.s32.totalorder %v1972, %v555
          %vm2169 = vcmp.eq.s32.totalorder %v1975, %v552
          %vm2170 = vcmp.eq.s32.totalorder %v1975, %v553
          %vm2171 = vcmp.eq.s32.totalorder %v1975, %v554
          %vm2172 = vcmp.eq.s32.totalorder %v1975, %v555
          %vm2173 = vcmp.eq.s32.totalorder %v1978, %v552
          %vm2174 = vcmp.eq.s32.totalorder %v1978, %v553
          %vm2175 = vcmp.eq.s32.totalorder %v1978, %v554
          %vm2176 = vcmp.eq.s32.totalorder %v1978, %v555
          %vm2177 = vcmp.eq.s32.totalorder %v1981, %v552
          %vm2178 = vcmp.eq.s32.totalorder %v1981, %v553
          %vm2179 = vcmp.eq.s32.totalorder %v1981, %v554
          %vm2180 = vcmp.eq.s32.totalorder %v1981, %v555
          %vm2181 = vcmp.eq.s32.totalorder %v1984, %v552
          %vm2182 = vcmp.eq.s32.totalorder %v1984, %v553
          %vm2183 = vcmp.eq.s32.totalorder %v1984, %v554
          %vm2184 = vcmp.eq.s32.totalorder %v1984, %v555
          %vm2185 = vcmp.eq.s32.totalorder %v1987, %v552
          %vm2186 = vcmp.eq.s32.totalorder %v1987, %v553
          %vm2187 = vcmp.eq.s32.totalorder %v1987, %v554
          %vm2188 = vcmp.eq.s32.totalorder %v1987, %v555
          %vm2189 = vcmp.eq.s32.totalorder %v1990, %v552
          %vm2190 = vcmp.eq.s32.totalorder %v1990, %v553
          %vm2191 = vcmp.eq.s32.totalorder %v1990, %v554
          %vm2192 = vcmp.eq.s32.totalorder %v1990, %v555
          %vm2193 = vcmp.eq.s32.totalorder %v1993, %v552
          %vm2194 = vcmp.eq.s32.totalorder %v1993, %v553
          %vm2195 = vcmp.eq.s32.totalorder %v1993, %v554
          %vm2196 = vcmp.eq.s32.totalorder %v1993, %v555
          %vm2197 = vcmp.eq.s32.totalorder %v1996, %v552
          %vm2198 = vcmp.eq.s32.totalorder %v1996, %v553
          %vm2199 = vcmp.eq.s32.totalorder %v1996, %v554
          %vm2200 = vcmp.eq.s32.totalorder %v1996, %v555
          %vm2201 = vcmp.eq.s32.totalorder %v1999, %v552
          %vm2202 = vcmp.eq.s32.totalorder %v1999, %v553
          %vm2203 = vcmp.eq.s32.totalorder %v1999, %v554
          %vm2204 = vcmp.eq.s32.totalorder %v1999, %v555
          %vm2205 = vcmp.eq.s32.totalorder %v2002, %v552
          %vm2206 = vcmp.eq.s32.totalorder %v2002, %v553
          %vm2207 = vcmp.eq.s32.totalorder %v2002, %v554
          %vm2208 = vcmp.eq.s32.totalorder %v2002, %v555
          %vm2209 = vcmp.eq.s32.totalorder %v2005, %v552
          %vm2210 = vcmp.eq.s32.totalorder %v2005, %v553
          %vm2211 = vcmp.eq.s32.totalorder %v2005, %v554
          %vm2212 = vcmp.eq.s32.totalorder %v2005, %v555
          %vm2213 = vcmp.eq.s32.totalorder %v2008, %v552
          %vm2214 = vcmp.eq.s32.totalorder %v2008, %v553
          %vm2215 = vcmp.eq.s32.totalorder %v2008, %v554
          %vm2216 = vcmp.eq.s32.totalorder %v2008, %v555
          %vm2217 = vcmp.eq.s32.totalorder %v2011, %v552
          %vm2218 = vcmp.eq.s32.totalorder %v2011, %v553
          %vm2219 = vcmp.eq.s32.totalorder %v2011, %v554
          %vm2220 = vcmp.eq.s32.totalorder %v2011, %v555
          %vm2221 = vcmp.eq.s32.totalorder %v2014, %v552
          %vm2222 = vcmp.eq.s32.totalorder %v2014, %v553
          %vm2223 = vcmp.eq.s32.totalorder %v2014, %v554
          %vm2224 = vcmp.eq.s32.totalorder %v2014, %v555
          %vm2225 = vcmp.eq.s32.totalorder %v2017, %v552
          %vm2226 = vcmp.eq.s32.totalorder %v2017, %v553
          %vm2227 = vcmp.eq.s32.totalorder %v2017, %v554
          %vm2228 = vcmp.eq.s32.totalorder %v2017, %v555
          %vm2229 = vcmp.eq.s32.totalorder %v2020, %v552
          %vm2230 = vcmp.eq.s32.totalorder %v2020, %v553
          %vm2231 = vcmp.eq.s32.totalorder %v2020, %v554
          %vm2232 = vcmp.eq.s32.totalorder %v2020, %v555
          %vm2233 = vcmp.eq.s32.totalorder %v2023, %v552
          %vm2234 = vcmp.eq.s32.totalorder %v2023, %v553
          %vm2235 = vcmp.eq.s32.totalorder %v2023, %v554
          %vm2236 = vcmp.eq.s32.totalorder %v2023, %v555
          %vm2237 = vcmp.eq.s32.totalorder %v2026, %v552
          %vm2238 = vcmp.eq.s32.totalorder %v2026, %v553
          %vm2239 = vcmp.eq.s32.totalorder %v2026, %v554
          %vm2240 = vcmp.eq.s32.totalorder %v2026, %v555
          %vm2241 = vcmp.eq.s32.totalorder %v2029, %v552
          %vm2242 = vcmp.eq.s32.totalorder %v2029, %v553
          %vm2243 = vcmp.eq.s32.totalorder %v2029, %v554
          %vm2244 = vcmp.eq.s32.totalorder %v2029, %v555
          %vm2245 = vcmp.eq.s32.totalorder %v2032, %v552
          %vm2246 = vcmp.eq.s32.totalorder %v2032, %v553
          %vm2247 = vcmp.eq.s32.totalorder %v2032, %v554
          %vm2248 = vcmp.eq.s32.totalorder %v2032, %v555
          %vm2249 = vcmp.eq.s32.totalorder %v2035, %v552
          %vm2250 = vcmp.eq.s32.totalorder %v2035, %v553
          %vm2251 = vcmp.eq.s32.totalorder %v2035, %v554
          %vm2252 = vcmp.eq.s32.totalorder %v2035, %v555
          %vm2253 = vcmp.eq.s32.totalorder %v2038, %v552
          %vm2254 = vcmp.eq.s32.totalorder %v2038, %v553
          %vm2255 = vcmp.eq.s32.totalorder %v2038, %v554
          %vm2256 = vcmp.eq.s32.totalorder %v2038, %v555
          %vm2257 = vcmp.eq.s32.totalorder %v2041, %v552
          %vm2258 = vcmp.eq.s32.totalorder %v2041, %v553
          %vm2259 = vcmp.eq.s32.totalorder %v2041, %v554
          %vm2260 = vcmp.eq.s32.totalorder %v2041, %v555
          %vm2261 = vcmp.eq.s32.totalorder %v2044, %v552
          %vm2262 = vcmp.eq.s32.totalorder %v2044, %v553
          %vm2263 = vcmp.eq.s32.totalorder %v2044, %v554
          %vm2264 = vcmp.eq.s32.totalorder %v2044, %v555
          %vm2265 = vcmp.eq.s32.totalorder %v2047, %v552
          %vm2266 = vcmp.eq.s32.totalorder %v2047, %v553
          %vm2267 = vcmp.eq.s32.totalorder %v2047, %v554
          %vm2268 = vcmp.eq.s32.totalorder %v2047, %v555
          %vm2269 = vcmp.eq.s32.totalorder %v2050, %v552
          %vm2270 = vcmp.eq.s32.totalorder %v2050, %v553
          %vm2271 = vcmp.eq.s32.totalorder %v2050, %v554
          %vm2272 = vcmp.eq.s32.totalorder %v2050, %v555
          %vm2273 = vcmp.eq.s32.totalorder %v2053, %v552
          %vm2274 = vcmp.eq.s32.totalorder %v2053, %v553
          %vm2275 = vcmp.eq.s32.totalorder %v2053, %v554
          %vm2276 = vcmp.eq.s32.totalorder %v2053, %v555
          %vm2277 = vcmp.eq.s32.totalorder %v2056, %v552
          %vm2278 = vcmp.eq.s32.totalorder %v2056, %v553
          %vm2279 = vcmp.eq.s32.totalorder %v2056, %v554
          %vm2280 = vcmp.eq.s32.totalorder %v2056, %v555
          %vm2281 = vcmp.eq.s32.totalorder %v2059, %v552
          %vm2282 = vcmp.eq.s32.totalorder %v2059, %v553
          %vm2283 = vcmp.eq.s32.totalorder %v2059, %v554
          %vm2284 = vcmp.eq.s32.totalorder %v2059, %v555
          %vm2285 = vcmp.eq.s32.totalorder %v2062, %v552
          %vm2286 = vcmp.eq.s32.totalorder %v2062, %v553
          %vm2287 = vcmp.eq.s32.totalorder %v2062, %v554
          %vm2288 = vcmp.eq.s32.totalorder %v2062, %v555
          %vm2289 = vcmp.eq.s32.totalorder %v2065, %v552
          %vm2290 = vcmp.eq.s32.totalorder %v2065, %v553
          %vm2291 = vcmp.eq.s32.totalorder %v2065, %v554
          %vm2292 = vcmp.eq.s32.totalorder %v2065, %v555
          %vm2293 = vcmp.eq.s32.totalorder %v2068, %v552
          %vm2294 = vcmp.eq.s32.totalorder %v2068, %v553
          %vm2295 = vcmp.eq.s32.totalorder %v2068, %v554
          %vm2296 = vcmp.eq.s32.totalorder %v2068, %v555
          %vm2297 = vcmp.eq.s32.totalorder %v2071, %v552
          %vm2298 = vcmp.eq.s32.totalorder %v2071, %v553
          %vm2299 = vcmp.eq.s32.totalorder %v2071, %v554
          %vm2300 = vcmp.eq.s32.totalorder %v2071, %v555
          %vm2301 = vcmp.eq.s32.totalorder %v2074, %v552
          %vm2302 = vcmp.eq.s32.totalorder %v2074, %v553
          %vm2303 = vcmp.eq.s32.totalorder %v2074, %v554
          %vm2304 = vcmp.eq.s32.totalorder %v2074, %v555
          %vm2305 = vcmp.eq.s32.totalorder %v2077, %v552
          %vm2306 = vcmp.eq.s32.totalorder %v2077, %v553
          %vm2307 = vcmp.eq.s32.totalorder %v2077, %v554
          %vm2308 = vcmp.eq.s32.totalorder %v2077, %v555
          %vm2309 = vcmp.eq.s32.totalorder %v2080, %v552
          %vm2310 = vcmp.eq.s32.totalorder %v2080, %v553
          %vm2311 = vcmp.eq.s32.totalorder %v2080, %v554
          %vm2312 = vcmp.eq.s32.totalorder %v2080, %v555
          %vm2313 = vcmp.eq.s32.totalorder %v2083, %v552
          %vm2314 = vcmp.eq.s32.totalorder %v2083, %v553
          %vm2315 = vcmp.eq.s32.totalorder %v2083, %v554
          %vm2316 = vcmp.eq.s32.totalorder %v2083, %v555
          %vm2317 = vcmp.eq.s32.totalorder %v2086, %v552
          %vm2318 = vcmp.eq.s32.totalorder %v2086, %v553
          %vm2319 = vcmp.eq.s32.totalorder %v2086, %v554
          %vm2320 = vcmp.eq.s32.totalorder %v2086, %v555
          %vm2321 = vcmp.eq.s32.totalorder %v2089, %v552
          %vm2322 = vcmp.eq.s32.totalorder %v2089, %v553
          %vm2323 = vcmp.eq.s32.totalorder %v2089, %v554
          %vm2324 = vcmp.eq.s32.totalorder %v2089, %v555
          %vm2325 = vcmp.eq.s32.totalorder %v2092, %v552
          %vm2326 = vcmp.eq.s32.totalorder %v2092, %v553
          %vm2327 = vcmp.eq.s32.totalorder %v2092, %v554
          %vm2328 = vcmp.eq.s32.totalorder %v2092, %v555
          %vm2329 = vcmp.eq.s32.totalorder %v2095, %v552
          %vm2330 = vcmp.eq.s32.totalorder %v2095, %v553
          %vm2331 = vcmp.eq.s32.totalorder %v2095, %v554
          %vm2332 = vcmp.eq.s32.totalorder %v2095, %v555
          %vm2333 = vcmp.eq.s32.totalorder %v2098, %v552
          %vm2334 = vcmp.eq.s32.totalorder %v2098, %v553
          %vm2335 = vcmp.eq.s32.totalorder %v2098, %v554
          %vm2336 = vcmp.eq.s32.totalorder %v2098, %v555
          %vm2337 = vcmp.eq.s32.totalorder %v2101, %v552
          %vm2338 = vcmp.eq.s32.totalorder %v2101, %v553
          %vm2339 = vcmp.eq.s32.totalorder %v2101, %v554
          %vm2340 = vcmp.eq.s32.totalorder %v2101, %v555
          %vm2341 = vcmp.eq.s32.totalorder %v2104, %v552
          %vm2342 = vcmp.eq.s32.totalorder %v2104, %v553
          %vm2343 = vcmp.eq.s32.totalorder %v2104, %v554
          %vm2344 = vcmp.eq.s32.totalorder %v2104, %v555
          %vm2345 = vcmp.eq.s32.totalorder %v2107, %v552
          %vm2346 = vcmp.eq.s32.totalorder %v2107, %v553
          %vm2347 = vcmp.eq.s32.totalorder %v2107, %v554
          %vm2348 = vcmp.eq.s32.totalorder %v2107, %v555
          %vm2349 = vcmp.eq.s32.totalorder %v2110, %v552
          %vm2350 = vcmp.eq.s32.totalorder %v2110, %v553
          %vm2351 = vcmp.eq.s32.totalorder %v2110, %v554
          %vm2352 = vcmp.eq.s32.totalorder %v2110, %v555
          %vm2353 = vcmp.eq.s32.totalorder %v2113, %v552
          %vm2354 = vcmp.eq.s32.totalorder %v2113, %v553
          %vm2355 = vcmp.eq.s32.totalorder %v2113, %v554
          %vm2356 = vcmp.eq.s32.totalorder %v2113, %v555
          %vm2357 = vcmp.eq.s32.totalorder %v2116, %v552
          %vm2358 = vcmp.eq.s32.totalorder %v2116, %v553
          %vm2359 = vcmp.eq.s32.totalorder %v2116, %v554
          %vm2360 = vcmp.eq.s32.totalorder %v2116, %v555
          %vm2361 = vcmp.eq.s32.totalorder %v2119, %v552
          %vm2362 = vcmp.eq.s32.totalorder %v2119, %v553
          %vm2363 = vcmp.eq.s32.totalorder %v2119, %v554
          %vm2364 = vcmp.eq.s32.totalorder %v2119, %v555
          %vm2365 = vcmp.eq.s32.totalorder %v2122, %v552
          %vm2366 = vcmp.eq.s32.totalorder %v2122, %v553
          %vm2367 = vcmp.eq.s32.totalorder %v2122, %v554
          %vm2368 = vcmp.eq.s32.totalorder %v2122, %v555
          %vm2369 = vcmp.eq.s32.totalorder %v2125, %v552
          %vm2370 = vcmp.eq.s32.totalorder %v2125, %v553
          %vm2371 = vcmp.eq.s32.totalorder %v2125, %v554
          %vm2372 = vcmp.eq.s32.totalorder %v2125, %v555
          %vm2373 = vcmp.eq.s32.totalorder %v2128, %v552
          %vm2374 = vcmp.eq.s32.totalorder %v2128, %v553
          %vm2375 = vcmp.eq.s32.totalorder %v2128, %v554
          %vm2376 = vcmp.eq.s32.totalorder %v2128, %v555
          %vm2377 = vcmp.eq.s32.totalorder %v2131, %v552
          %vm2378 = vcmp.eq.s32.totalorder %v2131, %v553
          %vm2379 = vcmp.eq.s32.totalorder %v2131, %v554
          %vm2380 = vcmp.eq.s32.totalorder %v2131, %v555
          %vm2381 = vcmp.eq.s32.totalorder %v2134, %v552
          %vm2382 = vcmp.eq.s32.totalorder %v2134, %v553
          %vm2383 = vcmp.eq.s32.totalorder %v2134, %v554
          %vm2384 = vcmp.eq.s32.totalorder %v2134, %v555
          %vm2385 = vcmp.eq.s32.totalorder %v2137, %v552
          %vm2386 = vcmp.eq.s32.totalorder %v2137, %v553
          %vm2387 = vcmp.eq.s32.totalorder %v2137, %v554
          %vm2388 = vcmp.eq.s32.totalorder %v2137, %v555
          %vm2389 = vcmp.eq.s32.totalorder %v2140, %v552
          %vm2390 = vcmp.eq.s32.totalorder %v2140, %v553
          %vm2391 = vcmp.eq.s32.totalorder %v2140, %v554
          %vm2392 = vcmp.eq.s32.totalorder %v2140, %v555
          %vm2393 = vcmp.eq.s32.totalorder %v2143, %v552
          %vm2394 = vcmp.eq.s32.totalorder %v2143, %v553
          %vm2395 = vcmp.eq.s32.totalorder %v2143, %v554
          %vm2396 = vcmp.eq.s32.totalorder %v2143, %v555
          %vm2397 = vcmp.eq.s32.totalorder %v2146, %v552
          %vm2398 = vcmp.eq.s32.totalorder %v2146, %v553
          %vm2399 = vcmp.eq.s32.totalorder %v2146, %v554
          %vm2400 = vcmp.eq.s32.totalorder %v2146, %v555
          %vm2401 = vcmp.eq.s32.totalorder %v2149, %v552
          %vm2402 = vcmp.eq.s32.totalorder %v2149, %v553
          %vm2403 = vcmp.eq.s32.totalorder %v2149, %v554
          %vm2404 = vcmp.eq.s32.totalorder %v2149, %v555
          %vm2405 = vcmp.eq.s32.totalorder %v2152, %v552
          %vm2406 = vcmp.eq.s32.totalorder %v2152, %v553
          %vm2407 = vcmp.eq.s32.totalorder %v2152, %v554
          %vm2408 = vcmp.eq.s32.totalorder %v2152, %v555
          %v2409 = vsel %vm2153, 1, 0
          %v2410 = vsel %vm2154, 1, 0
          %v2411 = vsel %vm2155, 1, 0
          %v2412 = vsel %vm2156, 1, 0
          %v2413 = vsel %vm2157, 1, 0
          %v2414 = vsel %vm2158, 1, 0
          %v2415 = vsel %vm2159, 1, 0
          %v2416 = vsel %vm2160, 1, 0
          %v2417 = vsel %vm2161, 1, 0
          %v2418 = vsel %vm2162, 1, 0
          %v2419 = vsel %vm2163, 1, 0
          %v2420 = vsel %vm2164, 1, 0
          %v2421 = vsel %vm2165, 1, 0
          %v2422 = vsel %vm2166, 1, 0
          %v2423 = vsel %vm2167, 1, 0
          %v2424 = vsel %vm2168, 1, 0
          %v2425 = vsel %vm2169, 1, 0
          %v2426 = vsel %vm2170, 1, 0
          %v2427 = vsel %vm2171, 1, 0
          %v2428 = vsel %vm2172, 1, 0
          %v2429 = vsel %vm2173, 1, 0
          %v2430 = vsel %vm2174, 1, 0
          %v2431 = vsel %vm2175, 1, 0
          %v2432 = vsel %vm2176, 1, 0
          %v2433 = vsel %vm2177, 1, 0
          %v2434 = vsel %vm2178, 1, 0
          %v2435 = vsel %vm2179, 1, 0
          %v2436 = vsel %vm2180, 1, 0
          %v2437 = vsel %vm2181, 1, 0
          %v2438 = vsel %vm2182, 1, 0
          %v2439 = vsel %vm2183, 1, 0
          %v2440 = vsel %vm2184, 1, 0
          %v2441 = vsel %vm2185, 1, 0
          %v2442 = vsel %vm2186, 1, 0
          %v2443 = vsel %vm2187, 1, 0
          %v2444 = vsel %vm2188, 1, 0
          %v2445 = vsel %vm2189, 1, 0
          %v2446 = vsel %vm2190, 1, 0
          %v2447 = vsel %vm2191, 1, 0
          %v2448 = vsel %vm2192, 1, 0
          %v2449 = vsel %vm2193, 1, 0
          %v2450 = vsel %vm2194, 1, 0
          %v2451 = vsel %vm2195, 1, 0
          %v2452 = vsel %vm2196, 1, 0
          %v2453 = vsel %vm2197, 1, 0
          %v2454 = vsel %vm2198, 1, 0
          %v2455 = vsel %vm2199, 1, 0
          %v2456 = vsel %vm2200, 1, 0
          %v2457 = vsel %vm2201, 1, 0
          %v2458 = vsel %vm2202, 1, 0
          %v2459 = vsel %vm2203, 1, 0
          %v2460 = vsel %vm2204, 1, 0
          %v2461 = vsel %vm2205, 1, 0
          %v2462 = vsel %vm2206, 1, 0
          %v2463 = vsel %vm2207, 1, 0
          %v2464 = vsel %vm2208, 1, 0
          %v2465 = vsel %vm2209, 1, 0
          %v2466 = vsel %vm2210, 1, 0
          %v2467 = vsel %vm2211, 1, 0
          %v2468 = vsel %vm2212, 1, 0
          %v2469 = vsel %vm2213, 1, 0
          %v2470 = vsel %vm2214, 1, 0
          %v2471 = vsel %vm2215, 1, 0
          %v2472 = vsel %vm2216, 1, 0
          %v2473 = vsel %vm2217, 1, 0
          %v2474 = vsel %vm2218, 1, 0
          %v2475 = vsel %vm2219, 1, 0
          %v2476 = vsel %vm2220, 1, 0
          %v2477 = vsel %vm2221, 1, 0
          %v2478 = vsel %vm2222, 1, 0
          %v2479 = vsel %vm2223, 1, 0
          %v2480 = vsel %vm2224, 1, 0
          %v2481 = vsel %vm2225, 1, 0
          %v2482 = vsel %vm2226, 1, 0
          %v2483 = vsel %vm2227, 1, 0
          %v2484 = vsel %vm2228, 1, 0
          %v2485 = vsel %vm2229, 1, 0
          %v2486 = vsel %vm2230, 1, 0
          %v2487 = vsel %vm2231, 1, 0
          %v2488 = vsel %vm2232, 1, 0
          %v2489 = vsel %vm2233, 1, 0
          %v2490 = vsel %vm2234, 1, 0
          %v2491 = vsel %vm2235, 1, 0
          %v2492 = vsel %vm2236, 1, 0
          %v2493 = vsel %vm2237, 1, 0
          %v2494 = vsel %vm2238, 1, 0
          %v2495 = vsel %vm2239, 1, 0
          %v2496 = vsel %vm2240, 1, 0
          %v2497 = vsel %vm2241, 1, 0
          %v2498 = vsel %vm2242, 1, 0
          %v2499 = vsel %vm2243, 1, 0
          %v2500 = vsel %vm2244, 1, 0
          %v2501 = vsel %vm2245, 1, 0
          %v2502 = vsel %vm2246, 1, 0
          %v2503 = vsel %vm2247, 1, 0
          %v2504 = vsel %vm2248, 1, 0
          %v2505 = vsel %vm2249, 1, 0
          %v2506 = vsel %vm2250, 1, 0
          %v2507 = vsel %vm2251, 1, 0
          %v2508 = vsel %vm2252, 1, 0
          %v2509 = vsel %vm2253, 1, 0
          %v2510 = vsel %vm2254, 1, 0
          %v2511 = vsel %vm2255, 1, 0
          %v2512 = vsel %vm2256, 1, 0
          %v2513 = vsel %vm2257, 1, 0
          %v2514 = vsel %vm2258, 1, 0
          %v2515 = vsel %vm2259, 1, 0
          %v2516 = vsel %vm2260, 1, 0
          %v2517 = vsel %vm2261, 1, 0
          %v2518 = vsel %vm2262, 1, 0
          %v2519 = vsel %vm2263, 1, 0
          %v2520 = vsel %vm2264, 1, 0
          %v2521 = vsel %vm2265, 1, 0
          %v2522 = vsel %vm2266, 1, 0
          %v2523 = vsel %vm2267, 1, 0
          %v2524 = vsel %vm2268, 1, 0
          %v2525 = vsel %vm2269, 1, 0
          %v2526 = vsel %vm2270, 1, 0
          %v2527 = vsel %vm2271, 1, 0
          %v2528 = vsel %vm2272, 1, 0
          %v2529 = vsel %vm2273, 1, 0
          %v2530 = vsel %vm2274, 1, 0
          %v2531 = vsel %vm2275, 1, 0
          %v2532 = vsel %vm2276, 1, 0
          %v2533 = vsel %vm2277, 1, 0
          %v2534 = vsel %vm2278, 1, 0
          %v2535 = vsel %vm2279, 1, 0
          %v2536 = vsel %vm2280, 1, 0
          %v2537 = vsel %vm2281, 1, 0
          %v2538 = vsel %vm2282, 1, 0
          %v2539 = vsel %vm2283, 1, 0
          %v2540 = vsel %vm2284, 1, 0
          %v2541 = vsel %vm2285, 1, 0
          %v2542 = vsel %vm2286, 1, 0
          %v2543 = vsel %vm2287, 1, 0
          %v2544 = vsel %vm2288, 1, 0
          %v2545 = vsel %vm2289, 1, 0
          %v2546 = vsel %vm2290, 1, 0
          %v2547 = vsel %vm2291, 1, 0
          %v2548 = vsel %vm2292, 1, 0
          %v2549 = vsel %vm2293, 1, 0
          %v2550 = vsel %vm2294, 1, 0
          %v2551 = vsel %vm2295, 1, 0
          %v2552 = vsel %vm2296, 1, 0
          %v2553 = vsel %vm2297, 1, 0
          %v2554 = vsel %vm2298, 1, 0
          %v2555 = vsel %vm2299, 1, 0
          %v2556 = vsel %vm2300, 1, 0
          %v2557 = vsel %vm2301, 1, 0
          %v2558 = vsel %vm2302, 1, 0
          %v2559 = vsel %vm2303, 1, 0
          %v2560 = vsel %vm2304, 1, 0
          %v2561 = vsel %vm2305, 1, 0
          %v2562 = vsel %vm2306, 1, 0
          %v2563 = vsel %vm2307, 1, 0
          %v2564 = vsel %vm2308, 1, 0
          %v2565 = vsel %vm2309, 1, 0
          %v2566 = vsel %vm2310, 1, 0
          %v2567 = vsel %vm2311, 1, 0
          %v2568 = vsel %vm2312, 1, 0
          %v2569 = vsel %vm2313, 1, 0
          %v2570 = vsel %vm2314, 1, 0
          %v2571 = vsel %vm2315, 1, 0
          %v2572 = vsel %vm2316, 1, 0
          %v2573 = vsel %vm2317, 1, 0
          %v2574 = vsel %vm2318, 1, 0
          %v2575 = vsel %vm2319, 1, 0
          %v2576 = vsel %vm2320, 1, 0
          %v2577 = vsel %vm2321, 1, 0
          %v2578 = vsel %vm2322, 1, 0
          %v2579 = vsel %vm2323, 1, 0
          %v2580 = vsel %vm2324, 1, 0
          %v2581 = vsel %vm2325, 1, 0
          %v2582 = vsel %vm2326, 1, 0
          %v2583 = vsel %vm2327, 1, 0
          %v2584 = vsel %vm2328, 1, 0
          %v2585 = vsel %vm2329, 1, 0
          %v2586 = vsel %vm2330, 1, 0
          %v2587 = vsel %vm2331, 1, 0
          %v2588 = vsel %vm2332, 1, 0
          %v2589 = vsel %vm2333, 1, 0
          %v2590 = vsel %vm2334, 1, 0
          %v2591 = vsel %vm2335, 1, 0
          %v2592 = vsel %vm2336, 1, 0
          %v2593 = vsel %vm2337, 1, 0
          %v2594 = vsel %vm2338, 1, 0
          %v2595 = vsel %vm2339, 1, 0
          %v2596 = vsel %vm2340, 1, 0
          %v2597 = vsel %vm2341, 1, 0
          %v2598 = vsel %vm2342, 1, 0
          %v2599 = vsel %vm2343, 1, 0
          %v2600 = vsel %vm2344, 1, 0
          %v2601 = vsel %vm2345, 1, 0
          %v2602 = vsel %vm2346, 1, 0
          %v2603 = vsel %vm2347, 1, 0
          %v2604 = vsel %vm2348, 1, 0
          %v2605 = vsel %vm2349, 1, 0
          %v2606 = vsel %vm2350, 1, 0
          %v2607 = vsel %vm2351, 1, 0
          %v2608 = vsel %vm2352, 1, 0
          %v2609 = vsel %vm2353, 1, 0
          %v2610 = vsel %vm2354, 1, 0
          %v2611 = vsel %vm2355, 1, 0
          %v2612 = vsel %vm2356, 1, 0
          %v2613 = vsel %vm2357, 1, 0
          %v2614 = vsel %vm2358, 1, 0
          %v2615 = vsel %vm2359, 1, 0
          %v2616 = vsel %vm2360, 1, 0
          %v2617 = vsel %vm2361, 1, 0
          %v2618 = vsel %vm2362, 1, 0
          %v2619 = vsel %vm2363, 1, 0
          %v2620 = vsel %vm2364, 1, 0
          %v2621 = vsel %vm2365, 1, 0
          %v2622 = vsel %vm2366, 1, 0
          %v2623 = vsel %vm2367, 1, 0
          %v2624 = vsel %vm2368, 1, 0
          %v2625 = vsel %vm2369, 1, 0
          %v2626 = vsel %vm2370, 1, 0
          %v2627 = vsel %vm2371, 1, 0
          %v2628 = vsel %vm2372, 1, 0
          %v2629 = vsel %vm2373, 1, 0
          %v2630 = vsel %vm2374, 1, 0
          %v2631 = vsel %vm2375, 1, 0
          %v2632 = vsel %vm2376, 1, 0
          %v2633 = vsel %vm2377, 1, 0
          %v2634 = vsel %vm2378, 1, 0
          %v2635 = vsel %vm2379, 1, 0
          %v2636 = vsel %vm2380, 1, 0
          %v2637 = vsel %vm2381, 1, 0
          %v2638 = vsel %vm2382, 1, 0
          %v2639 = vsel %vm2383, 1, 0
          %v2640 = vsel %vm2384, 1, 0
          %v2641 = vsel %vm2385, 1, 0
          %v2642 = vsel %vm2386, 1, 0
          %v2643 = vsel %vm2387, 1, 0
          %v2644 = vsel %vm2388, 1, 0
          %v2645 = vsel %vm2389, 1, 0
          %v2646 = vsel %vm2390, 1, 0
          %v2647 = vsel %vm2391, 1, 0
          %v2648 = vsel %vm2392, 1, 0
          %v2649 = vsel %vm2393, 1, 0
          %v2650 = vsel %vm2394, 1, 0
          %v2651 = vsel %vm2395, 1, 0
          %v2652 = vsel %vm2396, 1, 0
          %v2653 = vsel %vm2397, 1, 0
          %v2654 = vsel %vm2398, 1, 0
          %v2655 = vsel %vm2399, 1, 0
          %v2656 = vsel %vm2400, 1, 0
          %v2657 = vsel %vm2401, 1, 0
          %v2658 = vsel %vm2402, 1, 0
          %v2659 = vsel %vm2403, 1, 0
          %v2660 = vsel %vm2404, 1, 0
          %v2661 = vsel %vm2405, 1, 0
          %v2662 = vsel %vm2406, 1, 0
          %v2663 = vsel %vm2407, 1, 0
          %v2664 = vsel %vm2408, 1, 0
          %v2665 = vcvt.s32.f32 %v2409
          %v2666 = vcvt.s32.f32 %v2410
          %v2667 = vcvt.s32.f32 %v2411
          %v2668 = vcvt.s32.f32 %v2412
          %v2669 = vcvt.s32.f32 %v2413
          %v2670 = vcvt.s32.f32 %v2414
          %v2671 = vcvt.s32.f32 %v2415
          %v2672 = vcvt.s32.f32 %v2416
          %v2673 = vcvt.s32.f32 %v2417
          %v2674 = vcvt.s32.f32 %v2418
          %v2675 = vcvt.s32.f32 %v2419
          %v2676 = vcvt.s32.f32 %v2420
          %v2677 = vcvt.s32.f32 %v2421
          %v2678 = vcvt.s32.f32 %v2422
          %v2679 = vcvt.s32.f32 %v2423
          %v2680 = vcvt.s32.f32 %v2424
          %v2681 = vcvt.s32.f32 %v2425
          %v2682 = vcvt.s32.f32 %v2426
          %v2683 = vcvt.s32.f32 %v2427
          %v2684 = vcvt.s32.f32 %v2428
          %v2685 = vcvt.s32.f32 %v2429
          %v2686 = vcvt.s32.f32 %v2430
          %v2687 = vcvt.s32.f32 %v2431
          %v2688 = vcvt.s32.f32 %v2432
          %v2689 = vcvt.s32.f32 %v2433
          %v2690 = vcvt.s32.f32 %v2434
          %v2691 = vcvt.s32.f32 %v2435
          %v2692 = vcvt.s32.f32 %v2436
          %v2693 = vcvt.s32.f32 %v2437
          %v2694 = vcvt.s32.f32 %v2438
          %v2695 = vcvt.s32.f32 %v2439
          %v2696 = vcvt.s32.f32 %v2440
          %v2697 = vcvt.s32.f32 %v2441
          %v2698 = vcvt.s32.f32 %v2442
          %v2699 = vcvt.s32.f32 %v2443
          %v2700 = vcvt.s32.f32 %v2444
          %v2701 = vcvt.s32.f32 %v2445
          %v2702 = vcvt.s32.f32 %v2446
          %v2703 = vcvt.s32.f32 %v2447
          %v2704 = vcvt.s32.f32 %v2448
          %v2705 = vcvt.s32.f32 %v2449
          %v2706 = vcvt.s32.f32 %v2450
          %v2707 = vcvt.s32.f32 %v2451
          %v2708 = vcvt.s32.f32 %v2452
          %v2709 = vcvt.s32.f32 %v2453
          %v2710 = vcvt.s32.f32 %v2454
          %v2711 = vcvt.s32.f32 %v2455
          %v2712 = vcvt.s32.f32 %v2456
          %v2713 = vcvt.s32.f32 %v2457
          %v2714 = vcvt.s32.f32 %v2458
          %v2715 = vcvt.s32.f32 %v2459
          %v2716 = vcvt.s32.f32 %v2460
          %v2717 = vcvt.s32.f32 %v2461
          %v2718 = vcvt.s32.f32 %v2462
          %v2719 = vcvt.s32.f32 %v2463
          %v2720 = vcvt.s32.f32 %v2464
          %v2721 = vcvt.s32.f32 %v2465
          %v2722 = vcvt.s32.f32 %v2466
          %v2723 = vcvt.s32.f32 %v2467
          %v2724 = vcvt.s32.f32 %v2468
          %v2725 = vcvt.s32.f32 %v2469
          %v2726 = vcvt.s32.f32 %v2470
          %v2727 = vcvt.s32.f32 %v2471
          %v2728 = vcvt.s32.f32 %v2472
          %v2729 = vcvt.s32.f32 %v2473
          %v2730 = vcvt.s32.f32 %v2474
          %v2731 = vcvt.s32.f32 %v2475
          %v2732 = vcvt.s32.f32 %v2476
          %v2733 = vcvt.s32.f32 %v2477
          %v2734 = vcvt.s32.f32 %v2478
          %v2735 = vcvt.s32.f32 %v2479
          %v2736 = vcvt.s32.f32 %v2480
          %v2737 = vcvt.s32.f32 %v2481
          %v2738 = vcvt.s32.f32 %v2482
          %v2739 = vcvt.s32.f32 %v2483
          %v2740 = vcvt.s32.f32 %v2484
          %v2741 = vcvt.s32.f32 %v2485
          %v2742 = vcvt.s32.f32 %v2486
          %v2743 = vcvt.s32.f32 %v2487
          %v2744 = vcvt.s32.f32 %v2488
          %v2745 = vcvt.s32.f32 %v2489
          %v2746 = vcvt.s32.f32 %v2490
          %v2747 = vcvt.s32.f32 %v2491
          %v2748 = vcvt.s32.f32 %v2492
          %v2749 = vcvt.s32.f32 %v2493
          %v2750 = vcvt.s32.f32 %v2494
          %v2751 = vcvt.s32.f32 %v2495
          %v2752 = vcvt.s32.f32 %v2496
          %v2753 = vcvt.s32.f32 %v2497
          %v2754 = vcvt.s32.f32 %v2498
          %v2755 = vcvt.s32.f32 %v2499
          %v2756 = vcvt.s32.f32 %v2500
          %v2757 = vcvt.s32.f32 %v2501
          %v2758 = vcvt.s32.f32 %v2502
          %v2759 = vcvt.s32.f32 %v2503
          %v2760 = vcvt.s32.f32 %v2504
          %v2761 = vcvt.s32.f32 %v2505
          %v2762 = vcvt.s32.f32 %v2506
          %v2763 = vcvt.s32.f32 %v2507
          %v2764 = vcvt.s32.f32 %v2508
          %v2765 = vcvt.s32.f32 %v2509
          %v2766 = vcvt.s32.f32 %v2510
          %v2767 = vcvt.s32.f32 %v2511
          %v2768 = vcvt.s32.f32 %v2512
          %v2769 = vcvt.s32.f32 %v2513
          %v2770 = vcvt.s32.f32 %v2514
          %v2771 = vcvt.s32.f32 %v2515
          %v2772 = vcvt.s32.f32 %v2516
          %v2773 = vcvt.s32.f32 %v2517
          %v2774 = vcvt.s32.f32 %v2518
          %v2775 = vcvt.s32.f32 %v2519
          %v2776 = vcvt.s32.f32 %v2520
          %v2777 = vcvt.s32.f32 %v2521
          %v2778 = vcvt.s32.f32 %v2522
          %v2779 = vcvt.s32.f32 %v2523
          %v2780 = vcvt.s32.f32 %v2524
          %v2781 = vcvt.s32.f32 %v2525
          %v2782 = vcvt.s32.f32 %v2526
          %v2783 = vcvt.s32.f32 %v2527
          %v2784 = vcvt.s32.f32 %v2528
          %v2785 = vcvt.s32.f32 %v2529
          %v2786 = vcvt.s32.f32 %v2530
          %v2787 = vcvt.s32.f32 %v2531
          %v2788 = vcvt.s32.f32 %v2532
          %v2789 = vcvt.s32.f32 %v2533
          %v2790 = vcvt.s32.f32 %v2534
          %v2791 = vcvt.s32.f32 %v2535
          %v2792 = vcvt.s32.f32 %v2536
          %v2793 = vcvt.s32.f32 %v2537
          %v2794 = vcvt.s32.f32 %v2538
          %v2795 = vcvt.s32.f32 %v2539
          %v2796 = vcvt.s32.f32 %v2540
          %v2797 = vcvt.s32.f32 %v2541
          %v2798 = vcvt.s32.f32 %v2542
          %v2799 = vcvt.s32.f32 %v2543
          %v2800 = vcvt.s32.f32 %v2544
          %v2801 = vcvt.s32.f32 %v2545
          %v2802 = vcvt.s32.f32 %v2546
          %v2803 = vcvt.s32.f32 %v2547
          %v2804 = vcvt.s32.f32 %v2548
          %v2805 = vcvt.s32.f32 %v2549
          %v2806 = vcvt.s32.f32 %v2550
          %v2807 = vcvt.s32.f32 %v2551
          %v2808 = vcvt.s32.f32 %v2552
          %v2809 = vcvt.s32.f32 %v2553
          %v2810 = vcvt.s32.f32 %v2554
          %v2811 = vcvt.s32.f32 %v2555
          %v2812 = vcvt.s32.f32 %v2556
          %v2813 = vcvt.s32.f32 %v2557
          %v2814 = vcvt.s32.f32 %v2558
          %v2815 = vcvt.s32.f32 %v2559
          %v2816 = vcvt.s32.f32 %v2560
          %v2817 = vcvt.s32.f32 %v2561
          %v2818 = vcvt.s32.f32 %v2562
          %v2819 = vcvt.s32.f32 %v2563
          %v2820 = vcvt.s32.f32 %v2564
          %v2821 = vcvt.s32.f32 %v2565
          %v2822 = vcvt.s32.f32 %v2566
          %v2823 = vcvt.s32.f32 %v2567
          %v2824 = vcvt.s32.f32 %v2568
          %v2825 = vcvt.s32.f32 %v2569
          %v2826 = vcvt.s32.f32 %v2570
          %v2827 = vcvt.s32.f32 %v2571
          %v2828 = vcvt.s32.f32 %v2572
          %v2829 = vcvt.s32.f32 %v2573
          %v2830 = vcvt.s32.f32 %v2574
          %v2831 = vcvt.s32.f32 %v2575
          %v2832 = vcvt.s32.f32 %v2576
          %v2833 = vcvt.s32.f32 %v2577
          %v2834 = vcvt.s32.f32 %v2578
          %v2835 = vcvt.s32.f32 %v2579
          %v2836 = vcvt.s32.f32 %v2580
          %v2837 = vcvt.s32.f32 %v2581
          %v2838 = vcvt.s32.f32 %v2582
          %v2839 = vcvt.s32.f32 %v2583
          %v2840 = vcvt.s32.f32 %v2584
          %v2841 = vcvt.s32.f32 %v2585
          %v2842 = vcvt.s32.f32 %v2586
          %v2843 = vcvt.s32.f32 %v2587
          %v2844 = vcvt.s32.f32 %v2588
          %v2845 = vcvt.s32.f32 %v2589
          %v2846 = vcvt.s32.f32 %v2590
          %v2847 = vcvt.s32.f32 %v2591
          %v2848 = vcvt.s32.f32 %v2592
          %v2849 = vcvt.s32.f32 %v2593
          %v2850 = vcvt.s32.f32 %v2594
          %v2851 = vcvt.s32.f32 %v2595
          %v2852 = vcvt.s32.f32 %v2596
          %v2853 = vcvt.s32.f32 %v2597
          %v2854 = vcvt.s32.f32 %v2598
          %v2855 = vcvt.s32.f32 %v2599
          %v2856 = vcvt.s32.f32 %v2600
          %v2857 = vcvt.s32.f32 %v2601
          %v2858 = vcvt.s32.f32 %v2602
          %v2859 = vcvt.s32.f32 %v2603
          %v2860 = vcvt.s32.f32 %v2604
          %v2861 = vcvt.s32.f32 %v2605
          %v2862 = vcvt.s32.f32 %v2606
          %v2863 = vcvt.s32.f32 %v2607
          %v2864 = vcvt.s32.f32 %v2608
          %v2865 = vcvt.s32.f32 %v2609
          %v2866 = vcvt.s32.f32 %v2610
          %v2867 = vcvt.s32.f32 %v2611
          %v2868 = vcvt.s32.f32 %v2612
          %v2869 = vcvt.s32.f32 %v2613
          %v2870 = vcvt.s32.f32 %v2614
          %v2871 = vcvt.s32.f32 %v2615
          %v2872 = vcvt.s32.f32 %v2616
          %v2873 = vcvt.s32.f32 %v2617
          %v2874 = vcvt.s32.f32 %v2618
          %v2875 = vcvt.s32.f32 %v2619
          %v2876 = vcvt.s32.f32 %v2620
          %v2877 = vcvt.s32.f32 %v2621
          %v2878 = vcvt.s32.f32 %v2622
          %v2879 = vcvt.s32.f32 %v2623
          %v2880 = vcvt.s32.f32 %v2624
          %v2881 = vcvt.s32.f32 %v2625
          %v2882 = vcvt.s32.f32 %v2626
          %v2883 = vcvt.s32.f32 %v2627
          %v2884 = vcvt.s32.f32 %v2628
          %v2885 = vcvt.s32.f32 %v2629
          %v2886 = vcvt.s32.f32 %v2630
          %v2887 = vcvt.s32.f32 %v2631
          %v2888 = vcvt.s32.f32 %v2632
          %v2889 = vcvt.s32.f32 %v2633
          %v2890 = vcvt.s32.f32 %v2634
          %v2891 = vcvt.s32.f32 %v2635
          %v2892 = vcvt.s32.f32 %v2636
          %v2893 = vcvt.s32.f32 %v2637
          %v2894 = vcvt.s32.f32 %v2638
          %v2895 = vcvt.s32.f32 %v2639
          %v2896 = vcvt.s32.f32 %v2640
          %v2897 = vcvt.s32.f32 %v2641
          %v2898 = vcvt.s32.f32 %v2642
          %v2899 = vcvt.s32.f32 %v2643
          %v2900 = vcvt.s32.f32 %v2644
          %v2901 = vcvt.s32.f32 %v2645
          %v2902 = vcvt.s32.f32 %v2646
          %v2903 = vcvt.s32.f32 %v2647
          %v2904 = vcvt.s32.f32 %v2648
          %v2905 = vcvt.s32.f32 %v2649
          %v2906 = vcvt.s32.f32 %v2650
          %v2907 = vcvt.s32.f32 %v2651
          %v2908 = vcvt.s32.f32 %v2652
          %v2909 = vcvt.s32.f32 %v2653
          %v2910 = vcvt.s32.f32 %v2654
          %v2911 = vcvt.s32.f32 %v2655
          %v2912 = vcvt.s32.f32 %v2656
          %v2913 = vcvt.s32.f32 %v2657
          %v2914 = vcvt.s32.f32 %v2658
          %v2915 = vcvt.s32.f32 %v2659
          %v2916 = vcvt.s32.f32 %v2660
          %v2917 = vcvt.s32.f32 %v2661
          %v2918 = vcvt.s32.f32 %v2662
          %v2919 = vcvt.s32.f32 %v2663
          %v2920 = vcvt.s32.f32 %v2664
          %v2921 = vpack.c.bf16 %v2669, %v2665
          %v2922 = vpack.c.bf16 %v2670, %v2666
          %v2923 = vpack.c.bf16 %v2671, %v2667
          %v2924 = vpack.c.bf16 %v2672, %v2668
          %v2925 = vpack.c.bf16 %v2677, %v2673
          %v2926 = vpack.c.bf16 %v2678, %v2674
          %v2927 = vpack.c.bf16 %v2679, %v2675
          %v2928 = vpack.c.bf16 %v2680, %v2676
          %v2929 = vpack.c.bf16 %v2685, %v2681
          %v2930 = vpack.c.bf16 %v2686, %v2682
          %v2931 = vpack.c.bf16 %v2687, %v2683
          %v2932 = vpack.c.bf16 %v2688, %v2684
          %v2933 = vpack.c.bf16 %v2693, %v2689
          %v2934 = vpack.c.bf16 %v2694, %v2690
          %v2935 = vpack.c.bf16 %v2695, %v2691
          %v2936 = vpack.c.bf16 %v2696, %v2692
          %v2937 = vpack.c.bf16 %v2701, %v2697
          %v2938 = vpack.c.bf16 %v2702, %v2698
          %v2939 = vpack.c.bf16 %v2703, %v2699
          %v2940 = vpack.c.bf16 %v2704, %v2700
          %v2941 = vpack.c.bf16 %v2709, %v2705
          %v2942 = vpack.c.bf16 %v2710, %v2706
          %v2943 = vpack.c.bf16 %v2711, %v2707
          %v2944 = vpack.c.bf16 %v2712, %v2708
          %v2945 = vpack.c.bf16 %v2717, %v2713
          %v2946 = vpack.c.bf16 %v2718, %v2714
          %v2947 = vpack.c.bf16 %v2719, %v2715
          %v2948 = vpack.c.bf16 %v2720, %v2716
          %v2949 = vpack.c.bf16 %v2725, %v2721
          %v2950 = vpack.c.bf16 %v2726, %v2722
          %v2951 = vpack.c.bf16 %v2727, %v2723
          %v2952 = vpack.c.bf16 %v2728, %v2724
          %v2953 = vpack.c.bf16 %v2733, %v2729
          %v2954 = vpack.c.bf16 %v2734, %v2730
          %v2955 = vpack.c.bf16 %v2735, %v2731
          %v2956 = vpack.c.bf16 %v2736, %v2732
          %v2957 = vpack.c.bf16 %v2741, %v2737
          %v2958 = vpack.c.bf16 %v2742, %v2738
          %v2959 = vpack.c.bf16 %v2743, %v2739
          %v2960 = vpack.c.bf16 %v2744, %v2740
          %v2961 = vpack.c.bf16 %v2749, %v2745
          %v2962 = vpack.c.bf16 %v2750, %v2746
          %v2963 = vpack.c.bf16 %v2751, %v2747
          %v2964 = vpack.c.bf16 %v2752, %v2748
          %v2965 = vpack.c.bf16 %v2757, %v2753
          %v2966 = vpack.c.bf16 %v2758, %v2754
          %v2967 = vpack.c.bf16 %v2759, %v2755
          %v2968 = vpack.c.bf16 %v2760, %v2756
          %v2969 = vpack.c.bf16 %v2765, %v2761
          %v2970 = vpack.c.bf16 %v2766, %v2762
          %v2971 = vpack.c.bf16 %v2767, %v2763
          %v2972 = vpack.c.bf16 %v2768, %v2764
          %v2973 = vpack.c.bf16 %v2773, %v2769
          %v2974 = vpack.c.bf16 %v2774, %v2770
          %v2975 = vpack.c.bf16 %v2775, %v2771
          %v2976 = vpack.c.bf16 %v2776, %v2772
          %v2977 = vpack.c.bf16 %v2781, %v2777
          %v2978 = vpack.c.bf16 %v2782, %v2778
          %v2979 = vpack.c.bf16 %v2783, %v2779
          %v2980 = vpack.c.bf16 %v2784, %v2780
          %v2981 = vpack.c.bf16 %v2789, %v2785
          %v2982 = vpack.c.bf16 %v2790, %v2786
          %v2983 = vpack.c.bf16 %v2791, %v2787
          %v2984 = vpack.c.bf16 %v2792, %v2788
          %v2985 = vpack.c.bf16 %v2797, %v2793
          %v2986 = vpack.c.bf16 %v2798, %v2794
          %v2987 = vpack.c.bf16 %v2799, %v2795
          %v2988 = vpack.c.bf16 %v2800, %v2796
          %v2989 = vpack.c.bf16 %v2805, %v2801
          %v2990 = vpack.c.bf16 %v2806, %v2802
          %v2991 = vpack.c.bf16 %v2807, %v2803
          %v2992 = vpack.c.bf16 %v2808, %v2804
          %v2993 = vpack.c.bf16 %v2813, %v2809
          %v2994 = vpack.c.bf16 %v2814, %v2810
          %v2995 = vpack.c.bf16 %v2815, %v2811
          %v2996 = vpack.c.bf16 %v2816, %v2812
          %v2997 = vpack.c.bf16 %v2821, %v2817
          %v2998 = vpack.c.bf16 %v2822, %v2818
          %v2999 = vpack.c.bf16 %v2823, %v2819
          %v3000 = vpack.c.bf16 %v2824, %v2820
          %v3001 = vpack.c.bf16 %v2829, %v2825
          %v3002 = vpack.c.bf16 %v2830, %v2826
          %v3003 = vpack.c.bf16 %v2831, %v2827
          %v3004 = vpack.c.bf16 %v2832, %v2828
          %v3005 = vpack.c.bf16 %v2837, %v2833
          %v3006 = vpack.c.bf16 %v2838, %v2834
          %v3007 = vpack.c.bf16 %v2839, %v2835
          %v3008 = vpack.c.bf16 %v2840, %v2836
          %v3009 = vpack.c.bf16 %v2845, %v2841
          %v3010 = vpack.c.bf16 %v2846, %v2842
          %v3011 = vpack.c.bf16 %v2847, %v2843
          %v3012 = vpack.c.bf16 %v2848, %v2844
          %v3013 = vpack.c.bf16 %v2853, %v2849
          %v3014 = vpack.c.bf16 %v2854, %v2850
          %v3015 = vpack.c.bf16 %v2855, %v2851
          %v3016 = vpack.c.bf16 %v2856, %v2852
          %v3017 = vpack.c.bf16 %v2861, %v2857
          %v3018 = vpack.c.bf16 %v2862, %v2858
          %v3019 = vpack.c.bf16 %v2863, %v2859
          %v3020 = vpack.c.bf16 %v2864, %v2860
          %v3021 = vpack.c.bf16 %v2869, %v2865
          %v3022 = vpack.c.bf16 %v2870, %v2866
          %v3023 = vpack.c.bf16 %v2871, %v2867
          %v3024 = vpack.c.bf16 %v2872, %v2868
          %v3025 = vpack.c.bf16 %v2877, %v2873
          %v3026 = vpack.c.bf16 %v2878, %v2874
          %v3027 = vpack.c.bf16 %v2879, %v2875
          %v3028 = vpack.c.bf16 %v2880, %v2876
          %v3029 = vpack.c.bf16 %v2885, %v2881
          %v3030 = vpack.c.bf16 %v2886, %v2882
          %v3031 = vpack.c.bf16 %v2887, %v2883
          %v3032 = vpack.c.bf16 %v2888, %v2884
          %v3033 = vpack.c.bf16 %v2893, %v2889
          %v3034 = vpack.c.bf16 %v2894, %v2890
          %v3035 = vpack.c.bf16 %v2895, %v2891
          %v3036 = vpack.c.bf16 %v2896, %v2892
          %v3037 = vpack.c.bf16 %v2901, %v2897
          %v3038 = vpack.c.bf16 %v2902, %v2898
          %v3039 = vpack.c.bf16 %v2903, %v2899
          %v3040 = vpack.c.bf16 %v2904, %v2900
          %v3041 = vpack.c.bf16 %v2909, %v2905
          %v3042 = vpack.c.bf16 %v2910, %v2906
          %v3043 = vpack.c.bf16 %v2911, %v2907
          %v3044 = vpack.c.bf16 %v2912, %v2908
          %v3045 = vpack.c.bf16 %v2917, %v2913
          %v3046 = vpack.c.bf16 %v2918, %v2914
          %v3047 = vpack.c.bf16 %v2919, %v2915
          %v3048 = vpack.c.bf16 %v2920, %v2916
          %v3049 = vld [vmem:[#allocation2] sm:$0x1f]
          %v3050 = vld [vmem:[#allocation2 + $0x8] sm:$0x1f]
          %v3051 = vld [vmem:[#allocation2 + $0x10] sm:$0x1f]
          %v3052 = vld [vmem:[#allocation2 + $0x18] sm:$0x1f]
          %v3053 = vld [vmem:[%s519] sm:$0x77]
          %v3054 = vld [vmem:[%s519 + $0x8] sm:$0x77]
          %v3057 = vunpack.c.l.b16 %v3053
          %v3058 = vunpack.c.h.b16 %v3053
          %v3059 = vunpack.c.l.b16 %v3054
          %v3060 = vunpack.c.h.b16 %v3054
          %v3061 = vpack.c.b16 %v3057, %v3057
          %v3062 = vpack.c.b16 %v3058, %v3058
          %v3063 = vpack.c.b16 %v3059, %v3059
          %v3064 = vpack.c.b16 %v3060, %v3060
          %3069 = vmatprep.subr.bf16.mxu0 %v2922
          %3070 = vmatpush1.bf16.msra.mxu0 %v2921
          %3071 = vmatprep.subr.bf16.mxu0 %v2926
          %3072 = vmatpush1.bf16.msra.mxu0 %v2925
          %3073 = vmatprep.subr.bf16.mxu0 %v2930
          %3074 = vmatpush1.bf16.msra.mxu0 %v2929
          %3075 = vmatprep.subr.bf16.mxu0 %v2934
          %3076 = vmatpush1.bf16.msra.mxu0 %v2933
          %3077 = vmatprep.subr.bf16.mxu0 %v2938
          %3078 = vmatpush1.bf16.msra.mxu0 %v2937
          %3079 = vmatprep.subr.bf16.mxu0 %v2942
          %3080 = vmatpush1.bf16.msra.mxu0 %v2941
          %3081 = vmatprep.subr.bf16.mxu0 %v2946
          %3082 = vmatpush1.bf16.msra.mxu0 %v2945
          %3083 = vmatprep.subr.bf16.mxu0 %v2950
          %3084 = vmatpush1.bf16.msra.mxu0 %v2949
          %3085 = vmatprep.subr.bf16.mxu0 %v2954
          %3086 = vmatpush1.bf16.msra.mxu0 %v2953
          %3087 = vmatprep.subr.bf16.mxu0 %v2958
          %3088 = vmatpush1.bf16.msra.mxu0 %v2957
          %3089 = vmatprep.subr.bf16.mxu0 %v2962
          %3090 = vmatpush1.bf16.msra.mxu0 %v2961
          %3091 = vmatprep.subr.bf16.mxu0 %v2966
          %3092 = vmatpush1.bf16.msra.mxu0 %v2965
          %3093 = vmatprep.subr.bf16.mxu0 %v2970
          %3094 = vmatpush1.bf16.msra.mxu0 %v2969
          %3095 = vmatprep.subr.bf16.mxu0 %v2974
          %3096 = vmatpush1.bf16.msra.mxu0 %v2973
          %3097 = vmatprep.subr.bf16.mxu0 %v2978
          %3098 = vmatpush1.bf16.msra.mxu0 %v2977
          %3099 = vmatprep.subr.bf16.mxu0 %v2982
          %3100 = vmatpush1.bf16.msra.mxu0 %v2981
          %3101 = vmatprep.mubr.bf16.mxu0 %v3062
          %3102 = vmatmul.mubr.bf16.gmra.mrb[0].mxu0 %v3061
          %v3103 = vpop.f32.mrb[0].mxu0
          %v3104 = vadd.f32 0.0, %v3103
          %v3105 = vpop.f32.mrb[0].mxu0
          %v3106 = vadd.f32 0.0, %v3105
          %v3107 = vpop.f32.mrb[0].mxu0
          %v3108 = vpop.f32.mrb[0].mxu0
          %3109 = vdwg.mxu0
          %3110 = vmatprep.subr.bf16.mxu0 %v2986
          %3111 = vmatpush1.bf16.msra.mxu0 %v2985
          %3112 = vmatprep.subr.bf16.mxu0 %v2990
          %3113 = vmatpush1.bf16.msra.mxu0 %v2989
          %3114 = vmatprep.subr.bf16.mxu0 %v2994
          %3115 = vmatpush1.bf16.msra.mxu0 %v2993
          %3116 = vmatprep.subr.bf16.mxu0 %v2998
          %3117 = vmatpush1.bf16.msra.mxu0 %v2997
          %3118 = vmatprep.subr.bf16.mxu0 %v3002
          %3119 = vmatpush1.bf16.msra.mxu0 %v3001
          %3120 = vmatprep.subr.bf16.mxu0 %v3006
          %3121 = vmatpush1.bf16.msra.mxu0 %v3005
          %3122 = vmatprep.subr.bf16.mxu0 %v3010
          %3123 = vmatpush1.bf16.msra.mxu0 %v3009
          %3124 = vmatprep.subr.bf16.mxu0 %v3014
          %3125 = vmatpush1.bf16.msra.mxu0 %v3013
          %3126 = vmatprep.subr.bf16.mxu0 %v3018
          %3127 = vmatpush1.bf16.msra.mxu0 %v3017
          %3128 = vmatprep.subr.bf16.mxu0 %v3022
          %3129 = vmatpush1.bf16.msra.mxu0 %v3021
          %3130 = vmatprep.subr.bf16.mxu0 %v3026
          %3131 = vmatpush1.bf16.msra.mxu0 %v3025
          %3132 = vmatprep.subr.bf16.mxu0 %v3030
          %3133 = vmatpush1.bf16.msra.mxu0 %v3029
          %3134 = vmatprep.subr.bf16.mxu0 %v3034
          %3135 = vmatpush1.bf16.msra.mxu0 %v3033
          %3136 = vmatprep.subr.bf16.mxu0 %v3038
          %3137 = vmatpush1.bf16.msra.mxu0 %v3037
          %3138 = vmatprep.subr.bf16.mxu0 %v3042
          %3139 = vmatpush1.bf16.msra.mxu0 %v3041
          %3140 = vmatprep.subr.bf16.mxu0 %v3046
          %3141 = vmatpush1.bf16.msra.mxu0 %v3045
          %3142 = vmatprep.mubr.bf16.mxu0 %v3064
          %3143 = vmatmul.mubr.bf16.gmra.mrb[0].mxu0 %v3063
          %v3144 = vpop.f32.mrb[0].mxu0
          %v3145 = vadd.f32 %v3104, %v3144
          %v3146 = vpop.f32.mrb[0].mxu0
          %v3147 = vadd.f32 %v3106, %v3146
          %v3148 = vpop.f32.mrb[0].mxu0
          %v3149 = vpop.f32.mrb[0].mxu0
          %3150 = vdwg.mxu0
          %3151 = vmatprep.subr.bf16.mxu0 %v2924
          %3152 = vmatpush1.bf16.msra.mxu0 %v2923
          %3153 = vmatprep.subr.bf16.mxu0 %v2928
          %3154 = vmatpush1.bf16.msra.mxu0 %v2927
          %3155 = vmatprep.subr.bf16.mxu0 %v2932
          %3156 = vmatpush1.bf16.msra.mxu0 %v2931
          %3157 = vmatprep.subr.bf16.mxu0 %v2936
          %3158 = vmatpush1.bf16.msra.mxu0 %v2935
          %3159 = vmatprep.subr.bf16.mxu0 %v2940
          %3160 = vmatpush1.bf16.msra.mxu0 %v2939
          %3161 = vmatprep.subr.bf16.mxu0 %v2944
          %3162 = vmatpush1.bf16.msra.mxu0 %v2943
          %3163 = vmatprep.subr.bf16.mxu0 %v2948
          %3164 = vmatpush1.bf16.msra.mxu0 %v2947
          %3165 = vmatprep.subr.bf16.mxu0 %v2952
          %3166 = vmatpush1.bf16.msra.mxu0 %v2951
          %3167 = vmatprep.subr.bf16.mxu0 %v2956
          %3168 = vmatpush1.bf16.msra.mxu0 %v2955
          %3169 = vmatprep.subr.bf16.mxu0 %v2960
          %3170 = vmatpush1.bf16.msra.mxu0 %v2959
          %3171 = vmatprep.subr.bf16.mxu0 %v2964
          %3172 = vmatpush1.bf16.msra.mxu0 %v2963
          %3173 = vmatprep.subr.bf16.mxu0 %v2968
          %3174 = vmatpush1.bf16.msra.mxu0 %v2967
          %3175 = vmatprep.subr.bf16.mxu0 %v2972
          %3176 = vmatpush1.bf16.msra.mxu0 %v2971
          %3177 = vmatprep.subr.bf16.mxu0 %v2976
          %3178 = vmatpush1.bf16.msra.mxu0 %v2975
          %3179 = vmatprep.subr.bf16.mxu0 %v2980
          %3180 = vmatpush1.bf16.msra.mxu0 %v2979
          %3181 = vmatprep.subr.bf16.mxu0 %v2984
          %3182 = vmatpush1.bf16.msra.mxu0 %v2983
          %3183 = vmatprep.mubr.bf16.mxu0 %v3062
          %3184 = vmatmul.mubr.bf16.gmra.mrb[0].mxu0 %v3061
          %v3185 = vpop.f32.mrb[0].mxu0
          %v3186 = vadd.f32 0.0, %v3185
          %v3187 = vpop.f32.mrb[0].mxu0
          %v3188 = vadd.f32 0.0, %v3187
          %v3189 = vpop.f32.mrb[0].mxu0
          %v3190 = vpop.f32.mrb[0].mxu0
          %3191 = vdwg.mxu0
          %3192 = vmatprep.subr.bf16.mxu0 %v2988
          %3193 = vmatpush1.bf16.msra.mxu0 %v2987
          %3194 = vmatprep.subr.bf16.mxu0 %v2992
          %3195 = vmatpush1.bf16.msra.mxu0 %v2991
          %3196 = vmatprep.subr.bf16.mxu0 %v2996
          %3197 = vmatpush1.bf16.msra.mxu0 %v2995
          %3198 = vmatprep.subr.bf16.mxu0 %v3000
          %3199 = vmatpush1.bf16.msra.mxu0 %v2999
          %3200 = vmatprep.subr.bf16.mxu0 %v3004
          %3201 = vmatpush1.bf16.msra.mxu0 %v3003
          %3202 = vmatprep.subr.bf16.mxu0 %v3008
          %3203 = vmatpush1.bf16.msra.mxu0 %v3007
          %3204 = vmatprep.subr.bf16.mxu0 %v3012
          %3205 = vmatpush1.bf16.msra.mxu0 %v3011
          %3206 = vmatprep.subr.bf16.mxu0 %v3016
          %3207 = vmatpush1.bf16.msra.mxu0 %v3015
          %3208 = vmatprep.subr.bf16.mxu0 %v3020
          %3209 = vmatpush1.bf16.msra.mxu0 %v3019
          %3210 = vmatprep.subr.bf16.mxu0 %v3024
          %3211 = vmatpush1.bf16.msra.mxu0 %v3023
          %3212 = vmatprep.subr.bf16.mxu0 %v3028
          %3213 = vmatpush1.bf16.msra.mxu0 %v3027
          %3214 = vmatprep.subr.bf16.mxu0 %v3032
          %3215 = vmatpush1.bf16.msra.mxu0 %v3031
          %3216 = vmatprep.subr.bf16.mxu0 %v3036
          %3217 = vmatpush1.bf16.msra.mxu0 %v3035
          %3218 = vmatprep.subr.bf16.mxu0 %v3040
          %3219 = vmatpush1.bf16.msra.mxu0 %v3039
          %3220 = vmatprep.subr.bf16.mxu0 %v3044
          %3221 = vmatpush1.bf16.msra.mxu0 %v3043
          %3222 = vmatprep.subr.bf16.mxu0 %v3048
          %3223 = vmatpush1.bf16.msra.mxu0 %v3047
          %3224 = vmatprep.mubr.bf16.mxu0 %v3064
          %3225 = vmatmul.mubr.bf16.gmra.mrb[0].mxu0 %v3063
          %v3226 = vpop.f32.mrb[0].mxu0
          %v3227 = vadd.f32 %v3186, %v3226
          %v3228 = vpop.f32.mrb[0].mxu0
          %v3229 = vadd.f32 %v3188, %v3228
          %v3230 = vpop.f32.mrb[0].mxu0
          %v3231 = vpop.f32.mrb[0].mxu0
          %3232 = vdwg.mxu0
          %v3233 = vadd.f32 %v3049, %v3145
          %v3234 = vadd.f32 %v3050, %v3147
          %v3235 = vadd.f32 %v3051, %v3227
          %v3236 = vadd.f32 %v3052, %v3229
          %3237 = vst [vmem:[#allocation2] sm:$0x1f] %v3233
          %3238 = vst [vmem:[#allocation2 + $0x8] sm:$0x1f] %v3234
          %3239 = vst [vmem:[#allocation2 + $0x10] sm:$0x1f] %v3235
          %3240 = vst [vmem:[#allocation2 + $0x18] sm:$0x1f] %v3236
        $region56: #{tpu_custom_call.1} parent=43 // pred_fallthru
          _
        %v3241 = vld [vmem:[#allocation2] sm:$0x1f]
        %v3242 = vld [vmem:[#allocation2 + $0x8] sm:$0x1f]
        %v3243 = vld [vmem:[#allocation2 + $0x10] sm:$0x1f]
        %v3244 = vld [vmem:[#allocation2 + $0x18] sm:$0x1f]
        %v3249 = vcombine.low %v3241, %v3242
        %v3250 = vcombine.low %v3243, %v3244
        %3253 = vst [vmem:[%s489] sm:$0xff] %v3249
        %3254 = vst [vmem:[%s489 + $0x8] sm:$0xff] %v3250
        %vm3255 = vcmp.gt.f32.partialorder %v3241, 0.0
        %vm3256 = vcmp.gt.f32.partialorder %v3242, 0.0
        %vm3257 = vcmp.gt.f32.partialorder %v3243, 0.0
        %vm3258 = vcmp.gt.f32.partialorder %v3244, 0.0
        %v3259 = vsel %vm3255, 1, 0
        %v3260 = vsel %vm3256, 1, 0
        %v3261 = vsel %vm3257, 1, 0
        %v3262 = vsel %vm3258, 1, 0
        %v3263 = vcombine.high %v3259, %v3260
        %v3264 = vcombine.high %v3261, %v3262
        %v3266 = vunpack.c.l.s4 1966171168
        %v3267 = vunpack.c.0.s8 %v3266
        %v3268 = vlaneseq
        %v3269 = vshrl.u32 %v3268, 7
        %v3270 = vsub.s32 %v3267, %v3269
        %v3271 = vrot.slane %v3263, %v3270
        %v3273 = vunpack.c.l.s4 1966171168
        %v3274 = vunpack.c.0.s8 %v3273
        %v3275 = vlaneseq
        %v3276 = vshrl.u32 %v3275, 7
        %v3277 = vsub.s32 %v3274, %v3276
        %v3278 = vrot.slane %v3264, %v3277
        %v3279 = vcombine.low %v3271, %v3278
        %v3281 = vunpack.c.l.s4 1966171168
        %v3282 = vunpack.c.0.s8 %v3281
        %v3283 = vlaneseq
        %v3284 = vshrl.u32 %v3283, 7
        %v3285 = vsub.s32 %v3282, %v3284
        %v3286 = vrot.slane %v3279, %v3285
        %v3287 = vlaneseq
        %vm3288 = vcmp.ge.s32.totalorder %v3287, 0
        %vm3289 = vcmp.lt.s32.totalorder %v3287, 512
        %vm3290 = vmand %vm3288, %vm3289
        %3291 = vst.msk [vmem:[%s496] sm:$0xf] %vm3290, %v3286
        %s3292 = sand.u32 %s252, 1
        %s3293 = scalar_lea.sflag [#allocation11], %s3292
        %s3294 = sand.u32 %s252, 1
        %s3295 = smul.addr %s3294, 16
        %s3296 = scalar_lea.vmem [#allocation14], %s3295
        %s3297 = sand.u32 %s284, 1
        %s3298 = scalar_lea.sflag [#allocation16], %s3297
        %s3299 = sand.u32 %s284, 1
        %s3300 = smul.addr %s3299, 4
        %s3301 = scalar_lea.vmem [#allocation15], %s3300
        // Predicated region
        $region57: #{tpu_custom_call.1} parent=43 // pred_check
          %p3302 = pneg %p262
        $region58: #{tpu_custom_call.1} parent=43 // pred_check_branch
          %3304 = sbr.rel (%p3302) target = $region60
        $region59: #{tpu_custom_call.1} parent=43 // pred_region
          %s3305 = sld [smem:[#allocation4 + %s58]]
          %s3306 = sld [smem:[#allocation5 + %s58]]
          %s3307 = smul.u32 4, %s3306
          %s3309 = ssub.s32 256, 256
          %3310 = vsyncadd %s3293, %s3309
          %s3311 = smul.addr %s3305, 4
          %s3312 = sadd.s32 %s3307, %s3311
          %s3313 = smul.addr %s3312, 64
          %s3314 = scalar_lea.hbm %s11, %s3313
          %s3316 = sshll.u32 %s3296, 4
          %s3317 = int_to_ptr.vmem [resolvable:$true] %s3316
          %3319 = dma.vmem_to_hbm [thread:$0]  %s3317, 256, %s3314, %s3293
        $region60: #{tpu_custom_call.1} parent=43 // pred_fallthru
          _
        // Predicated region
        $region61: #{tpu_custom_call.1} parent=43 // pred_check
          %p3320 = pneg %p294
        $region62: #{tpu_custom_call.1} parent=43 // pred_check_branch
          %3322 = sbr.rel (%p3320) target = $region64
        $region63: #{tpu_custom_call.1} parent=43 // pred_region
          %s3323 = sld [smem:[#allocation4 + %s58]]
          %s3324 = sld [smem:[#allocation5 + %s58]]
          %s3325 = smul.u32 4, %s3324
          %s3327 = ssub.s32 64, 64
          %3328 = vsyncadd %s3298, %s3327
          %s3329 = smul.addr %s3323, 4
          %s3330 = sadd.s32 %s3325, %s3329
          %s3331 = smul.addr %s3330, 16
          %s3332 = scalar_lea.hbm %s12, %s3331
          %s3334 = sshll.u32 %s3301, 4
          %s3335 = int_to_ptr.vmem [resolvable:$true] %s3334
          %3337 = dma.vmem_to_hbm [thread:$0]  %s3335, 64, %s3332, %s3298
        $region64: #{tpu_custom_call.1} parent=43 // pred_fallthru
          _
      $region44: #{tpu_custom_call.1} parent=5 // pred_fallthru
        _
      %p3338 = scmp.le.s32.totalorder 2, %s53
      // Predicated region
      $region65: #{tpu_custom_call.1} parent=5 // pred_check
        %p3339 = pneg %p3338
      $region66: #{tpu_custom_call.1} parent=5 // pred_check_branch
        %3341 = sbr.rel (%p3339) target = $region68
      $region67: #{tpu_custom_call.1} parent=5 // pred_region
        %s3342 = ssub.s32 %s53, 2
        // Predicated region
        $region69: #{tpu_custom_call.1} parent=67 // pred_check
          %p3343 = pneg %p268
        $region70: #{tpu_custom_call.1} parent=67 // pred_check_branch
          %3345 = sbr.rel (%p3343) target = $region72
        $region71: #{tpu_custom_call.1} parent=67 // pred_region
          %s3346 = sand.u32 %s253, 1
          %s3347 = scalar_lea.sflag [#allocation11], %s3346
          %s3348 = sand.u32 %s253, 1
          %s3349 = smul.addr %s3348, 16
          %s3350 = scalar_lea.vmem [#allocation14], %s3349
          %3351 = dma.done %s3347, 256
        $region72: #{tpu_custom_call.1} parent=67 // pred_fallthru
          _
        // Predicated region
        $region73: #{tpu_custom_call.1} parent=67 // pred_check
          %p3352 = pneg %p300
        $region74: #{tpu_custom_call.1} parent=67 // pred_check_branch
          %3354 = sbr.rel (%p3352) target = $region76
        $region75: #{tpu_custom_call.1} parent=67 // pred_region
          %s3355 = sand.u32 %s285, 1
          %s3356 = scalar_lea.sflag [#allocation16], %s3355
          %s3357 = sand.u32 %s285, 1
          %s3358 = smul.addr %s3357, 4
          %s3359 = scalar_lea.vmem [#allocation15], %s3358
          %3360 = dma.done %s3356, 64
        $region76: #{tpu_custom_call.1} parent=67 // pred_fallthru
          _
      $region68: #{tpu_custom_call.1} parent=5 // pred_fallthru
        _
    $region6: #{tpu_custom_call.1} parent=1 // loop_footer
      %s57 = sadd.s32 1, %s53
    $region7: #{tpu_custom_call.1} parent=1 // loop_footer_branch
      %52 = sbr.rel target = $region3
    $region8: #{tpu_custom_call.1} parent=1 // loop_exit
      _
    %3361 = vsyncpa [#allocation10], 1
    %s3362 = scalar_lea.sflag [#allocation10], 1
    %3363 = vsyncpa %s3362, 1
    %3364 = vsyncpa [#allocation13], 1
    %s3365 = scalar_lea.sflag [#allocation13], 1
    %3366 = vsyncpa %s3365, 1
    %3367 = vsyncpa [#allocation11], 1
    %s3368 = scalar_lea.sflag [#allocation11], 1
    %3369 = vsyncpa %s3368, 1
    %3370 = vsyncpa [#allocation16], 1
    %s3371 = scalar_lea.sflag [#allocation16], 1
    %3372 = vsyncpa %s3371, 1

</llo_original>
